<compile_context>
chip_gen: v6e
topology: v6e:2x2x1
jax: 0.10.0
libtpu: 0.0.40
codegen_flags: <defaults>
</compile_context>

<pallas_src>
import functools

import jax
import jax.numpy as jnp
from jax import lax
from jax.experimental import pallas as pl
from jax.experimental.pallas import tpu as pltpu


_SQRT_HALF = 0.7071067811865476
_GELU_TANH_C0 = 0.7978845608028654   # sqrt(2/pi)
_GELU_TANH_C1 = 0.044715


def _gelu(x, approx):
    if approx:
        # tanh-based GELU: the transcendental maps to the EUP (its own VLIW
        # slot), whereas lax.erf lowers to a long VPU polynomial that was the
        # saturating VALU slot of this kernel.
        inner = _GELU_TANH_C0 * (x + _GELU_TANH_C1 * x * x * x)
        return 0.5 * x * (1.0 + jnp.tanh(inner))
    # torch.nn.GELU default is the exact erf-based GELU.
    return 0.5 * x * (1.0 + lax.erf(x * _SQRT_HALF))


# ---------------------------------------------------------------------------
# Fused kernel: the entire composed flow, one pass over each batch tile.
# ---------------------------------------------------------------------------
def _nf_compose_kernel(x_ref, w1_ref, b1_ref, w2_ref, b2_ref, w3_ref, b3_ref,
                       o_ref, *, half, reverse_flags, approx_gelu):
    # Slice the Ref (not a loaded full-width value) so each half arrives
    # lane-aligned when half is a multiple of 128.
    lo = x_ref[:, :half].astype(jnp.float32)
    hi = x_ref[:, half:].astype(jnp.float32)

    # Static (unrolled) loop over layers; all fused weights are VMEM-resident.
    for l, rev in enumerate(reverse_flags):
        w1 = w1_ref[l]                              # (d1, 2K)   = [Ws1 | Wt1]
        b1 = b1_ref[l].astype(jnp.float32)          # (1, 2K)
        w2 = w2_ref[l]                              # (2K, 2K)   = blockdiag(Ws2, Wt2)
        b2 = b2_ref[l].astype(jnp.float32)          # (1, 2K)
        w3 = w3_ref[l]                              # (2K, 2*d2) = blockdiag(Ws3, Wt3)
        b3 = b3_ref[l].astype(jnp.float32)          # (1, 2*d2)

        cond = hi if rev else lo                    # pass-through half -> s, t
        # MXU operands cast to the weight dtype (bf16 on the fast path);
        # accumulation stays f32 via preferred_element_type.
        h = _gelu(jnp.dot(cond.astype(w1.dtype), w1,
                          preferred_element_type=jnp.float32) + b1, approx_gelu)
        h = _gelu(jnp.dot(h.astype(w2.dtype), w2,
                          preferred_element_type=jnp.float32) + b2, approx_gelu)
        st = jnp.dot(h.astype(w3.dtype), w3,
                     preferred_element_type=jnp.float32) + b3
        # half == 128 -> these slices land on (8,128) tile boundaries (copy-free).
        s = st[:, :half]
        t = st[:, half:]
        if rev:
            lo = jnp.exp(s) * lo + t
        else:
            hi = jnp.exp(s) * hi + t

    # No in-kernel concatenate: two half-width, lane-dense stores.
    o_ref[:, :half] = lo.astype(o_ref.dtype)
    o_ref[:, half:] = hi.astype(o_ref.dtype)


# ---------------------------------------------------------------------------
# Parameter init (mirrors the PyTorch module: 0.001 * randn, weights (in, out))
# ---------------------------------------------------------------------------
def init_affine_coupling_params(key, dim, K=32):
    d1 = dim // 2
    d2 = dim - d1
    shapes = [
        (d1, K), (1, K),   # s: linear 1
        (K, K), (1, K),    # s: linear 2
        (K, d2), (1, d2),  # s: linear 3
        (d1, K), (1, K),   # t: linear 1
        (K, K), (1, K),    # t: linear 2
        (K, d2), (1, d2),  # t: linear 3
    ]
    keys = jax.random.split(key, len(shapes))
    return [0.001 * jax.random.normal(k, s, dtype=jnp.float32)
            for k, s in zip(keys, shapes)]


def _block_diag(a, b):
    ra, ca = a.shape
    rb, cb = b.shape
    top = jnp.concatenate([a, jnp.zeros((ra, cb), a.dtype)], axis=1)
    bot = jnp.concatenate([jnp.zeros((rb, ca), b.dtype), b], axis=1)
    return jnp.concatenate([top, bot], axis=0)


def _pack_layer(params):
    """Fuse the s- and t-MLP weights of one coupling layer into wide matrices."""
    ws1, bs1, ws2, bs2, ws3, bs3, wt1, bt1, wt2, bt2, wt3, bt3 = params
    w1 = jnp.concatenate([ws1, wt1], axis=1)   # (d1, 2K)
    b1 = jnp.concatenate([bs1, bt1], axis=1)   # (1, 2K)
    w2 = _block_diag(ws2, wt2)                 # (2K, 2K)
    b2 = jnp.concatenate([bs2, bt2], axis=1)   # (1, 2K)
    w3 = _block_diag(ws3, wt3)                 # (2K, 2*d2)
    b3 = jnp.concatenate([bs3, bt3], axis=1)   # (1, 2*d2)
    return w1, b1, w2, b2, w3, b3


# ---------------------------------------------------------------------------
# Hardware-aware tiling helpers
# ---------------------------------------------------------------------------
def _tpu_chip_info():
    """(num_tensorcores, physical_vmem_bytes) with conservative fallbacks.

    Fallback assumes a v7x-like chip (2 TCs, 64 MiB VMEM): splitting the grid
    on a single-TC chip only costs ~0.35us/step, while an unsplit grid on a
    2-TC chip leaves half the machine idle.
    """
    num_cores, vmem_bytes = 2, 64 << 20
    try:
        info = pltpu.get_tpu_info()
        v = getattr(info, "vmem_capacity_bytes", None)
        if v:
            vmem_bytes = int(v)
        for attr in ("num_cores", "tensorcore_count", "num_tensorcores",
                     "core_count", "num_cores_per_chip"):
            c = getattr(info, attr, None)
            if c:
                num_cores = int(c)
                break
    except Exception:
        pass
    return num_cores, vmem_bytes


def _choose_block_n(N, requested, num_cores, dim, phys_vmem_bytes):
    # Keep double-buffered x/out tiles plus the f32 lo/hi/h/st intermediates
    # well inside the VMEM budget (matters on v7x's 64 MiB physical VMEM).
    per_row_bytes = (4 * dim + 3 * dim) * 4
    cap = max(8, (phys_vmem_bytes // 2) // per_row_bytes)
    limit = min(requested, N, 2048, cap)
    divisors = [d for d in range(8, N + 1, 8) if N % d == 0 and d <= limit]
    if not divisors:
        raise ValueError("batch size needs a divisor that is a multiple of 8 "
                         "and fits the requested/VMEM-limited tile size")
    if num_cores > 1:
        # "parallel" batch axis is sharded across TensorCores: keep the grid a
        # multiple of the core count so no core gets 2x the work.
        balanced = [d for d in divisors if (N // d) % num_cores == 0]
        if balanced:
            # Prefer >= 2 steps/core (hides the DMA prologue) as long as the
            # tile stays large enough to amortize per-step overhead.
            deep = [d for d in balanced if N // d >= 2 * num_cores and d >= 256]
            divisors = deep or balanced
    return max(divisors)


def _vmem_budget_bytes(block_n, dim, two_k, L, x_itemsize, w_itemsize,
                       phys_vmem_bytes):
    io = 2 * 2 * block_n * dim * x_itemsize                        # 2x-buffered x + out
    weights = 2 * L * (((dim // 2) * two_k + two_k * two_k + two_k * dim)
                       * w_itemsize + (two_k + two_k + dim) * 4)   # + f32 biases
    inter = block_n * (dim + 2 * two_k + dim) * 4                  # lo/hi, h, st (f32)
    est = int(1.5 * (io + weights + inter)) + (2 << 20)
    return max(16 << 20, min(est, phys_vmem_bytes - (4 << 20)))


# ---------------------------------------------------------------------------
# Wrapper
# ---------------------------------------------------------------------------
def nf_compose_forward(x, layer_params, reverse_flags, *, block_n=None,
                       use_bf16_matmul=True, approx_gelu=True,
                       donate_x=False, vmem_limit_bytes=None):
    N, dim = x.shape
    assert dim % 2 == 0, "coupling layers require an even feature dim (d1 == d2)"
    half = dim // 2
    # NOTE: if half % 128 != 0 results are still correct, but the half slices
    # stop being lane-aligned (relayout copies + masked stores) — perf cliff.
    L = len(layer_params)
    assert len(reverse_flags) == L

    w_dtype = jnp.bfloat16 if use_bf16_matmul else jnp.float32
    packed = [_pack_layer(p) for p in layer_params]
    w1 = jnp.stack([p[0] for p in packed]).astype(w_dtype)    # (L, d1, 2K)
    b1 = jnp.stack([p[1] for p in packed]).astype(jnp.float32)
    w2 = jnp.stack([p[2] for p in packed]).astype(w_dtype)    # (L, 2K, 2K)
    b2 = jnp.stack([p[3] for p in packed]).astype(jnp.float32)
    w3 = jnp.stack([p[4] for p in packed]).astype(w_dtype)    # (L, 2K, 2*d2)
    b3 = jnp.stack([p[5] for p in packed]).astype(jnp.float32)
    weight_arrays = (w1, b1, w2, b2, w3, b3)
    two_k = w2.shape[-1]

    num_cores, phys_vmem = _tpu_chip_info()
    block_n = _choose_block_n(N, block_n or 1024, num_cores, dim, phys_vmem)
    grid = (N // block_n,)

    if vmem_limit_bytes is None:
        vmem_limit_bytes = _vmem_budget_bytes(
            block_n, dim, two_k, L, x.dtype.itemsize, w1.dtype.itemsize,
            phys_vmem)

    kernel = functools.partial(
        _nf_compose_kernel, half=half,
        reverse_flags=tuple(bool(r) for r in reverse_flags),
        approx_gelu=bool(approx_gelu))

    x_spec = pl.BlockSpec((block_n, dim), lambda i: (i, 0))
    # Weights: one full block, constant index -> loaded once and reused.
    weight_specs = [
        pl.BlockSpec(w.shape, lambda i, _nd=w.ndim: (0,) * _nd)
        for w in weight_arrays
    ]

    return pl.pallas_call(
        kernel,
        out_shape=jax.ShapeDtypeStruct((N, dim), x.dtype),
        grid_spec=pltpu.PrefetchScalarGridSpec(
            num_scalar_prefetch=0,
            grid=grid,
            in_specs=[x_spec] + weight_specs,
            out_specs=pl.BlockSpec((block_n, dim), lambda i: (i, 0)),
        ),
        compiler_params=pltpu.CompilerParams(
            dimension_semantics=("parallel",),
            vmem_limit_bytes=int(vmem_limit_bytes),
        ),
        # Every element of x is overwritten -> the output can reuse x's HBM
        # buffer (no bandwidth change, free footprint win).
        input_output_aliases=({0: 0} if donate_x else {}),
    )(x, *weight_arrays)


# ---------------------------------------------------------------------------
# Pure-JAX reference (unfused, layer by layer — mirrors the PyTorch module)
# ---------------------------------------------------------------------------
def _mlp(x1, w1, b1, w2, b2, w3, b3):
    h = _gelu(jnp.dot(x1, w1, preferred_element_type=jnp.float32) + b1, False)
    h = _gelu(jnp.dot(h, w2, preferred_element_type=jnp.float32) + b2, False)
    return jnp.dot(h, w3, preferred_element_type=jnp.float32) + b3


def _coupling_ref(x, params, reverse):
    half = x.shape[-1] // 2
    if reverse:
        x2, x1 = x[:, :half], x[:, half:]
    else:
        x1, x2 = x[:, :half], x[:, half:]
    ws1, bs1, ws2, bs2, ws3, bs3, wt1, bt1, wt2, bt2, wt3, bt3 = params
    s = _mlp(x1, ws1, bs1, ws2, bs2, ws3, bs3)
    t = _mlp(x1, wt1, bt1, wt2, bt2, wt3, bt3)
    y2 = jnp.exp(s) * x2 + t
    return (jnp.concatenate([y2, x1], -1) if reverse
            else jnp.concatenate([x1, y2], -1))


def _reference_forward(x, layer_params, reverse_flags):
    for p, r in zip(layer_params, reverse_flags):
        x = _coupling_ref(x, p, r)
    return x


if __name__ == "__main__":
    N, dim, K, L = 1024, 256, 32, 4   # half=128 -> lane-aligned halves
    key = jax.random.PRNGKey(0)
    kx, kp = jax.random.split(key)
    x = jax.random.normal(kx, (N, dim), dtype=jnp.float32)
    layer_keys = jax.random.split(kp, L)
    layer_params = [init_affine_coupling_params(k, dim, K) for k in layer_keys]
    reverse_flags = tuple(bool(i % 2) for i in range(L))   # alternate halves

    y_ref = _reference_forward(x, layer_params, reverse_flags)

    # Exact path (f32 matmuls, erf GELU): tight parity with the reference.
    y_exact = nf_compose_forward(x, layer_params, reverse_flags,
                                 use_bf16_matmul=False, approx_gelu=False)
    y_exact = jax.block_until_ready(y_exact)
    assert y_exact.shape == (N, dim)
    assert jnp.allclose(y_exact, y_ref, atol=1e-5, rtol=1e-5), \
        "exact-path mismatch vs reference"

    # Fast path (default): bf16 MXU operands + tanh GELU on the EUP, x donated
    # into the output buffer via input_output_aliases (real donation under jit).
    fast_fn = jax.jit(
        lambda xx: nf_compose_forward(xx, layer_params, reverse_flags,
                                      use_bf16_matmul=True, approx_gelu=True,
                                      donate_x=True),
        donate_argnums=0)
    y_fast = jax.block_until_ready(fast_fn(x))
    assert y_fast.shape == (N, dim)
    assert jnp.allclose(y_fast, y_ref, atol=2e-3, rtol=2e-3), \
        "fast-path mismatch vs reference"

    print("KERNEL_OK")
</pallas_src>

<mosaic_0001>
module attributes {stable_mosaic.version = 11 : i64} {
  func.func @_nf_compose_kernel(%arg0: i32, %arg1: memref<256x256xf32, #tpu.memory_space<vmem>>, %arg2: memref<4x128x64xf32, #tpu.memory_space<vmem>>, %arg3: memref<4x1x64xf32, #tpu.memory_space<vmem>>, %arg4: memref<4x64x64xf32, #tpu.memory_space<vmem>>, %arg5: memref<4x1x64xf32, #tpu.memory_space<vmem>>, %arg6: memref<4x64x256xf32, #tpu.memory_space<vmem>>, %arg7: memref<4x1x256xf32, #tpu.memory_space<vmem>>, %arg8: memref<256x256xf32, #tpu.memory_space<vmem>>) attributes {dimension_semantics = [#tpu.dimension_semantics<parallel>], iteration_bounds = array<i64: 4>, scalar_prefetch = 0 : i64, scratch_operands = 0 : i64, tpu.core_type = #tpu.core_type<tc>, window_params = [{transform_indices = @transform_0, window_bounds = array<i64: 256, 256>}, {pipeline_mode = #tpu.pipeline_mode<synchronous>, transform_indices = @transform_1, window_bounds = array<i64: 4, 128, 64>}, {pipeline_mode = #tpu.pipeline_mode<synchronous>, transform_indices = @transform_2, window_bounds = array<i64: 4, 1, 64>}, {pipeline_mode = #tpu.pipeline_mode<synchronous>, transform_indices = @transform_3, window_bounds = array<i64: 4, 64, 64>}, {pipeline_mode = #tpu.pipeline_mode<synchronous>, transform_indices = @transform_4, window_bounds = array<i64: 4, 1, 64>}, {pipeline_mode = #tpu.pipeline_mode<synchronous>, transform_indices = @transform_5, window_bounds = array<i64: 4, 64, 256>}, {pipeline_mode = #tpu.pipeline_mode<synchronous>, transform_indices = @transform_6, window_bounds = array<i64: 4, 1, 256>}, {transform_indices = @transform_7, window_bounds = array<i64: 256, 256>}]} {
    %c0 = arith.constant 0 : index
    %c0_0 = arith.constant 0 : index
    %0 = vector.load %arg1[%c0, %c0_0] : memref<256x256xf32, #tpu.memory_space<vmem>>, vector<256x128xf32>
    %c0_1 = arith.constant 0 : index
    %c128 = arith.constant 128 : index
    %1 = vector.load %arg1[%c0_1, %c128] : memref<256x256xf32, #tpu.memory_space<vmem>>, vector<256x128xf32>
    %c0_2 = arith.constant 0 : index
    %c0_3 = arith.constant 0 : index
    %c0_4 = arith.constant 0 : index
    %2 = vector.load %arg2[%c0_2, %c0_3, %c0_4] : memref<4x128x64xf32, #tpu.memory_space<vmem>>, vector<1x128x64xf32>
    %3 = vector.shape_cast %2 : vector<1x128x64xf32> to vector<128x64xf32>
    %c0_5 = arith.constant 0 : index
    %c0_6 = arith.constant 0 : index
    %c0_7 = arith.constant 0 : index
    %4 = vector.load %arg3[%c0_5, %c0_6, %c0_7] : memref<4x1x64xf32, #tpu.memory_space<vmem>>, vector<1x1x64xf32>
    %5 = vector.shape_cast %4 : vector<1x1x64xf32> to vector<1x64xf32>
    %c0_8 = arith.constant 0 : index
    %c0_9 = arith.constant 0 : index
    %c0_10 = arith.constant 0 : index
    %6 = vector.load %arg4[%c0_8, %c0_9, %c0_10] : memref<4x64x64xf32, #tpu.memory_space<vmem>>, vector<1x64x64xf32>
    %7 = vector.shape_cast %6 : vector<1x64x64xf32> to vector<64x64xf32>
    %c0_11 = arith.constant 0 : index
    %c0_12 = arith.constant 0 : index
    %c0_13 = arith.constant 0 : index
    %8 = vector.load %arg5[%c0_11, %c0_12, %c0_13] : memref<4x1x64xf32, #tpu.memory_space<vmem>>, vector<1x1x64xf32>
    %9 = vector.shape_cast %8 : vector<1x1x64xf32> to vector<1x64xf32>
    %c0_14 = arith.constant 0 : index
    %c0_15 = arith.constant 0 : index
    %c0_16 = arith.constant 0 : index
    %10 = vector.load %arg6[%c0_14, %c0_15, %c0_16] : memref<4x64x256xf32, #tpu.memory_space<vmem>>, vector<1x64x256xf32>
    %11 = vector.shape_cast %10 : vector<1x64x256xf32> to vector<64x256xf32>
    %c0_17 = arith.constant 0 : index
    %c0_18 = arith.constant 0 : index
    %c0_19 = arith.constant 0 : index
    %12 = vector.load %arg7[%c0_17, %c0_18, %c0_19] : memref<4x1x256xf32, #tpu.memory_space<vmem>>, vector<1x1x256xf32>
    %13 = vector.shape_cast %12 : vector<1x1x256xf32> to vector<1x256xf32>
    %cst = arith.constant dense<0.000000e+00> : vector<256x64xf32>
    %14 = tpu.matmul %0, %3, %cst {dimension_numbers = #tpu.dot_dimension_numbers<[1], [0], [0], [1], [0, 0, 1, 1], [], []>} : vector<256x128xf32>, vector<128x64xf32>, vector<256x64xf32> -> vector<256x64xf32>
    %15 = vector.broadcast %5 : vector<1x64xf32> to vector<256x64xf32>
    %16 = arith.addf %14, %15 : vector<256x64xf32>
    %cst_20 = arith.constant 5.000000e-01 : f32
    %17 = vector.broadcast %cst_20 : f32 to vector<256x64xf32>
    %18 = arith.mulf %17, %16 : vector<256x64xf32>
    %cst_21 = arith.constant 0.707106769 : f32
    %19 = vector.broadcast %cst_21 : f32 to vector<256x64xf32>
    %20 = arith.mulf %16, %19 : vector<256x64xf32>
    %21 = math.erf %20 : vector<256x64xf32>
    %cst_22 = arith.constant 1.000000e+00 : f32
    %22 = vector.broadcast %cst_22 : f32 to vector<256x64xf32>
    %23 = arith.addf %22, %21 : vector<256x64xf32>
    %24 = arith.mulf %18, %23 : vector<256x64xf32>
    %cst_23 = arith.constant dense<0.000000e+00> : vector<256x64xf32>
    %25 = tpu.matmul %24, %7, %cst_23 {dimension_numbers = #tpu.dot_dimension_numbers<[1], [0], [0], [1], [0, 0, 1, 1], [], []>} : vector<256x64xf32>, vector<64x64xf32>, vector<256x64xf32> -> vector<256x64xf32>
    %26 = vector.broadcast %9 : vector<1x64xf32> to vector<256x64xf32>
    %27 = arith.addf %25, %26 : vector<256x64xf32>
    %cst_24 = arith.constant 5.000000e-01 : f32
    %28 = vector.broadcast %cst_24 : f32 to vector<256x64xf32>
    %29 = arith.mulf %28, %27 : vector<256x64xf32>
    %cst_25 = arith.constant 0.707106769 : f32
    %30 = vector.broadcast %cst_25 : f32 to vector<256x64xf32>
    %31 = arith.mulf %27, %30 : vector<256x64xf32>
    %32 = math.erf %31 : vector<256x64xf32>
    %cst_26 = arith.constant 1.000000e+00 : f32
    %33 = vector.broadcast %cst_26 : f32 to vector<256x64xf32>
    %34 = arith.addf %33, %32 : vector<256x64xf32>
    %35 = arith.mulf %29, %34 : vector<256x64xf32>
    %cst_27 = arith.constant dense<0.000000e+00> : vector<256x256xf32>
    %36 = tpu.matmul %35, %11, %cst_27 {dimension_numbers = #tpu.dot_dimension_numbers<[1], [0], [0], [1], [0, 0, 1, 1], [], []>} : vector<256x64xf32>, vector<64x256xf32>, vector<256x256xf32> -> vector<256x256xf32>
    %37 = vector.broadcast %13 : vector<1x256xf32> to vector<256x256xf32>
    %38 = arith.addf %36, %37 : vector<256x256xf32>
    %39 = vector.extract_strided_slice %38 {offsets = [0, 0], sizes = [256, 128], strides = [1, 1]} : vector<256x256xf32> to vector<256x128xf32>
    %40 = vector.extract_strided_slice %38 {offsets = [0, 128], sizes = [256, 128], strides = [1, 1]} : vector<256x256xf32> to vector<256x128xf32>
    %41 = math.exp %39 : vector<256x128xf32>
    %42 = arith.mulf %41, %1 : vector<256x128xf32>
    %43 = arith.addf %42, %40 : vector<256x128xf32>
    %c1 = arith.constant 1 : index
    %c0_28 = arith.constant 0 : index
    %c0_29 = arith.constant 0 : index
    %44 = vector.load %arg2[%c1, %c0_28, %c0_29] : memref<4x128x64xf32, #tpu.memory_space<vmem>>, vector<1x128x64xf32>
    %45 = vector.shape_cast %44 : vector<1x128x64xf32> to vector<128x64xf32>
    %c1_30 = arith.constant 1 : index
    %c0_31 = arith.constant 0 : index
    %c0_32 = arith.constant 0 : index
    %46 = vector.load %arg3[%c1_30, %c0_31, %c0_32] : memref<4x1x64xf32, #tpu.memory_space<vmem>>, vector<1x1x64xf32>
    %47 = vector.shape_cast %46 : vector<1x1x64xf32> to vector<1x64xf32>
    %c1_33 = arith.constant 1 : index
    %c0_34 = arith.constant 0 : index
    %c0_35 = arith.constant 0 : index
    %48 = vector.load %arg4[%c1_33, %c0_34, %c0_35] : memref<4x64x64xf32, #tpu.memory_space<vmem>>, vector<1x64x64xf32>
    %49 = vector.shape_cast %48 : vector<1x64x64xf32> to vector<64x64xf32>
    %c1_36 = arith.constant 1 : index
    %c0_37 = arith.constant 0 : index
    %c0_38 = arith.constant 0 : index
    %50 = vector.load %arg5[%c1_36, %c0_37, %c0_38] : memref<4x1x64xf32, #tpu.memory_space<vmem>>, vector<1x1x64xf32>
    %51 = vector.shape_cast %50 : vector<1x1x64xf32> to vector<1x64xf32>
    %c1_39 = arith.constant 1 : index
    %c0_40 = arith.constant 0 : index
    %c0_41 = arith.constant 0 : index
    %52 = vector.load %arg6[%c1_39, %c0_40, %c0_41] : memref<4x64x256xf32, #tpu.memory_space<vmem>>, vector<1x64x256xf32>
    %53 = vector.shape_cast %52 : vector<1x64x256xf32> to vector<64x256xf32>
    %c1_42 = arith.constant 1 : index
    %c0_43 = arith.constant 0 : index
    %c0_44 = arith.constant 0 : index
    %54 = vector.load %arg7[%c1_42, %c0_43, %c0_44] : memref<4x1x256xf32, #tpu.memory_space<vmem>>, vector<1x1x256xf32>
    %55 = vector.shape_cast %54 : vector<1x1x256xf32> to vector<1x256xf32>
    %cst_45 = arith.constant dense<0.000000e+00> : vector<256x64xf32>
    %56 = tpu.matmul %43, %45, %cst_45 {dimension_numbers = #tpu.dot_dimension_numbers<[1], [0], [0], [1], [0, 0, 1, 1], [], []>} : vector<256x128xf32>, vector<128x64xf32>, vector<256x64xf32> -> vector<256x64xf32>
    %57 = vector.broadcast %47 : vector<1x64xf32> to vector<256x64xf32>
    %58 = arith.addf %56, %57 : vector<256x64xf32>
    %cst_46 = arith.constant 5.000000e-01 : f32
    %59 = vector.broadcast %cst_46 : f32 to vector<256x64xf32>
    %60 = arith.mulf %59, %58 : vector<256x64xf32>
    %cst_47 = arith.constant 0.707106769 : f32
    %61 = vector.broadcast %cst_47 : f32 to vector<256x64xf32>
    %62 = arith.mulf %58, %61 : vector<256x64xf32>
    %63 = math.erf %62 : vector<256x64xf32>
    %cst_48 = arith.constant 1.000000e+00 : f32
    %64 = vector.broadcast %cst_48 : f32 to vector<256x64xf32>
    %65 = arith.addf %64, %63 : vector<256x64xf32>
    %66 = arith.mulf %60, %65 : vector<256x64xf32>
    %cst_49 = arith.constant dense<0.000000e+00> : vector<256x64xf32>
    %67 = tpu.matmul %66, %49, %cst_49 {dimension_numbers = #tpu.dot_dimension_numbers<[1], [0], [0], [1], [0, 0, 1, 1], [], []>} : vector<256x64xf32>, vector<64x64xf32>, vector<256x64xf32> -> vector<256x64xf32>
    %68 = vector.broadcast %51 : vector<1x64xf32> to vector<256x64xf32>
    %69 = arith.addf %67, %68 : vector<256x64xf32>
    %cst_50 = arith.constant 5.000000e-01 : f32
    %70 = vector.broadcast %cst_50 : f32 to vector<256x64xf32>
    %71 = arith.mulf %70, %69 : vector<256x64xf32>
    %cst_51 = arith.constant 0.707106769 : f32
    %72 = vector.broadcast %cst_51 : f32 to vector<256x64xf32>
    %73 = arith.mulf %69, %72 : vector<256x64xf32>
    %74 = math.erf %73 : vector<256x64xf32>
    %cst_52 = arith.constant 1.000000e+00 : f32
    %75 = vector.broadcast %cst_52 : f32 to vector<256x64xf32>
    %76 = arith.addf %75, %74 : vector<256x64xf32>
    %77 = arith.mulf %71, %76 : vector<256x64xf32>
    %cst_53 = arith.constant dense<0.000000e+00> : vector<256x256xf32>
    %78 = tpu.matmul %77, %53, %cst_53 {dimension_numbers = #tpu.dot_dimension_numbers<[1], [0], [0], [1], [0, 0, 1, 1], [], []>} : vector<256x64xf32>, vector<64x256xf32>, vector<256x256xf32> -> vector<256x256xf32>
    %79 = vector.broadcast %55 : vector<1x256xf32> to vector<256x256xf32>
    %80 = arith.addf %78, %79 : vector<256x256xf32>
    %81 = vector.extract_strided_slice %80 {offsets = [0, 0], sizes = [256, 128], strides = [1, 1]} : vector<256x256xf32> to vector<256x128xf32>
    %82 = vector.extract_strided_slice %80 {offsets = [0, 128], sizes = [256, 128], strides = [1, 1]} : vector<256x256xf32> to vector<256x128xf32>
    %83 = math.exp %81 : vector<256x128xf32>
    %84 = arith.mulf %83, %0 : vector<256x128xf32>
    %85 = arith.addf %84, %82 : vector<256x128xf32>
    %c2 = arith.constant 2 : index
    %c0_54 = arith.constant 0 : index
    %c0_55 = arith.constant 0 : index
    %86 = vector.load %arg2[%c2, %c0_54, %c0_55] : memref<4x128x64xf32, #tpu.memory_space<vmem>>, vector<1x128x64xf32>
    %87 = vector.shape_cast %86 : vector<1x128x64xf32> to vector<128x64xf32>
    %c2_56 = arith.constant 2 : index
    %c0_57 = arith.constant 0 : index
    %c0_58 = arith.constant 0 : index
    %88 = vector.load %arg3[%c2_56, %c0_57, %c0_58] : memref<4x1x64xf32, #tpu.memory_space<vmem>>, vector<1x1x64xf32>
    %89 = vector.shape_cast %88 : vector<1x1x64xf32> to vector<1x64xf32>
    %c2_59 = arith.constant 2 : index
    %c0_60 = arith.constant 0 : index
    %c0_61 = arith.constant 0 : index
    %90 = vector.load %arg4[%c2_59, %c0_60, %c0_61] : memref<4x64x64xf32, #tpu.memory_space<vmem>>, vector<1x64x64xf32>
    %91 = vector.shape_cast %90 : vector<1x64x64xf32> to vector<64x64xf32>
    %c2_62 = arith.constant 2 : index
    %c0_63 = arith.constant 0 : index
    %c0_64 = arith.constant 0 : index
    %92 = vector.load %arg5[%c2_62, %c0_63, %c0_64] : memref<4x1x64xf32, #tpu.memory_space<vmem>>, vector<1x1x64xf32>
    %93 = vector.shape_cast %92 : vector<1x1x64xf32> to vector<1x64xf32>
    %c2_65 = arith.constant 2 : index
    %c0_66 = arith.constant 0 : index
    %c0_67 = arith.constant 0 : index
    %94 = vector.load %arg6[%c2_65, %c0_66, %c0_67] : memref<4x64x256xf32, #tpu.memory_space<vmem>>, vector<1x64x256xf32>
    %95 = vector.shape_cast %94 : vector<1x64x256xf32> to vector<64x256xf32>
    %c2_68 = arith.constant 2 : index
    %c0_69 = arith.constant 0 : index
    %c0_70 = arith.constant 0 : index
    %96 = vector.load %arg7[%c2_68, %c0_69, %c0_70] : memref<4x1x256xf32, #tpu.memory_space<vmem>>, vector<1x1x256xf32>
    %97 = vector.shape_cast %96 : vector<1x1x256xf32> to vector<1x256xf32>
    %cst_71 = arith.constant dense<0.000000e+00> : vector<256x64xf32>
    %98 = tpu.matmul %85, %87, %cst_71 {dimension_numbers = #tpu.dot_dimension_numbers<[1], [0], [0], [1], [0, 0, 1, 1], [], []>} : vector<256x128xf32>, vector<128x64xf32>, vector<256x64xf32> -> vector<256x64xf32>
    %99 = vector.broadcast %89 : vector<1x64xf32> to vector<256x64xf32>
    %100 = arith.addf %98, %99 : vector<256x64xf32>
    %cst_72 = arith.constant 5.000000e-01 : f32
    %101 = vector.broadcast %cst_72 : f32 to vector<256x64xf32>
    %102 = arith.mulf %101, %100 : vector<256x64xf32>
    %cst_73 = arith.constant 0.707106769 : f32
    %103 = vector.broadcast %cst_73 : f32 to vector<256x64xf32>
    %104 = arith.mulf %100, %103 : vector<256x64xf32>
    %105 = math.erf %104 : vector<256x64xf32>
    %cst_74 = arith.constant 1.000000e+00 : f32
    %106 = vector.broadcast %cst_74 : f32 to vector<256x64xf32>
    %107 = arith.addf %106, %105 : vector<256x64xf32>
    %108 = arith.mulf %102, %107 : vector<256x64xf32>
    %cst_75 = arith.constant dense<0.000000e+00> : vector<256x64xf32>
    %109 = tpu.matmul %108, %91, %cst_75 {dimension_numbers = #tpu.dot_dimension_numbers<[1], [0], [0], [1], [0, 0, 1, 1], [], []>} : vector<256x64xf32>, vector<64x64xf32>, vector<256x64xf32> -> vector<256x64xf32>
    %110 = vector.broadcast %93 : vector<1x64xf32> to vector<256x64xf32>
    %111 = arith.addf %109, %110 : vector<256x64xf32>
    %cst_76 = arith.constant 5.000000e-01 : f32
    %112 = vector.broadcast %cst_76 : f32 to vector<256x64xf32>
    %113 = arith.mulf %112, %111 : vector<256x64xf32>
    %cst_77 = arith.constant 0.707106769 : f32
    %114 = vector.broadcast %cst_77 : f32 to vector<256x64xf32>
    %115 = arith.mulf %111, %114 : vector<256x64xf32>
    %116 = math.erf %115 : vector<256x64xf32>
    %cst_78 = arith.constant 1.000000e+00 : f32
    %117 = vector.broadcast %cst_78 : f32 to vector<256x64xf32>
    %118 = arith.addf %117, %116 : vector<256x64xf32>
    %119 = arith.mulf %113, %118 : vector<256x64xf32>
    %cst_79 = arith.constant dense<0.000000e+00> : vector<256x256xf32>
    %120 = tpu.matmul %119, %95, %cst_79 {dimension_numbers = #tpu.dot_dimension_numbers<[1], [0], [0], [1], [0, 0, 1, 1], [], []>} : vector<256x64xf32>, vector<64x256xf32>, vector<256x256xf32> -> vector<256x256xf32>
    %121 = vector.broadcast %97 : vector<1x256xf32> to vector<256x256xf32>
    %122 = arith.addf %120, %121 : vector<256x256xf32>
    %123 = vector.extract_strided_slice %122 {offsets = [0, 0], sizes = [256, 128], strides = [1, 1]} : vector<256x256xf32> to vector<256x128xf32>
    %124 = vector.extract_strided_slice %122 {offsets = [0, 128], sizes = [256, 128], strides = [1, 1]} : vector<256x256xf32> to vector<256x128xf32>
    %125 = math.exp %123 : vector<256x128xf32>
    %126 = arith.mulf %125, %43 : vector<256x128xf32>
    %127 = arith.addf %126, %124 : vector<256x128xf32>
    %c3 = arith.constant 3 : index
    %c0_80 = arith.constant 0 : index
    %c0_81 = arith.constant 0 : index
    %128 = vector.load %arg2[%c3, %c0_80, %c0_81] : memref<4x128x64xf32, #tpu.memory_space<vmem>>, vector<1x128x64xf32>
    %129 = vector.shape_cast %128 : vector<1x128x64xf32> to vector<128x64xf32>
    %c3_82 = arith.constant 3 : index
    %c0_83 = arith.constant 0 : index
    %c0_84 = arith.constant 0 : index
    %130 = vector.load %arg3[%c3_82, %c0_83, %c0_84] : memref<4x1x64xf32, #tpu.memory_space<vmem>>, vector<1x1x64xf32>
    %131 = vector.shape_cast %130 : vector<1x1x64xf32> to vector<1x64xf32>
    %c3_85 = arith.constant 3 : index
    %c0_86 = arith.constant 0 : index
    %c0_87 = arith.constant 0 : index
    %132 = vector.load %arg4[%c3_85, %c0_86, %c0_87] : memref<4x64x64xf32, #tpu.memory_space<vmem>>, vector<1x64x64xf32>
    %133 = vector.shape_cast %132 : vector<1x64x64xf32> to vector<64x64xf32>
    %c3_88 = arith.constant 3 : index
    %c0_89 = arith.constant 0 : index
    %c0_90 = arith.constant 0 : index
    %134 = vector.load %arg5[%c3_88, %c0_89, %c0_90] : memref<4x1x64xf32, #tpu.memory_space<vmem>>, vector<1x1x64xf32>
    %135 = vector.shape_cast %134 : vector<1x1x64xf32> to vector<1x64xf32>
    %c3_91 = arith.constant 3 : index
    %c0_92 = arith.constant 0 : index
    %c0_93 = arith.constant 0 : index
    %136 = vector.load %arg6[%c3_91, %c0_92, %c0_93] : memref<4x64x256xf32, #tpu.memory_space<vmem>>, vector<1x64x256xf32>
    %137 = vector.shape_cast %136 : vector<1x64x256xf32> to vector<64x256xf32>
    %c3_94 = arith.constant 3 : index
    %c0_95 = arith.constant 0 : index
    %c0_96 = arith.constant 0 : index
    %138 = vector.load %arg7[%c3_94, %c0_95, %c0_96] : memref<4x1x256xf32, #tpu.memory_space<vmem>>, vector<1x1x256xf32>
    %139 = vector.shape_cast %138 : vector<1x1x256xf32> to vector<1x256xf32>
    %cst_97 = arith.constant dense<0.000000e+00> : vector<256x64xf32>
    %140 = tpu.matmul %127, %129, %cst_97 {dimension_numbers = #tpu.dot_dimension_numbers<[1], [0], [0], [1], [0, 0, 1, 1], [], []>} : vector<256x128xf32>, vector<128x64xf32>, vector<256x64xf32> -> vector<256x64xf32>
    %141 = vector.broadcast %131 : vector<1x64xf32> to vector<256x64xf32>
    %142 = arith.addf %140, %141 : vector<256x64xf32>
    %cst_98 = arith.constant 5.000000e-01 : f32
    %143 = vector.broadcast %cst_98 : f32 to vector<256x64xf32>
    %144 = arith.mulf %143, %142 : vector<256x64xf32>
    %cst_99 = arith.constant 0.707106769 : f32
    %145 = vector.broadcast %cst_99 : f32 to vector<256x64xf32>
    %146 = arith.mulf %142, %145 : vector<256x64xf32>
    %147 = math.erf %146 : vector<256x64xf32>
    %cst_100 = arith.constant 1.000000e+00 : f32
    %148 = vector.broadcast %cst_100 : f32 to vector<256x64xf32>
    %149 = arith.addf %148, %147 : vector<256x64xf32>
    %150 = arith.mulf %144, %149 : vector<256x64xf32>
    %cst_101 = arith.constant dense<0.000000e+00> : vector<256x64xf32>
    %151 = tpu.matmul %150, %133, %cst_101 {dimension_numbers = #tpu.dot_dimension_numbers<[1], [0], [0], [1], [0, 0, 1, 1], [], []>} : vector<256x64xf32>, vector<64x64xf32>, vector<256x64xf32> -> vector<256x64xf32>
    %152 = vector.broadcast %135 : vector<1x64xf32> to vector<256x64xf32>
    %153 = arith.addf %151, %152 : vector<256x64xf32>
    %cst_102 = arith.constant 5.000000e-01 : f32
    %154 = vector.broadcast %cst_102 : f32 to vector<256x64xf32>
    %155 = arith.mulf %154, %153 : vector<256x64xf32>
    %cst_103 = arith.constant 0.707106769 : f32
    %156 = vector.broadcast %cst_103 : f32 to vector<256x64xf32>
    %157 = arith.mulf %153, %156 : vector<256x64xf32>
    %158 = math.erf %157 : vector<256x64xf32>
    %cst_104 = arith.constant 1.000000e+00 : f32
    %159 = vector.broadcast %cst_104 : f32 to vector<256x64xf32>
    %160 = arith.addf %159, %158 : vector<256x64xf32>
    %161 = arith.mulf %155, %160 : vector<256x64xf32>
    %cst_105 = arith.constant dense<0.000000e+00> : vector<256x256xf32>
    %162 = tpu.matmul %161, %137, %cst_105 {dimension_numbers = #tpu.dot_dimension_numbers<[1], [0], [0], [1], [0, 0, 1, 1], [], []>} : vector<256x64xf32>, vector<64x256xf32>, vector<256x256xf32> -> vector<256x256xf32>
    %163 = vector.broadcast %139 : vector<1x256xf32> to vector<256x256xf32>
    %164 = arith.addf %162, %163 : vector<256x256xf32>
    %165 = vector.extract_strided_slice %164 {offsets = [0, 0], sizes = [256, 128], strides = [1, 1]} : vector<256x256xf32> to vector<256x128xf32>
    %166 = vector.extract_strided_slice %164 {offsets = [0, 128], sizes = [256, 128], strides = [1, 1]} : vector<256x256xf32> to vector<256x128xf32>
    %167 = math.exp %165 : vector<256x128xf32>
    %168 = arith.mulf %167, %85 : vector<256x128xf32>
    %169 = arith.addf %168, %166 : vector<256x128xf32>
    %c0_106 = arith.constant 0 : index
    %c0_107 = arith.constant 0 : index
    %170 = vector.load %arg8[%c0_106, %c0_107] : memref<256x256xf32, #tpu.memory_space<vmem>>, vector<256x128xf32>
    tpu.vector_store %arg8[%c0_106, %c0_107], %169 {strides = array<i32>} : memref<256x256xf32, #tpu.memory_space<vmem>>, vector<256x128xf32>,
    %c0_108 = arith.constant 0 : index
    %c128_109 = arith.constant 128 : index
    %171 = vector.load %arg8[%c0_108, %c128_109] : memref<256x256xf32, #tpu.memory_space<vmem>>, vector<256x128xf32>
    tpu.vector_store %arg8[%c0_108, %c128_109], %127 {strides = array<i32>} : memref<256x256xf32, #tpu.memory_space<vmem>>, vector<256x128xf32>,
    return
  }
  func.func @transform_0(%arg0: i32) -> (i32, i32) {
    %c0_i32 = arith.constant 0 : i32
    %c0_i32_0 = arith.constant 0 : i32
    return %arg0, %c0_i32 : i32, i32
  }
  func.func @transform_1(%arg0: i32) -> (i32, i32, i32) {
    %c0_i32 = arith.constant 0 : i32
    %c0_i32_0 = arith.constant 0 : i32
    %c0_i32_1 = arith.constant 0 : i32
    %c0_i32_2 = arith.constant 0 : i32
    return %c0_i32, %c0_i32_0, %c0_i32_1 : i32, i32, i32
  }
  func.func @transform_2(%arg0: i32) -> (i32, i32, i32) {
    %c0_i32 = arith.constant 0 : i32
    %c0_i32_0 = arith.constant 0 : i32
    %c0_i32_1 = arith.constant 0 : i32
    %c0_i32_2 = arith.constant 0 : i32
    return %c0_i32, %c0_i32_0, %c0_i32_1 : i32, i32, i32
  }
  func.func @transform_3(%arg0: i32) -> (i32, i32, i32) {
    %c0_i32 = arith.constant 0 : i32
    %c0_i32_0 = arith.constant 0 : i32
    %c0_i32_1 = arith.constant 0 : i32
    %c0_i32_2 = arith.constant 0 : i32
    return %c0_i32, %c0_i32_0, %c0_i32_1 : i32, i32, i32
  }
  func.func @transform_4(%arg0: i32) -> (i32, i32, i32) {
    %c0_i32 = arith.constant 0 : i32
    %c0_i32_0 = arith.constant 0 : i32
    %c0_i32_1 = arith.constant 0 : i32
    %c0_i32_2 = arith.constant 0 : i32
    return %c0_i32, %c0_i32_0, %c0_i32_1 : i32, i32, i32
  }
  func.func @transform_5(%arg0: i32) -> (i32, i32, i32) {
    %c0_i32 = arith.constant 0 : i32
    %c0_i32_0 = arith.constant 0 : i32
    %c0_i32_1 = arith.constant 0 : i32
    %c0_i32_2 = arith.constant 0 : i32
    return %c0_i32, %c0_i32_0, %c0_i32_1 : i32, i32, i32
  }
  func.func @transform_6(%arg0: i32) -> (i32, i32, i32) {
    %c0_i32 = arith.constant 0 : i32
    %c0_i32_0 = arith.constant 0 : i32
    %c0_i32_1 = arith.constant 0 : i32
    %c0_i32_2 = arith.constant 0 : i32
    return %c0_i32, %c0_i32_0, %c0_i32_1 : i32, i32, i32
  }
  func.func @transform_7(%arg0: i32) -> (i32, i32) {
    %c0_i32 = arith.constant 0 : i32
    %c0_i32_0 = arith.constant 0 : i32
    return %arg0, %c0_i32 : i32, i32
  }
}

</mosaic_0001>

<llo_original>
// kernel: tpu_custom_call.1
$region0: #{tpu_custom_call.1}
  #allocation0 [shape = 'u32[]', space=smem, size = 0x4, offset = 0x4, fixed_abs, tag = 'smem constant byte address 0x4 - core index']
  #allocation1 [shape = 'u32[144,128]{1,0:T(1,128)}', space=vmem, size = 0x12000, scoped, tag = 'internal scratch']
  %s0 = inlined_call_operand.hbm [shape: f32[1024,256], index: 0, kind: input, shape index: {}]
  %s1 = inlined_call_operand.vmem [shape: f32[4,128,64], index: 1, kind: input, shape index: {}]
  %s2 = inlined_call_operand.hbm [shape: f32[4,1,64], index: 2, kind: input, shape index: {}]
  %s3 = inlined_call_operand.vmem [shape: f32[4,64,64], index: 3, kind: input, shape index: {}]
  %s4 = inlined_call_operand.hbm [shape: f32[4,1,64], index: 4, kind: input, shape index: {}]
  %s5 = inlined_call_operand.vmem [shape: f32[4,64,256], index: 5, kind: input, shape index: {}]
  %s6 = inlined_call_operand.vmem [shape: f32[4,1,256], index: 6, kind: input, shape index: {}]
  %s7 = inlined_call_operand.hbm [shape: f32[1024,256], index: 7, kind: output, shape index: {}]
  %s8 = sld [smem:[#allocation0]]
  $region73: #{tpu_custom_call.1} parent=0
    _
  %s10 = ssub.s32 1, %s8
  %s11 = scalar_select 0, %s10, %s8
  $region1: #{tpu_custom_call.1} parent=0
    #allocation2 [shape = 'u8[524288]{0}', space=vmem, size = 0x80000, scoped, tag = 'input window, operand 0']
    #allocation3 [shape = 's32[2]{0}', space=sflag, size = 0x8, scoped, tag = 'scoped memory for tpu_custom_call.1']
    #allocation4 [shape = 's32[2]{0}', space=sflag, size = 0x8, scoped, tag = 'scoped memory for tpu_custom_call.1']
    #allocation5 [shape = 'u8[2048]{0}', space=vmem, size = 0x800, scoped, tag = 'input window, operand 2, single buffered']
    #allocation6 [shape = 's32[1]{0}', space=sflag, size = 0x4, scoped, tag = 'scoped memory for tpu_custom_call.1']
    #allocation7 [shape = 'u8[2048]{0}', space=vmem, size = 0x800, scoped, tag = 'input window, operand 4, single buffered']
    #allocation8 [shape = 'u8[524288]{0}', space=vmem, size = 0x80000, scoped, tag = 'output window, operand 0']
    %12 = vsyncpa [#allocation3], 0
    %s13 = scalar_lea.sflag [#allocation3], 1
    %14 = vsyncpa %s13, 0
    %15 = vsyncpa [#allocation6], 0
    %16 = vsyncpa [#allocation4], 0
    %s17 = scalar_lea.sflag [#allocation4], 1
    %18 = vsyncpa %s17, 0
    loop: start=0, step=1, limit=6
    $region2: #{tpu_custom_call.1} parent=1 // loop_pre_header
      _
    $region3: #{tpu_custom_call.1} parent=1 // loop_header
      %s20 = sphi 0, %s24
      %p21 = scmp.ge.s32.totalorder %s20, 6
      %s30 = sphi 0, %s32
      %s33 = sphi 0, %s30
      %s34 = sphi 0, %s33
      %s50 = sphi 0, %s34
      %s54 = sphi 0, %s54
      %s56 = sphi 0, %s54
      %s57 = sphi 0, %s56
      %s71 = sphi 0, %s57
      %s75 = sphi 0, %s75
      %s77 = sphi 0, %s75
      %s78 = sphi 0, %s77
      %s92 = sphi 0, %s78
      %s96 = sphi 0, %s96
      %s98 = sphi 0, %s96
      %s99 = sphi 0, %s98
      %s113 = sphi 0, %s99
      %s117 = sphi 0, %s117
      %s119 = sphi 0, %s117
      %s120 = sphi 0, %s119
      %s134 = sphi 0, %s120
      %s138 = sphi 0, %s138
      %s140 = sphi 0, %s138
      %s141 = sphi 0, %s140
      %s155 = sphi 0, %s141
      %s159 = sphi 0, %s159
      %s161 = sphi 0, %s159
      %s162 = sphi 0, %s161
      %s176 = sphi 0, %s162
      %s182 = sphi 0, %s184
      %s185 = sphi 0, %s182
      %s186 = sphi 0, %s185
      %s202 = sphi 0, %s186
    $region4: #{tpu_custom_call.1} parent=1 // loop_header_branch
      %23 = sbr.rel (%p21) target = $region8
    $region5: #{tpu_custom_call.1} parent=1 // loop_body
      %s25 = ssub.s32 %s20, 1
      %s26 = ssub.s32 %s20, 2
      %s27 = sadd.s32 %s20, 1
      %s28 = ssub.s32 %s20, %s27
      %p29 = scmp.eq.s32.totalorder %s28, 0
      %s31 = sadd.s32 %s30, 1
      %s32 = scalar_select %p29, %s30, %s31
      %p35 = pneg %p29
      %p36 = scmp.eq.s32.totalorder %s20, 3
      %p37 = por %p35, %p36
      %p38 = scmp.ne.s32.totalorder %s30, %s33
      %p39 = scmp.eq.s32.totalorder %s20, 0
      %p40 = por %p38, %p39
      %p41 = scmp.ne.s32.totalorder %s30, %s33
      %p42 = scmp.eq.s32.totalorder %s25, 3
      %p43 = por %p41, %p42
      %p44 = scmp.ne.s32.totalorder %s33, %s34
      %p45 = scmp.eq.s32.totalorder %s25, 0
      %p46 = por %p44, %p45
      %p47 = scmp.ne.s32.totalorder %s33, %s34
      %p48 = scmp.eq.s32.totalorder %s26, 3
      %p49 = por %p47, %p48
      %p51 = scmp.ne.s32.totalorder %s34, %s50
      %p52 = scmp.eq.s32.totalorder %s26, 0
      %p53 = por %p51, %p52
      %s55 = sadd.s32 %s54, 1
      %p58 = scmp.eq.s32.totalorder %s20, 3
      %p59 = scmp.ne.s32.totalorder %s54, %s56
      %p60 = scmp.eq.s32.totalorder %s20, 0
      %p61 = por %p59, %p60
      %p62 = scmp.ne.s32.totalorder %s54, %s56
      %p63 = scmp.eq.s32.totalorder %s25, 3
      %p64 = por %p62, %p63
      %p65 = scmp.ne.s32.totalorder %s56, %s57
      %p66 = scmp.eq.s32.totalorder %s25, 0
      %p67 = por %p65, %p66
      %p68 = scmp.ne.s32.totalorder %s56, %s57
      %p69 = scmp.eq.s32.totalorder %s26, 3
      %p70 = por %p68, %p69
      %p72 = scmp.ne.s32.totalorder %s57, %s71
      %p73 = scmp.eq.s32.totalorder %s26, 0
      %p74 = por %p72, %p73
      %s76 = sadd.s32 %s75, 1
      %p79 = scmp.eq.s32.totalorder %s20, 3
      %p80 = scmp.ne.s32.totalorder %s75, %s77
      %p81 = scmp.eq.s32.totalorder %s20, 0
      %p82 = por %p80, %p81
      %p83 = scmp.ne.s32.totalorder %s75, %s77
      %p84 = scmp.eq.s32.totalorder %s25, 3
      %p85 = por %p83, %p84
      %p86 = scmp.ne.s32.totalorder %s77, %s78
      %p87 = scmp.eq.s32.totalorder %s25, 0
      %p88 = por %p86, %p87
      %p89 = scmp.ne.s32.totalorder %s77, %s78
      %p90 = scmp.eq.s32.totalorder %s26, 3
      %p91 = por %p89, %p90
      %p93 = scmp.ne.s32.totalorder %s78, %s92
      %p94 = scmp.eq.s32.totalorder %s26, 0
      %p95 = por %p93, %p94
      %s97 = sadd.s32 %s96, 1
      %p100 = scmp.eq.s32.totalorder %s20, 3
      %p101 = scmp.ne.s32.totalorder %s96, %s98
      %p102 = scmp.eq.s32.totalorder %s20, 0
      %p103 = por %p101, %p102
      %p104 = scmp.ne.s32.totalorder %s96, %s98
      %p105 = scmp.eq.s32.totalorder %s25, 3
      %p106 = por %p104, %p105
      %p107 = scmp.ne.s32.totalorder %s98, %s99
      %p108 = scmp.eq.s32.totalorder %s25, 0
      %p109 = por %p107, %p108
      %p110 = scmp.ne.s32.totalorder %s98, %s99
      %p111 = scmp.eq.s32.totalorder %s26, 3
      %p112 = por %p110, %p111
      %p114 = scmp.ne.s32.totalorder %s99, %s113
      %p115 = scmp.eq.s32.totalorder %s26, 0
      %p116 = por %p114, %p115
      %s118 = sadd.s32 %s117, 1
      %p121 = scmp.eq.s32.totalorder %s20, 3
      %p122 = scmp.ne.s32.totalorder %s117, %s119
      %p123 = scmp.eq.s32.totalorder %s20, 0
      %p124 = por %p122, %p123
      %p125 = scmp.ne.s32.totalorder %s117, %s119
      %p126 = scmp.eq.s32.totalorder %s25, 3
      %p127 = por %p125, %p126
      %p128 = scmp.ne.s32.totalorder %s119, %s120
      %p129 = scmp.eq.s32.totalorder %s25, 0
      %p130 = por %p128, %p129
      %p131 = scmp.ne.s32.totalorder %s119, %s120
      %p132 = scmp.eq.s32.totalorder %s26, 3
      %p133 = por %p131, %p132
      %p135 = scmp.ne.s32.totalorder %s120, %s134
      %p136 = scmp.eq.s32.totalorder %s26, 0
      %p137 = por %p135, %p136
      %s139 = sadd.s32 %s138, 1
      %p142 = scmp.eq.s32.totalorder %s20, 3
      %p143 = scmp.ne.s32.totalorder %s138, %s140
      %p144 = scmp.eq.s32.totalorder %s20, 0
      %p145 = por %p143, %p144
      %p146 = scmp.ne.s32.totalorder %s138, %s140
      %p147 = scmp.eq.s32.totalorder %s25, 3
      %p148 = por %p146, %p147
      %p149 = scmp.ne.s32.totalorder %s140, %s141
      %p150 = scmp.eq.s32.totalorder %s25, 0
      %p151 = por %p149, %p150
      %p152 = scmp.ne.s32.totalorder %s140, %s141
      %p153 = scmp.eq.s32.totalorder %s26, 3
      %p154 = por %p152, %p153
      %p156 = scmp.ne.s32.totalorder %s141, %s155
      %p157 = scmp.eq.s32.totalorder %s26, 0
      %p158 = por %p156, %p157
      %s160 = sadd.s32 %s159, 1
      %p163 = scmp.eq.s32.totalorder %s20, 3
      %p164 = scmp.ne.s32.totalorder %s159, %s161
      %p165 = scmp.eq.s32.totalorder %s20, 0
      %p166 = por %p164, %p165
      %p167 = scmp.ne.s32.totalorder %s159, %s161
      %p168 = scmp.eq.s32.totalorder %s25, 3
      %p169 = por %p167, %p168
      %p170 = scmp.ne.s32.totalorder %s161, %s162
      %p171 = scmp.eq.s32.totalorder %s25, 0
      %p172 = por %p170, %p171
      %p173 = scmp.ne.s32.totalorder %s161, %s162
      %p174 = scmp.eq.s32.totalorder %s26, 3
      %p175 = por %p173, %p174
      %p177 = scmp.ne.s32.totalorder %s162, %s176
      %p178 = scmp.eq.s32.totalorder %s26, 0
      %p179 = por %p177, %p178
      %s180 = ssub.s32 %s20, %s27
      %p181 = scmp.eq.s32.totalorder %s180, 0
      %s183 = sadd.s32 %s182, 1
      %s184 = scalar_select %p181, %s182, %s183
      %p187 = pneg %p181
      %p188 = scmp.eq.s32.totalorder %s20, 3
      %p189 = por %p187, %p188
      %p190 = scmp.ne.s32.totalorder %s182, %s185
      %p191 = scmp.eq.s32.totalorder %s20, 0
      %p192 = por %p190, %p191
      %p193 = scmp.ne.s32.totalorder %s182, %s185
      %p194 = scmp.eq.s32.totalorder %s25, 3
      %p195 = por %p193, %p194
      %p196 = scmp.ne.s32.totalorder %s185, %s186
      %p197 = scmp.eq.s32.totalorder %s25, 0
      %p198 = por %p196, %p197
      %p199 = scmp.ne.s32.totalorder %s185, %s186
      %p200 = scmp.eq.s32.totalorder %s26, 3
      %p201 = por %p199, %p200
      %p203 = scmp.ne.s32.totalorder %s186, %s202
      %p204 = scmp.eq.s32.totalorder %s26, 0
      %p205 = por %p203, %p204
      %p206 = scmp.le.s32.totalorder 1, %s20
      %p207 = scmp.lt.s32.totalorder %s20, 5
      %p208 = pnand %p206, %p207
      %p209 = pneg %p208
      // Predicated region
      $region9: #{tpu_custom_call.1} parent=5 // pred_check
        _
      $region10: #{tpu_custom_call.1} parent=5 // pred_check_branch
        %211 = sbr.rel (%p208) target = $region12
      $region11: #{tpu_custom_call.1} parent=5 // pred_region
        %s212 = ssub.s32 %s20, 1
        // Predicated region
        $region13: #{tpu_custom_call.1} parent=11 // pred_check
          %p213 = pneg %p67
        $region14: #{tpu_custom_call.1} parent=11 // pred_check_branch
          %215 = sbr.rel (%p213) target = $region16
        $region15: #{tpu_custom_call.1} parent=11 // pred_region
          _
        $region16: #{tpu_custom_call.1} parent=11 // pred_fallthru
          _
        // Predicated region
        $region17: #{tpu_custom_call.1} parent=11 // pred_check
          %p216 = pneg %p88
        $region18: #{tpu_custom_call.1} parent=11 // pred_check_branch
          %218 = sbr.rel (%p216) target = $region20
        $region19: #{tpu_custom_call.1} parent=11 // pred_region
          %s220 = ssub.s32 64, 64
          %221 = vsyncadd [#allocation6], %s220
          %s222 = sshll.u32 [#allocation5], 4
          %s223 = int_to_ptr.vmem [resolvable:$true] %s222
          %228 = dma.hbm_to_vmem [thread:$0]  %s2, 64, %s223, [#allocation6], 16, 16, 1
        $region20: #{tpu_custom_call.1} parent=11 // pred_fallthru
          _
        // Predicated region
        $region21: #{tpu_custom_call.1} parent=11 // pred_check
          %p229 = pneg %p109
        $region22: #{tpu_custom_call.1} parent=11 // pred_check_branch
          %231 = sbr.rel (%p229) target = $region24
        $region23: #{tpu_custom_call.1} parent=11 // pred_region
          _
        $region24: #{tpu_custom_call.1} parent=11 // pred_fallthru
          _
        // Predicated region
        $region25: #{tpu_custom_call.1} parent=11 // pred_check
          %p232 = pneg %p130
        $region26: #{tpu_custom_call.1} parent=11 // pred_check_branch
          %234 = sbr.rel (%p232) target = $region28
        $region27: #{tpu_custom_call.1} parent=11 // pred_region
          %s236 = ssub.s32 64, 64
          %237 = vsyncadd [#allocation6], %s236
          %s238 = sshll.u32 [#allocation7], 4
          %s239 = int_to_ptr.vmem [resolvable:$true] %s238
          %244 = dma.hbm_to_vmem [thread:$0]  %s4, 64, %s239, [#allocation6], 16, 16, 1
        $region28: #{tpu_custom_call.1} parent=11 // pred_fallthru
          _
        // Predicated region
        $region29: #{tpu_custom_call.1} parent=11 // pred_check
          %p245 = pneg %p151
        $region30: #{tpu_custom_call.1} parent=11 // pred_check_branch
          %247 = sbr.rel (%p245) target = $region32
        $region31: #{tpu_custom_call.1} parent=11 // pred_region
          _
        $region32: #{tpu_custom_call.1} parent=11 // pred_fallthru
          _
        // Predicated region
        $region33: #{tpu_custom_call.1} parent=11 // pred_check
          %p248 = pneg %p172
        $region34: #{tpu_custom_call.1} parent=11 // pred_check_branch
          %250 = sbr.rel (%p248) target = $region36
        $region35: #{tpu_custom_call.1} parent=11 // pred_region
          _
        $region36: #{tpu_custom_call.1} parent=11 // pred_fallthru
          _
      $region12: #{tpu_custom_call.1} parent=5 // pred_fallthru
        _
      %p251 = scmp.lt.s32.totalorder %s20, 4
      // Predicated region
      $region37: #{tpu_custom_call.1} parent=5 // pred_check
        %p252 = pneg %p251
      $region38: #{tpu_custom_call.1} parent=5 // pred_check_branch
        %254 = sbr.rel (%p252) target = $region40
      $region39: #{tpu_custom_call.1} parent=5 // pred_region
        // Predicated region
        $region41: #{tpu_custom_call.1} parent=39 // pred_check
          %p255 = pneg %p40
        $region42: #{tpu_custom_call.1} parent=39 // pred_check_branch
          %257 = sbr.rel (%p255) target = $region44
        $region43: #{tpu_custom_call.1} parent=39 // pred_region
          %s258 = sand.u32 %s30, 1
          %s259 = scalar_lea.sflag [#allocation3], %s258
          %s260 = sand.u32 %s30, 1
          %s261 = smul.addr %s260, 512
          %s262 = scalar_lea.vmem [#allocation2], %s261
          %s263 = smul.u32 32, %s20
          %s265 = ssub.s32 8192, 8192
          %266 = vsyncadd %s259, %s265
          %s267 = smul.addr %s263, 2
          %s268 = smul.addr %s267, 128
          %s269 = scalar_lea.hbm %s0, %s268
          %s270 = sshll.u32 %s262, 4
          %s271 = int_to_ptr.vmem [resolvable:$true] %s270
          %276 = dma.hbm_to_vmem [thread:$0]  %s269, 8192, %s271, %s259, 256, 256, 16
        $region44: #{tpu_custom_call.1} parent=39 // pred_fallthru
          _
      $region40: #{tpu_custom_call.1} parent=5 // pred_fallthru
        _
      %p277 = scmp.le.s32.totalorder 1, %s20
      %p278 = scmp.lt.s32.totalorder %s20, 5
      %p279 = pnand %p277, %p278
      %p280 = pneg %p279
      // Predicated region
      $region45: #{tpu_custom_call.1} parent=5 // pred_check
        _
      $region46: #{tpu_custom_call.1} parent=5 // pred_check_branch
        %282 = sbr.rel (%p279) target = $region48
      $region47: #{tpu_custom_call.1} parent=5 // pred_region
        %s283 = ssub.s32 %s20, 1
        %s284 = sand.u32 %s33, 1
        %s285 = scalar_lea.sflag [#allocation3], %s284
        %s286 = sand.u32 %s33, 1
        %s287 = smul.addr %s286, 512
        %s288 = scalar_lea.vmem [#allocation2], %s287
        // Predicated region
        $region49: #{tpu_custom_call.1} parent=47 // pred_check
          %p289 = pneg %p46
        $region50: #{tpu_custom_call.1} parent=47 // pred_check_branch
          %291 = sbr.rel (%p289) target = $region52
        $region51: #{tpu_custom_call.1} parent=47 // pred_region
          %292 = dma.done %s285, 8192
        $region52: #{tpu_custom_call.1} parent=47 // pred_fallthru
          _
        // Predicated region
        $region53: #{tpu_custom_call.1} parent=47 // pred_check
          %p293 = pneg %p88
        $region54: #{tpu_custom_call.1} parent=47 // pred_check_branch
          %295 = sbr.rel (%p293) target = $region56
        $region55: #{tpu_custom_call.1} parent=47 // pred_region
          %296 = dma.done [#allocation6], 64
        $region56: #{tpu_custom_call.1} parent=47 // pred_fallthru
          _
        // Predicated region
        $region57: #{tpu_custom_call.1} parent=47 // pred_check
          %p297 = pneg %p130
        $region58: #{tpu_custom_call.1} parent=47 // pred_check_branch
          %299 = sbr.rel (%p297) target = $region60
        $region59: #{tpu_custom_call.1} parent=47 // pred_region
          %300 = dma.done [#allocation6], 64
        $region60: #{tpu_custom_call.1} parent=47 // pred_fallthru
          _
        %s301 = sand.u32 %s33, 1
        %s302 = scalar_lea.sflag [#allocation3], %s301
        %s303 = sand.u32 %s33, 1
        %s304 = smul.addr %s303, 512
        %s305 = scalar_lea.vmem [#allocation2], %s304
        %p306 = pneg %p46
        %p307 = pneg %p43
        %p308 = pneg %p67
        %p309 = pneg %p64
        %p310 = pneg %p88
        %p311 = pneg %p85
        %p312 = pneg %p109
        %p313 = pneg %p106
        %p314 = pneg %p130
        %p315 = pneg %p127
        %p316 = pneg %p151
        %p317 = pneg %p148
        %p318 = pneg %p172
        %p319 = pneg %p169
        %p320 = pneg %p198
        %p321 = pneg %p195
        %s322 = sand.u32 %s185, 1
        %s323 = scalar_lea.sflag [#allocation4], %s322
        %s324 = sand.u32 %s185, 1
        %s325 = smul.addr %s324, 512
        %s326 = scalar_lea.vmem [#allocation8], %s325
        %s327 = smul.u32 32, %s25
        %s328 = smul.u32 32, %s25
        %v329 = vld [vmem:[%s288] sm:$0xff]
        %v330 = vld [vmem:[%s288 + $0x10] sm:$0xff]
        %v331 = vld [vmem:[%s288 + $0x20] sm:$0xff]
        %v332 = vld [vmem:[%s288 + $0x30] sm:$0xff]
        %v333 = vld [vmem:[%s288 + $0x40] sm:$0xff]
        %v334 = vld [vmem:[%s288 + $0x50] sm:$0xff]
        %v335 = vld [vmem:[%s288 + $0x60] sm:$0xff]
        %v336 = vld [vmem:[%s288 + $0x70] sm:$0xff]
        %v337 = vld [vmem:[%s288 + $0x80] sm:$0xff]
        %v338 = vld [vmem:[%s288 + $0x90] sm:$0xff]
        %v339 = vld [vmem:[%s288 + $0xa0] sm:$0xff]
        %v340 = vld [vmem:[%s288 + $0xb0] sm:$0xff]
        %v341 = vld [vmem:[%s288 + $0xc0] sm:$0xff]
        %v342 = vld [vmem:[%s288 + $0xd0] sm:$0xff]
        %v343 = vld [vmem:[%s288 + $0xe0] sm:$0xff]
        %v344 = vld [vmem:[%s288 + $0xf0] sm:$0xff]
        %v345 = vld [vmem:[%s288 + $0x100] sm:$0xff]
        %v346 = vld [vmem:[%s288 + $0x110] sm:$0xff]
        %v347 = vld [vmem:[%s288 + $0x120] sm:$0xff]
        %v348 = vld [vmem:[%s288 + $0x130] sm:$0xff]
        %v349 = vld [vmem:[%s288 + $0x140] sm:$0xff]
        %v350 = vld [vmem:[%s288 + $0x150] sm:$0xff]
        %v351 = vld [vmem:[%s288 + $0x160] sm:$0xff]
        %v352 = vld [vmem:[%s288 + $0x170] sm:$0xff]
        %v353 = vld [vmem:[%s288 + $0x180] sm:$0xff]
        %v354 = vld [vmem:[%s288 + $0x190] sm:$0xff]
        %v355 = vld [vmem:[%s288 + $0x1a0] sm:$0xff]
        %v356 = vld [vmem:[%s288 + $0x1b0] sm:$0xff]
        %v357 = vld [vmem:[%s288 + $0x1c0] sm:$0xff]
        %v358 = vld [vmem:[%s288 + $0x1d0] sm:$0xff]
        %v359 = vld [vmem:[%s288 + $0x1e0] sm:$0xff]
        %v360 = vld [vmem:[%s288 + $0x1f0] sm:$0xff]
        %v361 = vld [vmem:[%s288 + $0x8] sm:$0xff]
        %v362 = vld [vmem:[%s288 + $0x18] sm:$0xff]
        %v363 = vld [vmem:[%s288 + $0x28] sm:$0xff]
        %v364 = vld [vmem:[%s288 + $0x38] sm:$0xff]
        %v365 = vld [vmem:[%s288 + $0x48] sm:$0xff]
        %v366 = vld [vmem:[%s288 + $0x58] sm:$0xff]
        %v367 = vld [vmem:[%s288 + $0x68] sm:$0xff]
        %v368 = vld [vmem:[%s288 + $0x78] sm:$0xff]
        %v369 = vld [vmem:[%s288 + $0x88] sm:$0xff]
        %v370 = vld [vmem:[%s288 + $0x98] sm:$0xff]
        %v371 = vld [vmem:[%s288 + $0xa8] sm:$0xff]
        %v372 = vld [vmem:[%s288 + $0xb8] sm:$0xff]
        %v373 = vld [vmem:[%s288 + $0xc8] sm:$0xff]
        %v374 = vld [vmem:[%s288 + $0xd8] sm:$0xff]
        %v375 = vld [vmem:[%s288 + $0xe8] sm:$0xff]
        %v376 = vld [vmem:[%s288 + $0xf8] sm:$0xff]
        %v377 = vld [vmem:[%s288 + $0x108] sm:$0xff]
        %v378 = vld [vmem:[%s288 + $0x118] sm:$0xff]
        %v379 = vld [vmem:[%s288 + $0x128] sm:$0xff]
        %v380 = vld [vmem:[%s288 + $0x138] sm:$0xff]
        %v381 = vld [vmem:[%s288 + $0x148] sm:$0xff]
        %v382 = vld [vmem:[%s288 + $0x158] sm:$0xff]
        %v383 = vld [vmem:[%s288 + $0x168] sm:$0xff]
        %v384 = vld [vmem:[%s288 + $0x178] sm:$0xff]
        %v385 = vld [vmem:[%s288 + $0x188] sm:$0xff]
        %v386 = vld [vmem:[%s288 + $0x198] sm:$0xff]
        %v387 = vld [vmem:[%s288 + $0x1a8] sm:$0xff]
        %v388 = vld [vmem:[%s288 + $0x1b8] sm:$0xff]
        %v389 = vld [vmem:[%s288 + $0x1c8] sm:$0xff]
        %v390 = vld [vmem:[%s288 + $0x1d8] sm:$0xff]
        %v391 = vld [vmem:[%s288 + $0x1e8] sm:$0xff]
        %v392 = vld [vmem:[%s288 + $0x1f8] sm:$0xff]
        %v393 = vld [vmem:[%s1] sm:$0xff]
        %v394 = vld [vmem:[%s1 + $0x8] sm:$0xff]
        %v395 = vld [vmem:[%s1 + $0x10] sm:$0xff]
        %v396 = vld [vmem:[%s1 + $0x18] sm:$0xff]
        %v397 = vld [vmem:[%s1 + $0x20] sm:$0xff]
        %v398 = vld [vmem:[%s1 + $0x28] sm:$0xff]
        %v399 = vld [vmem:[%s1 + $0x30] sm:$0xff]
        %v400 = vld [vmem:[%s1 + $0x38] sm:$0xff]
        %v401 = vld [vmem:[%s1 + $0x40] sm:$0xff]
        %v402 = vld [vmem:[%s1 + $0x48] sm:$0xff]
        %v403 = vld [vmem:[%s1 + $0x50] sm:$0xff]
        %v404 = vld [vmem:[%s1 + $0x58] sm:$0xff]
        %v405 = vld [vmem:[%s1 + $0x60] sm:$0xff]
        %v406 = vld [vmem:[%s1 + $0x68] sm:$0xff]
        %v407 = vld [vmem:[%s1 + $0x70] sm:$0xff]
        %v408 = vld [vmem:[%s1 + $0x78] sm:$0xff]
        %v409 = vld [vmem:[#allocation5] sm:$0x1]
        %v410 = vld [vmem:[%s3] sm:$0xff]
        %v411 = vld [vmem:[%s3 + $0x8] sm:$0xff]
        %v412 = vld [vmem:[%s3 + $0x10] sm:$0xff]
        %v413 = vld [vmem:[%s3 + $0x18] sm:$0xff]
        %v414 = vld [vmem:[%s3 + $0x20] sm:$0xff]
        %v415 = vld [vmem:[%s3 + $0x28] sm:$0xff]
        %v416 = vld [vmem:[%s3 + $0x30] sm:$0xff]
        %v417 = vld [vmem:[%s3 + $0x38] sm:$0xff]
        %v418 = vld [vmem:[#allocation7] sm:$0x1]
        %v419 = vld [vmem:[%s5] sm:$0xff]
        %v420 = vld [vmem:[%s5 + $0x8] sm:$0xff]
        %v421 = vld [vmem:[%s5 + $0x10] sm:$0xff]
        %v422 = vld [vmem:[%s5 + $0x18] sm:$0xff]
        %v423 = vld [vmem:[%s5 + $0x20] sm:$0xff]
        %v424 = vld [vmem:[%s5 + $0x28] sm:$0xff]
        %v425 = vld [vmem:[%s5 + $0x30] sm:$0xff]
        %v426 = vld [vmem:[%s5 + $0x38] sm:$0xff]
        %v427 = vld [vmem:[%s5 + $0x40] sm:$0xff]
        %v428 = vld [vmem:[%s5 + $0x48] sm:$0xff]
        %v429 = vld [vmem:[%s5 + $0x50] sm:$0xff]
        %v430 = vld [vmem:[%s5 + $0x58] sm:$0xff]
        %v431 = vld [vmem:[%s5 + $0x60] sm:$0xff]
        %v432 = vld [vmem:[%s5 + $0x68] sm:$0xff]
        %v433 = vld [vmem:[%s5 + $0x70] sm:$0xff]
        %v434 = vld [vmem:[%s5 + $0x78] sm:$0xff]
        %v435 = vld [vmem:[%s6] sm:$0x3]
        %v437 = vlaneseq
        %v438 = vshrl.u32 %v437, 7
        %v439 = vsub.s32 0, %v438
        %v440 = vrot.slane %v409, %v439
        %442 = vmatprep.subr.mxu0 0.0
        %443 = vmatpush1.msra.mxu0 %v408
        %444 = vmatprep.subr.mxu0 0.0
        %445 = vmatpush1.msra.mxu0 %v407
        %446 = vmatprep.subr.mxu0 0.0
        %447 = vmatpush1.msra.mxu0 %v406
        %448 = vmatprep.subr.mxu0 0.0
        %449 = vmatpush1.msra.mxu0 %v405
        %450 = vmatprep.subr.mxu0 0.0
        %451 = vmatpush1.msra.mxu0 %v404
        %452 = vmatprep.subr.mxu0 0.0
        %453 = vmatpush1.msra.mxu0 %v403
        %454 = vmatprep.subr.mxu0 0.0
        %455 = vmatpush1.msra.mxu0 %v402
        %456 = vmatprep.subr.mxu0 0.0
        %457 = vmatpush1.msra.mxu0 %v401
        %458 = vmatprep.subr.mxu0 0.0
        %459 = vmatpush1.msra.mxu0 %v400
        %460 = vmatprep.subr.mxu0 0.0
        %461 = vmatpush1.msra.mxu0 %v399
        %462 = vmatprep.subr.mxu0 0.0
        %463 = vmatpush1.msra.mxu0 %v398
        %464 = vmatprep.subr.mxu0 0.0
        %465 = vmatpush1.msra.mxu0 %v397
        %466 = vmatprep.subr.mxu0 0.0
        %467 = vmatpush1.msra.mxu0 %v396
        %468 = vmatprep.subr.mxu0 0.0
        %469 = vmatpush1.msra.mxu0 %v395
        %470 = vmatprep.subr.mxu0 0.0
        %471 = vmatpush1.msra.mxu0 %v394
        %472 = vmatprep.subr.mxu0 0.0
        %473 = vmatpush1.msra.mxu0 %v393
        %474 = vmatprep.subr.mxu0 0.0
        %475 = vmatpush2.msra.mxu0 0.0
        %476 = vmatprep.subr.mxu0 0.0
        %477 = vmatpush2.msra.mxu0 0.0
        %478 = vmatprep.subr.mxu0 0.0
        %479 = vmatpush2.msra.mxu0 0.0
        %480 = vmatprep.subr.mxu0 0.0
        %481 = vmatpush2.msra.mxu0 0.0
        %482 = vmatprep.subr.mxu0 0.0
        %483 = vmatpush2.msra.mxu0 0.0
        %484 = vmatprep.subr.mxu0 0.0
        %485 = vmatpush2.msra.mxu0 0.0
        %486 = vmatprep.subr.mxu0 0.0
        %487 = vmatpush2.msra.mxu0 0.0
        %488 = vmatprep.subr.mxu0 0.0
        %489 = vmatpush2.msra.mxu0 0.0
        %490 = vmatprep.subr.mxu0 0.0
        %491 = vmatpush2.msra.mxu0 0.0
        %492 = vmatprep.subr.mxu0 0.0
        %493 = vmatpush2.msra.mxu0 0.0
        %494 = vmatprep.subr.mxu0 0.0
        %495 = vmatpush2.msra.mxu0 0.0
        %496 = vmatprep.subr.mxu0 0.0
        %497 = vmatpush2.msra.mxu0 0.0
        %498 = vmatprep.subr.mxu0 0.0
        %499 = vmatpush2.msra.mxu0 0.0
        %500 = vmatprep.subr.mxu0 0.0
        %501 = vmatpush2.msra.mxu0 0.0
        %502 = vmatprep.subr.mxu0 0.0
        %503 = vmatpush2.msra.mxu0 0.0
        %504 = vmatprep.subr.mxu0 0.0
        %505 = vmatpush2.msra.mxu0 0.0
        %506 = vmatprep.mubr.f32.mxu0 0.0
        %507 = vmatmul.mubr.f32.gmra.mxu0 %v329
        %v508 = vpop.f32.mrf.mxu0
        %v509 = vadd.f32 %v440, %v508
        %v510 = vpop.f32.mrf.mxu0
        %511 = vmatprep.mubr.f32.mxu0 0.0
        %512 = vmatmul.mubr.f32.gmra.mxu0 %v330
        %v513 = vpop.f32.mrf.mxu0
        %v514 = vadd.f32 %v440, %v513
        %v515 = vpop.f32.mrf.mxu0
        %516 = vmatprep.mubr.f32.mxu0 0.0
        %517 = vmatmul.mubr.f32.gmra.mxu0 %v331
        %v518 = vpop.f32.mrf.mxu0
        %v519 = vadd.f32 %v440, %v518
        %v520 = vpop.f32.mrf.mxu0
        %521 = vmatprep.mubr.f32.mxu0 0.0
        %522 = vmatmul.mubr.f32.gmra.mxu0 %v332
        %v523 = vpop.f32.mrf.mxu0
        %v524 = vadd.f32 %v440, %v523
        %v525 = vpop.f32.mrf.mxu0
        %526 = vmatprep.mubr.f32.mxu0 0.0
        %527 = vmatmul.mubr.f32.gmra.mxu0 %v333
        %v528 = vpop.f32.mrf.mxu0
        %v529 = vadd.f32 %v440, %v528
        %v530 = vpop.f32.mrf.mxu0
        %531 = vmatprep.mubr.f32.mxu0 0.0
        %532 = vmatmul.mubr.f32.gmra.mxu0 %v334
        %v533 = vpop.f32.mrf.mxu0
        %v534 = vadd.f32 %v440, %v533
        %v535 = vpop.f32.mrf.mxu0
        %536 = vmatprep.mubr.f32.mxu0 0.0
        %537 = vmatmul.mubr.f32.gmra.mxu0 %v335
        %v538 = vpop.f32.mrf.mxu0
        %v539 = vadd.f32 %v440, %v538
        %v540 = vpop.f32.mrf.mxu0
        %541 = vmatprep.mubr.f32.mxu0 0.0
        %542 = vmatmul.mubr.f32.gmra.mxu0 %v336
        %v543 = vpop.f32.mrf.mxu0
        %v544 = vadd.f32 %v440, %v543
        %v545 = vpop.f32.mrf.mxu0
        %546 = vmatprep.mubr.f32.mxu0 0.0
        %547 = vmatmul.mubr.f32.gmra.mxu0 %v337
        %v548 = vpop.f32.mrf.mxu0
        %v549 = vadd.f32 %v440, %v548
        %v550 = vpop.f32.mrf.mxu0
        %551 = vmatprep.mubr.f32.mxu0 0.0
        %552 = vmatmul.mubr.f32.gmra.mxu0 %v338
        %v553 = vpop.f32.mrf.mxu0
        %v554 = vadd.f32 %v440, %v553
        %v555 = vpop.f32.mrf.mxu0
        %556 = vmatprep.mubr.f32.mxu0 0.0
        %557 = vmatmul.mubr.f32.gmra.mxu0 %v339
        %v558 = vpop.f32.mrf.mxu0
        %v559 = vadd.f32 %v440, %v558
        %v560 = vpop.f32.mrf.mxu0
        %561 = vmatprep.mubr.f32.mxu0 0.0
        %562 = vmatmul.mubr.f32.gmra.mxu0 %v340
        %v563 = vpop.f32.mrf.mxu0
        %v564 = vadd.f32 %v440, %v563
        %v565 = vpop.f32.mrf.mxu0
        %566 = vmatprep.mubr.f32.mxu0 0.0
        %567 = vmatmul.mubr.f32.gmra.mxu0 %v341
        %v568 = vpop.f32.mrf.mxu0
        %v569 = vadd.f32 %v440, %v568
        %v570 = vpop.f32.mrf.mxu0
        %571 = vmatprep.mubr.f32.mxu0 0.0
        %572 = vmatmul.mubr.f32.gmra.mxu0 %v342
        %v573 = vpop.f32.mrf.mxu0
        %v574 = vadd.f32 %v440, %v573
        %v575 = vpop.f32.mrf.mxu0
        %576 = vmatprep.mubr.f32.mxu0 0.0
        %577 = vmatmul.mubr.f32.gmra.mxu0 %v343
        %v578 = vpop.f32.mrf.mxu0
        %v579 = vadd.f32 %v440, %v578
        %v580 = vpop.f32.mrf.mxu0
        %581 = vmatprep.mubr.f32.mxu0 0.0
        %582 = vmatmul.mubr.f32.gmra.mxu0 %v344
        %v583 = vpop.f32.mrf.mxu0
        %v584 = vadd.f32 %v440, %v583
        %v585 = vpop.f32.mrf.mxu0
        %586 = vmatprep.mubr.f32.mxu0 0.0
        %587 = vmatmul.mubr.f32.gmra.mxu0 %v345
        %v588 = vpop.f32.mrf.mxu0
        %v589 = vadd.f32 %v440, %v588
        %v590 = vpop.f32.mrf.mxu0
        %591 = vmatprep.mubr.f32.mxu0 0.0
        %592 = vmatmul.mubr.f32.gmra.mxu0 %v346
        %v593 = vpop.f32.mrf.mxu0
        %v594 = vadd.f32 %v440, %v593
        %v595 = vpop.f32.mrf.mxu0
        %596 = vmatprep.mubr.f32.mxu0 0.0
        %597 = vmatmul.mubr.f32.gmra.mxu0 %v347
        %v598 = vpop.f32.mrf.mxu0
        %v599 = vadd.f32 %v440, %v598
        %v600 = vpop.f32.mrf.mxu0
        %601 = vmatprep.mubr.f32.mxu0 0.0
        %602 = vmatmul.mubr.f32.gmra.mxu0 %v348
        %v603 = vpop.f32.mrf.mxu0
        %v604 = vadd.f32 %v440, %v603
        %v605 = vpop.f32.mrf.mxu0
        %606 = vmatprep.mubr.f32.mxu0 0.0
        %607 = vmatmul.mubr.f32.gmra.mxu0 %v349
        %v608 = vpop.f32.mrf.mxu0
        %v609 = vadd.f32 %v440, %v608
        %v610 = vpop.f32.mrf.mxu0
        %611 = vmatprep.mubr.f32.mxu0 0.0
        %612 = vmatmul.mubr.f32.gmra.mxu0 %v350
        %v613 = vpop.f32.mrf.mxu0
        %v614 = vadd.f32 %v440, %v613
        %v615 = vpop.f32.mrf.mxu0
        %616 = vmatprep.mubr.f32.mxu0 0.0
        %617 = vmatmul.mubr.f32.gmra.mxu0 %v351
        %v618 = vpop.f32.mrf.mxu0
        %v619 = vadd.f32 %v440, %v618
        %v620 = vpop.f32.mrf.mxu0
        %621 = vmatprep.mubr.f32.mxu0 0.0
        %622 = vmatmul.mubr.f32.gmra.mxu0 %v352
        %v623 = vpop.f32.mrf.mxu0
        %v624 = vadd.f32 %v440, %v623
        %v625 = vpop.f32.mrf.mxu0
        %626 = vmatprep.mubr.f32.mxu0 0.0
        %627 = vmatmul.mubr.f32.gmra.mxu0 %v353
        %v628 = vpop.f32.mrf.mxu0
        %v629 = vadd.f32 %v440, %v628
        %v630 = vpop.f32.mrf.mxu0
        %631 = vmatprep.mubr.f32.mxu0 0.0
        %632 = vmatmul.mubr.f32.gmra.mxu0 %v354
        %v633 = vpop.f32.mrf.mxu0
        %v634 = vadd.f32 %v440, %v633
        %v635 = vpop.f32.mrf.mxu0
        %636 = vmatprep.mubr.f32.mxu0 0.0
        %637 = vmatmul.mubr.f32.gmra.mxu0 %v355
        %v638 = vpop.f32.mrf.mxu0
        %v639 = vadd.f32 %v440, %v638
        %v640 = vpop.f32.mrf.mxu0
        %641 = vmatprep.mubr.f32.mxu0 0.0
        %642 = vmatmul.mubr.f32.gmra.mxu0 %v356
        %v643 = vpop.f32.mrf.mxu0
        %v644 = vadd.f32 %v440, %v643
        %v645 = vpop.f32.mrf.mxu0
        %646 = vmatprep.mubr.f32.mxu0 0.0
        %647 = vmatmul.mubr.f32.gmra.mxu0 %v357
        %v648 = vpop.f32.mrf.mxu0
        %v649 = vadd.f32 %v440, %v648
        %v650 = vpop.f32.mrf.mxu0
        %651 = vmatprep.mubr.f32.mxu0 0.0
        %652 = vmatmul.mubr.f32.gmra.mxu0 %v358
        %v653 = vpop.f32.mrf.mxu0
        %v654 = vadd.f32 %v440, %v653
        %v655 = vpop.f32.mrf.mxu0
        %656 = vmatprep.mubr.f32.mxu0 0.0
        %657 = vmatmul.mubr.f32.gmra.mxu0 %v359
        %v658 = vpop.f32.mrf.mxu0
        %v659 = vadd.f32 %v440, %v658
        %v660 = vpop.f32.mrf.mxu0
        %661 = vmatprep.mubr.f32.mxu0 0.0
        %662 = vmatmul.mubr.f32.gmra.mxu0 %v360
        %v663 = vpop.f32.mrf.mxu0
        %v664 = vadd.f32 %v440, %v663
        %v665 = vpop.f32.mrf.mxu0
        %666 = vdwg.mxu0
        %v667 = vmul.f32 %v509, 0.5
        %v668 = vmul.f32 %v514, 0.5
        %v669 = vmul.f32 %v519, 0.5
        %v670 = vmul.f32 %v524, 0.5
        %v671 = vmul.f32 %v529, 0.5
        %v672 = vmul.f32 %v534, 0.5
        %v673 = vmul.f32 %v539, 0.5
        %v674 = vmul.f32 %v544, 0.5
        %v675 = vmul.f32 %v549, 0.5
        %v676 = vmul.f32 %v554, 0.5
        %v677 = vmul.f32 %v559, 0.5
        %v678 = vmul.f32 %v564, 0.5
        %v679 = vmul.f32 %v569, 0.5
        %v680 = vmul.f32 %v574, 0.5
        %v681 = vmul.f32 %v579, 0.5
        %v682 = vmul.f32 %v584, 0.5
        %v683 = vmul.f32 %v589, 0.5
        %v684 = vmul.f32 %v594, 0.5
        %v685 = vmul.f32 %v599, 0.5
        %v686 = vmul.f32 %v604, 0.5
        %v687 = vmul.f32 %v609, 0.5
        %v688 = vmul.f32 %v614, 0.5
        %v689 = vmul.f32 %v619, 0.5
        %v690 = vmul.f32 %v624, 0.5
        %v691 = vmul.f32 %v629, 0.5
        %v692 = vmul.f32 %v634, 0.5
        %v693 = vmul.f32 %v639, 0.5
        %v694 = vmul.f32 %v644, 0.5
        %v695 = vmul.f32 %v649, 0.5
        %v696 = vmul.f32 %v654, 0.5
        %v697 = vmul.f32 %v659, 0.5
        %v698 = vmul.f32 %v664, 0.5
        %v699 = vmul.f32 %v509, 0.70710677
        %v700 = vmul.f32 %v514, 0.70710677
        %v701 = vmul.f32 %v519, 0.70710677
        %v702 = vmul.f32 %v524, 0.70710677
        %v703 = vmul.f32 %v529, 0.70710677
        %v704 = vmul.f32 %v534, 0.70710677
        %v705 = vmul.f32 %v539, 0.70710677
        %v706 = vmul.f32 %v544, 0.70710677
        %v707 = vmul.f32 %v549, 0.70710677
        %v708 = vmul.f32 %v554, 0.70710677
        %v709 = vmul.f32 %v559, 0.70710677
        %v710 = vmul.f32 %v564, 0.70710677
        %v711 = vmul.f32 %v569, 0.70710677
        %v712 = vmul.f32 %v574, 0.70710677
        %v713 = vmul.f32 %v579, 0.70710677
        %v714 = vmul.f32 %v584, 0.70710677
        %v715 = vmul.f32 %v589, 0.70710677
        %v716 = vmul.f32 %v594, 0.70710677
        %v717 = vmul.f32 %v599, 0.70710677
        %v718 = vmul.f32 %v604, 0.70710677
        %v719 = vmul.f32 %v609, 0.70710677
        %v720 = vmul.f32 %v614, 0.70710677
        %v721 = vmul.f32 %v619, 0.70710677
        %v722 = vmul.f32 %v624, 0.70710677
        %v723 = vmul.f32 %v629, 0.70710677
        %v724 = vmul.f32 %v634, 0.70710677
        %v725 = vmul.f32 %v639, 0.70710677
        %v726 = vmul.f32 %v644, 0.70710677
        %v727 = vmul.f32 %v649, 0.70710677
        %v728 = vmul.f32 %v654, 0.70710677
        %v729 = vmul.f32 %v659, 0.70710677
        %v730 = vmul.f32 %v664, 0.70710677
        %v731 = verf.f32.pop %v699
        %v732 = verf.f32.pop %v700
        %v733 = verf.f32.pop %v701
        %v734 = verf.f32.pop %v702
        %v735 = verf.f32.pop %v703
        %v736 = verf.f32.pop %v704
        %v737 = verf.f32.pop %v705
        %v738 = verf.f32.pop %v706
        %v739 = verf.f32.pop %v707
        %v740 = verf.f32.pop %v708
        %v741 = verf.f32.pop %v709
        %v742 = verf.f32.pop %v710
        %v743 = verf.f32.pop %v711
        %v744 = verf.f32.pop %v712
        %v745 = verf.f32.pop %v713
        %v746 = verf.f32.pop %v714
        %v747 = verf.f32.pop %v715
        %v748 = verf.f32.pop %v716
        %v749 = verf.f32.pop %v717
        %v750 = verf.f32.pop %v718
        %v751 = verf.f32.pop %v719
        %v752 = verf.f32.pop %v720
        %v753 = verf.f32.pop %v721
        %v754 = verf.f32.pop %v722
        %v755 = verf.f32.pop %v723
        %v756 = verf.f32.pop %v724
        %v757 = verf.f32.pop %v725
        %v758 = verf.f32.pop %v726
        %v759 = verf.f32.pop %v727
        %v760 = verf.f32.pop %v728
        %v761 = verf.f32.pop %v729
        %v762 = verf.f32.pop %v730
        %v763 = vadd.f32 %v731, 1.0
        %v764 = vadd.f32 %v732, 1.0
        %v765 = vadd.f32 %v733, 1.0
        %v766 = vadd.f32 %v734, 1.0
        %v767 = vadd.f32 %v735, 1.0
        %v768 = vadd.f32 %v736, 1.0
        %v769 = vadd.f32 %v737, 1.0
        %v770 = vadd.f32 %v738, 1.0
        %v771 = vadd.f32 %v739, 1.0
        %v772 = vadd.f32 %v740, 1.0
        %v773 = vadd.f32 %v741, 1.0
        %v774 = vadd.f32 %v742, 1.0
        %v775 = vadd.f32 %v743, 1.0
        %v776 = vadd.f32 %v744, 1.0
        %v777 = vadd.f32 %v745, 1.0
        %v778 = vadd.f32 %v746, 1.0
        %v779 = vadd.f32 %v747, 1.0
        %v780 = vadd.f32 %v748, 1.0
        %v781 = vadd.f32 %v749, 1.0
        %v782 = vadd.f32 %v750, 1.0
        %v783 = vadd.f32 %v751, 1.0
        %v784 = vadd.f32 %v752, 1.0
        %v785 = vadd.f32 %v753, 1.0
        %v786 = vadd.f32 %v754, 1.0
        %v787 = vadd.f32 %v755, 1.0
        %v788 = vadd.f32 %v756, 1.0
        %v789 = vadd.f32 %v757, 1.0
        %v790 = vadd.f32 %v758, 1.0
        %v791 = vadd.f32 %v759, 1.0
        %v792 = vadd.f32 %v760, 1.0
        %v793 = vadd.f32 %v761, 1.0
        %v794 = vadd.f32 %v762, 1.0
        %v795 = vmul.f32 %v667, %v763
        %v796 = vmul.f32 %v668, %v764
        %v797 = vmul.f32 %v669, %v765
        %v798 = vmul.f32 %v670, %v766
        %v799 = vmul.f32 %v671, %v767
        %v800 = vmul.f32 %v672, %v768
        %v801 = vmul.f32 %v673, %v769
        %v802 = vmul.f32 %v674, %v770
        %v803 = vmul.f32 %v675, %v771
        %v804 = vmul.f32 %v676, %v772
        %v805 = vmul.f32 %v677, %v773
        %v806 = vmul.f32 %v678, %v774
        %v807 = vmul.f32 %v679, %v775
        %v808 = vmul.f32 %v680, %v776
        %v809 = vmul.f32 %v681, %v777
        %v810 = vmul.f32 %v682, %v778
        %v811 = vmul.f32 %v683, %v779
        %v812 = vmul.f32 %v684, %v780
        %v813 = vmul.f32 %v685, %v781
        %v814 = vmul.f32 %v686, %v782
        %v815 = vmul.f32 %v687, %v783
        %v816 = vmul.f32 %v688, %v784
        %v817 = vmul.f32 %v689, %v785
        %v818 = vmul.f32 %v690, %v786
        %v819 = vmul.f32 %v691, %v787
        %v820 = vmul.f32 %v692, %v788
        %v821 = vmul.f32 %v693, %v789
        %v822 = vmul.f32 %v694, %v790
        %v823 = vmul.f32 %v695, %v791
        %v824 = vmul.f32 %v696, %v792
        %v825 = vmul.f32 %v697, %v793
        %v826 = vmul.f32 %v698, %v794
        %v828 = vlaneseq
        %v829 = vshrl.u32 %v828, 7
        %v830 = vsub.s32 0, %v829
        %v831 = vrot.slane %v418, %v830
        %vm833 = vcmask 523264
        %v835 = vsel %vm833, %v795, 0
        %v838 = vsel %vm833, %v796, 0
        %v841 = vsel %vm833, %v797, 0
        %v844 = vsel %vm833, %v798, 0
        %v847 = vsel %vm833, %v799, 0
        %v850 = vsel %vm833, %v800, 0
        %v853 = vsel %vm833, %v801, 0
        %v856 = vsel %vm833, %v802, 0
        %v859 = vsel %vm833, %v803, 0
        %v862 = vsel %vm833, %v804, 0
        %v865 = vsel %vm833, %v805, 0
        %v868 = vsel %vm833, %v806, 0
        %v871 = vsel %vm833, %v807, 0
        %v874 = vsel %vm833, %v808, 0
        %v877 = vsel %vm833, %v809, 0
        %v880 = vsel %vm833, %v810, 0
        %v883 = vsel %vm833, %v811, 0
        %v886 = vsel %vm833, %v812, 0
        %v889 = vsel %vm833, %v813, 0
        %v892 = vsel %vm833, %v814, 0
        %v895 = vsel %vm833, %v815, 0
        %v898 = vsel %vm833, %v816, 0
        %v901 = vsel %vm833, %v817, 0
        %v904 = vsel %vm833, %v818, 0
        %v907 = vsel %vm833, %v819, 0
        %v910 = vsel %vm833, %v820, 0
        %v913 = vsel %vm833, %v821, 0
        %v916 = vsel %vm833, %v822, 0
        %v919 = vsel %vm833, %v823, 0
        %v922 = vsel %vm833, %v824, 0
        %v925 = vsel %vm833, %v825, 0
        %v928 = vsel %vm833, %v826, 0
        %930 = vmatprep.subr.mxu0 0.0
        %931 = vmatpush1.msra.mxu0 0.0
        %932 = vmatprep.subr.mxu0 0.0
        %933 = vmatpush1.msra.mxu0 0.0
        %934 = vmatprep.subr.mxu0 0.0
        %935 = vmatpush1.msra.mxu0 0.0
        %936 = vmatprep.subr.mxu0 0.0
        %937 = vmatpush1.msra.mxu0 0.0
        %938 = vmatprep.subr.mxu0 0.0
        %939 = vmatpush1.msra.mxu0 0.0
        %940 = vmatprep.subr.mxu0 0.0
        %941 = vmatpush1.msra.mxu0 0.0
        %942 = vmatprep.subr.mxu0 0.0
        %943 = vmatpush1.msra.mxu0 0.0
        %944 = vmatprep.subr.mxu0 0.0
        %945 = vmatpush1.msra.mxu0 0.0
        %946 = vmatprep.subr.mxu0 0.0
        %947 = vmatpush1.msra.mxu0 %v417
        %948 = vmatprep.subr.mxu0 0.0
        %949 = vmatpush1.msra.mxu0 %v416
        %950 = vmatprep.subr.mxu0 0.0
        %951 = vmatpush1.msra.mxu0 %v415
        %952 = vmatprep.subr.mxu0 0.0
        %953 = vmatpush1.msra.mxu0 %v414
        %954 = vmatprep.subr.mxu0 0.0
        %955 = vmatpush1.msra.mxu0 %v413
        %956 = vmatprep.subr.mxu0 0.0
        %957 = vmatpush1.msra.mxu0 %v412
        %958 = vmatprep.subr.mxu0 0.0
        %959 = vmatpush1.msra.mxu0 %v411
        %960 = vmatprep.subr.mxu0 0.0
        %961 = vmatpush1.msra.mxu0 %v410
        %962 = vmatprep.subr.mxu0 0.0
        %963 = vmatpush2.msra.mxu0 0.0
        %964 = vmatprep.subr.mxu0 0.0
        %965 = vmatpush2.msra.mxu0 0.0
        %966 = vmatprep.subr.mxu0 0.0
        %967 = vmatpush2.msra.mxu0 0.0
        %968 = vmatprep.subr.mxu0 0.0
        %969 = vmatpush2.msra.mxu0 0.0
        %970 = vmatprep.subr.mxu0 0.0
        %971 = vmatpush2.msra.mxu0 0.0
        %972 = vmatprep.subr.mxu0 0.0
        %973 = vmatpush2.msra.mxu0 0.0
        %974 = vmatprep.subr.mxu0 0.0
        %975 = vmatpush2.msra.mxu0 0.0
        %976 = vmatprep.subr.mxu0 0.0
        %977 = vmatpush2.msra.mxu0 0.0
        %978 = vmatprep.subr.mxu0 0.0
        %979 = vmatpush2.msra.mxu0 0.0
        %980 = vmatprep.subr.mxu0 0.0
        %981 = vmatpush2.msra.mxu0 0.0
        %982 = vmatprep.subr.mxu0 0.0
        %983 = vmatpush2.msra.mxu0 0.0
        %984 = vmatprep.subr.mxu0 0.0
        %985 = vmatpush2.msra.mxu0 0.0
        %986 = vmatprep.subr.mxu0 0.0
        %987 = vmatpush2.msra.mxu0 0.0
        %988 = vmatprep.subr.mxu0 0.0
        %989 = vmatpush2.msra.mxu0 0.0
        %990 = vmatprep.subr.mxu0 0.0
        %991 = vmatpush2.msra.mxu0 0.0
        %992 = vmatprep.subr.mxu0 0.0
        %993 = vmatpush2.msra.mxu0 0.0
        %994 = vmatprep.mubr.f32.mxu0 0.0
        %995 = vmatmul.mubr.f32.gmra.mxu0 %v835
        %v996 = vpop.f32.mrf.mxu0
        %v997 = vadd.f32 %v831, %v996
        %v998 = vpop.f32.mrf.mxu0
        %999 = vmatprep.mubr.f32.mxu0 0.0
        %1000 = vmatmul.mubr.f32.gmra.mxu0 %v838
        %v1001 = vpop.f32.mrf.mxu0
        %v1002 = vadd.f32 %v831, %v1001
        %v1003 = vpop.f32.mrf.mxu0
        %1004 = vmatprep.mubr.f32.mxu0 0.0
        %1005 = vmatmul.mubr.f32.gmra.mxu0 %v841
        %v1006 = vpop.f32.mrf.mxu0
        %v1007 = vadd.f32 %v831, %v1006
        %v1008 = vpop.f32.mrf.mxu0
        %1009 = vmatprep.mubr.f32.mxu0 0.0
        %1010 = vmatmul.mubr.f32.gmra.mxu0 %v844
        %v1011 = vpop.f32.mrf.mxu0
        %v1012 = vadd.f32 %v831, %v1011
        %v1013 = vpop.f32.mrf.mxu0
        %1014 = vmatprep.mubr.f32.mxu0 0.0
        %1015 = vmatmul.mubr.f32.gmra.mxu0 %v847
        %v1016 = vpop.f32.mrf.mxu0
        %v1017 = vadd.f32 %v831, %v1016
        %v1018 = vpop.f32.mrf.mxu0
        %1019 = vmatprep.mubr.f32.mxu0 0.0
        %1020 = vmatmul.mubr.f32.gmra.mxu0 %v850
        %v1021 = vpop.f32.mrf.mxu0
        %v1022 = vadd.f32 %v831, %v1021
        %v1023 = vpop.f32.mrf.mxu0
        %1024 = vmatprep.mubr.f32.mxu0 0.0
        %1025 = vmatmul.mubr.f32.gmra.mxu0 %v853
        %v1026 = vpop.f32.mrf.mxu0
        %v1027 = vadd.f32 %v831, %v1026
        %v1028 = vpop.f32.mrf.mxu0
        %1029 = vmatprep.mubr.f32.mxu0 0.0
        %1030 = vmatmul.mubr.f32.gmra.mxu0 %v856
        %v1031 = vpop.f32.mrf.mxu0
        %v1032 = vadd.f32 %v831, %v1031
        %v1033 = vpop.f32.mrf.mxu0
        %1034 = vmatprep.mubr.f32.mxu0 0.0
        %1035 = vmatmul.mubr.f32.gmra.mxu0 %v859
        %v1036 = vpop.f32.mrf.mxu0
        %v1037 = vadd.f32 %v831, %v1036
        %v1038 = vpop.f32.mrf.mxu0
        %1039 = vmatprep.mubr.f32.mxu0 0.0
        %1040 = vmatmul.mubr.f32.gmra.mxu0 %v862
        %v1041 = vpop.f32.mrf.mxu0
        %v1042 = vadd.f32 %v831, %v1041
        %v1043 = vpop.f32.mrf.mxu0
        %1044 = vmatprep.mubr.f32.mxu0 0.0
        %1045 = vmatmul.mubr.f32.gmra.mxu0 %v865
        %v1046 = vpop.f32.mrf.mxu0
        %v1047 = vadd.f32 %v831, %v1046
        %v1048 = vpop.f32.mrf.mxu0
        %1049 = vmatprep.mubr.f32.mxu0 0.0
        %1050 = vmatmul.mubr.f32.gmra.mxu0 %v868
        %v1051 = vpop.f32.mrf.mxu0
        %v1052 = vadd.f32 %v831, %v1051
        %v1053 = vpop.f32.mrf.mxu0
        %1054 = vmatprep.mubr.f32.mxu0 0.0
        %1055 = vmatmul.mubr.f32.gmra.mxu0 %v871
        %v1056 = vpop.f32.mrf.mxu0
        %v1057 = vadd.f32 %v831, %v1056
        %v1058 = vpop.f32.mrf.mxu0
        %1059 = vmatprep.mubr.f32.mxu0 0.0
        %1060 = vmatmul.mubr.f32.gmra.mxu0 %v874
        %v1061 = vpop.f32.mrf.mxu0
        %v1062 = vadd.f32 %v831, %v1061
        %v1063 = vpop.f32.mrf.mxu0
        %1064 = vmatprep.mubr.f32.mxu0 0.0
        %1065 = vmatmul.mubr.f32.gmra.mxu0 %v877
        %v1066 = vpop.f32.mrf.mxu0
        %v1067 = vadd.f32 %v831, %v1066
        %v1068 = vpop.f32.mrf.mxu0
        %1069 = vmatprep.mubr.f32.mxu0 0.0
        %1070 = vmatmul.mubr.f32.gmra.mxu0 %v880
        %v1071 = vpop.f32.mrf.mxu0
        %v1072 = vadd.f32 %v831, %v1071
        %v1073 = vpop.f32.mrf.mxu0
        %1074 = vmatprep.mubr.f32.mxu0 0.0
        %1075 = vmatmul.mubr.f32.gmra.mxu0 %v883
        %v1076 = vpop.f32.mrf.mxu0
        %v1077 = vadd.f32 %v831, %v1076
        %v1078 = vpop.f32.mrf.mxu0
        %1079 = vmatprep.mubr.f32.mxu0 0.0
        %1080 = vmatmul.mubr.f32.gmra.mxu0 %v886
        %v1081 = vpop.f32.mrf.mxu0
        %v1082 = vadd.f32 %v831, %v1081
        %v1083 = vpop.f32.mrf.mxu0
        %1084 = vmatprep.mubr.f32.mxu0 0.0
        %1085 = vmatmul.mubr.f32.gmra.mxu0 %v889
        %v1086 = vpop.f32.mrf.mxu0
        %v1087 = vadd.f32 %v831, %v1086
        %v1088 = vpop.f32.mrf.mxu0
        %1089 = vmatprep.mubr.f32.mxu0 0.0
        %1090 = vmatmul.mubr.f32.gmra.mxu0 %v892
        %v1091 = vpop.f32.mrf.mxu0
        %v1092 = vadd.f32 %v831, %v1091
        %v1093 = vpop.f32.mrf.mxu0
        %1094 = vmatprep.mubr.f32.mxu0 0.0
        %1095 = vmatmul.mubr.f32.gmra.mxu0 %v895
        %v1096 = vpop.f32.mrf.mxu0
        %v1097 = vadd.f32 %v831, %v1096
        %v1098 = vpop.f32.mrf.mxu0
        %1099 = vmatprep.mubr.f32.mxu0 0.0
        %1100 = vmatmul.mubr.f32.gmra.mxu0 %v898
        %v1101 = vpop.f32.mrf.mxu0
        %v1102 = vadd.f32 %v831, %v1101
        %v1103 = vpop.f32.mrf.mxu0
        %1104 = vmatprep.mubr.f32.mxu0 0.0
        %1105 = vmatmul.mubr.f32.gmra.mxu0 %v901
        %v1106 = vpop.f32.mrf.mxu0
        %v1107 = vadd.f32 %v831, %v1106
        %v1108 = vpop.f32.mrf.mxu0
        %1109 = vmatprep.mubr.f32.mxu0 0.0
        %1110 = vmatmul.mubr.f32.gmra.mxu0 %v904
        %v1111 = vpop.f32.mrf.mxu0
        %v1112 = vadd.f32 %v831, %v1111
        %v1113 = vpop.f32.mrf.mxu0
        %1114 = vmatprep.mubr.f32.mxu0 0.0
        %1115 = vmatmul.mubr.f32.gmra.mxu0 %v907
        %v1116 = vpop.f32.mrf.mxu0
        %v1117 = vadd.f32 %v831, %v1116
        %v1118 = vpop.f32.mrf.mxu0
        %1119 = vmatprep.mubr.f32.mxu0 0.0
        %1120 = vmatmul.mubr.f32.gmra.mxu0 %v910
        %v1121 = vpop.f32.mrf.mxu0
        %v1122 = vadd.f32 %v831, %v1121
        %v1123 = vpop.f32.mrf.mxu0
        %1124 = vmatprep.mubr.f32.mxu0 0.0
        %1125 = vmatmul.mubr.f32.gmra.mxu0 %v913
        %v1126 = vpop.f32.mrf.mxu0
        %v1127 = vadd.f32 %v831, %v1126
        %v1128 = vpop.f32.mrf.mxu0
        %1129 = vmatprep.mubr.f32.mxu0 0.0
        %1130 = vmatmul.mubr.f32.gmra.mxu0 %v916
        %v1131 = vpop.f32.mrf.mxu0
        %v1132 = vadd.f32 %v831, %v1131
        %v1133 = vpop.f32.mrf.mxu0
        %1134 = vmatprep.mubr.f32.mxu0 0.0
        %1135 = vmatmul.mubr.f32.gmra.mxu0 %v919
        %v1136 = vpop.f32.mrf.mxu0
        %v1137 = vadd.f32 %v831, %v1136
        %v1138 = vpop.f32.mrf.mxu0
        %1139 = vmatprep.mubr.f32.mxu0 0.0
        %1140 = vmatmul.mubr.f32.gmra.mxu0 %v922
        %v1141 = vpop.f32.mrf.mxu0
        %v1142 = vadd.f32 %v831, %v1141
        %v1143 = vpop.f32.mrf.mxu0
        %1144 = vmatprep.mubr.f32.mxu0 0.0
        %1145 = vmatmul.mubr.f32.gmra.mxu0 %v925
        %v1146 = vpop.f32.mrf.mxu0
        %v1147 = vadd.f32 %v831, %v1146
        %v1148 = vpop.f32.mrf.mxu0
        %1149 = vmatprep.mubr.f32.mxu0 0.0
        %1150 = vmatmul.mubr.f32.gmra.mxu0 %v928
        %v1151 = vpop.f32.mrf.mxu0
        %v1152 = vadd.f32 %v831, %v1151
        %v1153 = vpop.f32.mrf.mxu0
        %1154 = vdwg.mxu0
        %v1155 = vmul.f32 %v997, 0.5
        %v1156 = vmul.f32 %v1002, 0.5
        %v1157 = vmul.f32 %v1007, 0.5
        %v1158 = vmul.f32 %v1012, 0.5
        %v1159 = vmul.f32 %v1017, 0.5
        %v1160 = vmul.f32 %v1022, 0.5
        %v1161 = vmul.f32 %v1027, 0.5
        %v1162 = vmul.f32 %v1032, 0.5
        %v1163 = vmul.f32 %v1037, 0.5
        %v1164 = vmul.f32 %v1042, 0.5
        %v1165 = vmul.f32 %v1047, 0.5
        %v1166 = vmul.f32 %v1052, 0.5
        %v1167 = vmul.f32 %v1057, 0.5
        %v1168 = vmul.f32 %v1062, 0.5
        %v1169 = vmul.f32 %v1067, 0.5
        %v1170 = vmul.f32 %v1072, 0.5
        %v1171 = vmul.f32 %v1077, 0.5
        %v1172 = vmul.f32 %v1082, 0.5
        %v1173 = vmul.f32 %v1087, 0.5
        %v1174 = vmul.f32 %v1092, 0.5
        %v1175 = vmul.f32 %v1097, 0.5
        %v1176 = vmul.f32 %v1102, 0.5
        %v1177 = vmul.f32 %v1107, 0.5
        %v1178 = vmul.f32 %v1112, 0.5
        %v1179 = vmul.f32 %v1117, 0.5
        %v1180 = vmul.f32 %v1122, 0.5
        %v1181 = vmul.f32 %v1127, 0.5
        %v1182 = vmul.f32 %v1132, 0.5
        %v1183 = vmul.f32 %v1137, 0.5
        %v1184 = vmul.f32 %v1142, 0.5
        %v1185 = vmul.f32 %v1147, 0.5
        %v1186 = vmul.f32 %v1152, 0.5
        %v1187 = vmul.f32 %v997, 0.70710677
        %v1188 = vmul.f32 %v1002, 0.70710677
        %v1189 = vmul.f32 %v1007, 0.70710677
        %v1190 = vmul.f32 %v1012, 0.70710677
        %v1191 = vmul.f32 %v1017, 0.70710677
        %v1192 = vmul.f32 %v1022, 0.70710677
        %v1193 = vmul.f32 %v1027, 0.70710677
        %v1194 = vmul.f32 %v1032, 0.70710677
        %v1195 = vmul.f32 %v1037, 0.70710677
        %v1196 = vmul.f32 %v1042, 0.70710677
        %v1197 = vmul.f32 %v1047, 0.70710677
        %v1198 = vmul.f32 %v1052, 0.70710677
        %v1199 = vmul.f32 %v1057, 0.70710677
        %v1200 = vmul.f32 %v1062, 0.70710677
        %v1201 = vmul.f32 %v1067, 0.70710677
        %v1202 = vmul.f32 %v1072, 0.70710677
        %v1203 = vmul.f32 %v1077, 0.70710677
        %v1204 = vmul.f32 %v1082, 0.70710677
        %v1205 = vmul.f32 %v1087, 0.70710677
        %v1206 = vmul.f32 %v1092, 0.70710677
        %v1207 = vmul.f32 %v1097, 0.70710677
        %v1208 = vmul.f32 %v1102, 0.70710677
        %v1209 = vmul.f32 %v1107, 0.70710677
        %v1210 = vmul.f32 %v1112, 0.70710677
        %v1211 = vmul.f32 %v1117, 0.70710677
        %v1212 = vmul.f32 %v1122, 0.70710677
        %v1213 = vmul.f32 %v1127, 0.70710677
        %v1214 = vmul.f32 %v1132, 0.70710677
        %v1215 = vmul.f32 %v1137, 0.70710677
        %v1216 = vmul.f32 %v1142, 0.70710677
        %v1217 = vmul.f32 %v1147, 0.70710677
        %v1218 = vmul.f32 %v1152, 0.70710677
        %v1219 = verf.f32.pop %v1187
        %v1220 = verf.f32.pop %v1188
        %v1221 = verf.f32.pop %v1189
        %v1222 = verf.f32.pop %v1190
        %v1223 = verf.f32.pop %v1191
        %v1224 = verf.f32.pop %v1192
        %v1225 = verf.f32.pop %v1193
        %v1226 = verf.f32.pop %v1194
        %v1227 = verf.f32.pop %v1195
        %v1228 = verf.f32.pop %v1196
        %v1229 = verf.f32.pop %v1197
        %v1230 = verf.f32.pop %v1198
        %v1231 = verf.f32.pop %v1199
        %v1232 = verf.f32.pop %v1200
        %v1233 = verf.f32.pop %v1201
        %v1234 = verf.f32.pop %v1202
        %v1235 = verf.f32.pop %v1203
        %v1236 = verf.f32.pop %v1204
        %v1237 = verf.f32.pop %v1205
        %v1238 = verf.f32.pop %v1206
        %v1239 = verf.f32.pop %v1207
        %v1240 = verf.f32.pop %v1208
        %v1241 = verf.f32.pop %v1209
        %v1242 = verf.f32.pop %v1210
        %v1243 = verf.f32.pop %v1211
        %v1244 = verf.f32.pop %v1212
        %v1245 = verf.f32.pop %v1213
        %v1246 = verf.f32.pop %v1214
        %v1247 = verf.f32.pop %v1215
        %v1248 = verf.f32.pop %v1216
        %v1249 = verf.f32.pop %v1217
        %v1250 = verf.f32.pop %v1218
        %v1251 = vadd.f32 %v1219, 1.0
        %v1252 = vadd.f32 %v1220, 1.0
        %v1253 = vadd.f32 %v1221, 1.0
        %v1254 = vadd.f32 %v1222, 1.0
        %v1255 = vadd.f32 %v1223, 1.0
        %v1256 = vadd.f32 %v1224, 1.0
        %v1257 = vadd.f32 %v1225, 1.0
        %v1258 = vadd.f32 %v1226, 1.0
        %v1259 = vadd.f32 %v1227, 1.0
        %v1260 = vadd.f32 %v1228, 1.0
        %v1261 = vadd.f32 %v1229, 1.0
        %v1262 = vadd.f32 %v1230, 1.0
        %v1263 = vadd.f32 %v1231, 1.0
        %v1264 = vadd.f32 %v1232, 1.0
        %v1265 = vadd.f32 %v1233, 1.0
        %v1266 = vadd.f32 %v1234, 1.0
        %v1267 = vadd.f32 %v1235, 1.0
        %v1268 = vadd.f32 %v1236, 1.0
        %v1269 = vadd.f32 %v1237, 1.0
        %v1270 = vadd.f32 %v1238, 1.0
        %v1271 = vadd.f32 %v1239, 1.0
        %v1272 = vadd.f32 %v1240, 1.0
        %v1273 = vadd.f32 %v1241, 1.0
        %v1274 = vadd.f32 %v1242, 1.0
        %v1275 = vadd.f32 %v1243, 1.0
        %v1276 = vadd.f32 %v1244, 1.0
        %v1277 = vadd.f32 %v1245, 1.0
        %v1278 = vadd.f32 %v1246, 1.0
        %v1279 = vadd.f32 %v1247, 1.0
        %v1280 = vadd.f32 %v1248, 1.0
        %v1281 = vadd.f32 %v1249, 1.0
        %v1282 = vadd.f32 %v1250, 1.0
        %v1283 = vmul.f32 %v1155, %v1251
        %v1284 = vmul.f32 %v1156, %v1252
        %v1285 = vmul.f32 %v1157, %v1253
        %v1286 = vmul.f32 %v1158, %v1254
        %v1287 = vmul.f32 %v1159, %v1255
        %v1288 = vmul.f32 %v1160, %v1256
        %v1289 = vmul.f32 %v1161, %v1257
        %v1290 = vmul.f32 %v1162, %v1258
        %v1291 = vmul.f32 %v1163, %v1259
        %v1292 = vmul.f32 %v1164, %v1260
        %v1293 = vmul.f32 %v1165, %v1261
        %v1294 = vmul.f32 %v1166, %v1262
        %v1295 = vmul.f32 %v1167, %v1263
        %v1296 = vmul.f32 %v1168, %v1264
        %v1297 = vmul.f32 %v1169, %v1265
        %v1298 = vmul.f32 %v1170, %v1266
        %v1299 = vmul.f32 %v1171, %v1267
        %v1300 = vmul.f32 %v1172, %v1268
        %v1301 = vmul.f32 %v1173, %v1269
        %v1302 = vmul.f32 %v1174, %v1270
        %v1303 = vmul.f32 %v1175, %v1271
        %v1304 = vmul.f32 %v1176, %v1272
        %v1305 = vmul.f32 %v1177, %v1273
        %v1306 = vmul.f32 %v1178, %v1274
        %v1307 = vmul.f32 %v1179, %v1275
        %v1308 = vmul.f32 %v1180, %v1276
        %v1309 = vmul.f32 %v1181, %v1277
        %v1310 = vmul.f32 %v1182, %v1278
        %v1311 = vmul.f32 %v1183, %v1279
        %v1312 = vmul.f32 %v1184, %v1280
        %v1313 = vmul.f32 %v1185, %v1281
        %v1314 = vmul.f32 %v1186, %v1282
        %v1316 = vlaneseq
        %v1317 = vshrl.u32 %v1316, 7
        %v1318 = vsub.s32 0, %v1317
        %v1319 = vrot.slane %v435, %v1318
        %v1320 = vlaneseq
        %v1321 = vshrl.u32 %v1320, 7
        %v1322 = vsub.s32 1, %v1321
        %v1323 = vrot.slane %v435, %v1322
        %v1327 = vsel %vm833, %v1283, 0
        %v1330 = vsel %vm833, %v1284, 0
        %v1333 = vsel %vm833, %v1285, 0
        %v1336 = vsel %vm833, %v1286, 0
        %v1339 = vsel %vm833, %v1287, 0
        %v1342 = vsel %vm833, %v1288, 0
        %v1345 = vsel %vm833, %v1289, 0
        %v1348 = vsel %vm833, %v1290, 0
        %v1351 = vsel %vm833, %v1291, 0
        %v1354 = vsel %vm833, %v1292, 0
        %v1357 = vsel %vm833, %v1293, 0
        %v1360 = vsel %vm833, %v1294, 0
        %v1363 = vsel %vm833, %v1295, 0
        %v1366 = vsel %vm833, %v1296, 0
        %v1369 = vsel %vm833, %v1297, 0
        %v1372 = vsel %vm833, %v1298, 0
        %v1375 = vsel %vm833, %v1299, 0
        %v1378 = vsel %vm833, %v1300, 0
        %v1381 = vsel %vm833, %v1301, 0
        %v1384 = vsel %vm833, %v1302, 0
        %v1387 = vsel %vm833, %v1303, 0
        %v1390 = vsel %vm833, %v1304, 0
        %v1393 = vsel %vm833, %v1305, 0
        %v1396 = vsel %vm833, %v1306, 0
        %v1399 = vsel %vm833, %v1307, 0
        %v1402 = vsel %vm833, %v1308, 0
        %v1405 = vsel %vm833, %v1309, 0
        %v1408 = vsel %vm833, %v1310, 0
        %v1411 = vsel %vm833, %v1311, 0
        %v1414 = vsel %vm833, %v1312, 0
        %v1417 = vsel %vm833, %v1313, 0
        %v1420 = vsel %vm833, %v1314, 0
        %1422 = vmatprep.subr.mxu0 0.0
        %1423 = vmatpush1.msra.mxu0 0.0
        %1424 = vmatprep.subr.mxu0 0.0
        %1425 = vmatpush1.msra.mxu0 0.0
        %1426 = vmatprep.subr.mxu0 0.0
        %1427 = vmatpush1.msra.mxu0 0.0
        %1428 = vmatprep.subr.mxu0 0.0
        %1429 = vmatpush1.msra.mxu0 0.0
        %1430 = vmatprep.subr.mxu0 0.0
        %1431 = vmatpush1.msra.mxu0 0.0
        %1432 = vmatprep.subr.mxu0 0.0
        %1433 = vmatpush1.msra.mxu0 0.0
        %1434 = vmatprep.subr.mxu0 0.0
        %1435 = vmatpush1.msra.mxu0 0.0
        %1436 = vmatprep.subr.mxu0 0.0
        %1437 = vmatpush1.msra.mxu0 0.0
        %1438 = vmatprep.subr.mxu0 %v434
        %1439 = vmatpush1.msra.mxu0 %v433
        %1440 = vmatprep.subr.mxu0 %v432
        %1441 = vmatpush1.msra.mxu0 %v431
        %1442 = vmatprep.subr.mxu0 %v430
        %1443 = vmatpush1.msra.mxu0 %v429
        %1444 = vmatprep.subr.mxu0 %v428
        %1445 = vmatpush1.msra.mxu0 %v427
        %1446 = vmatprep.subr.mxu0 %v426
        %1447 = vmatpush1.msra.mxu0 %v425
        %1448 = vmatprep.subr.mxu0 %v424
        %1449 = vmatpush1.msra.mxu0 %v423
        %1450 = vmatprep.subr.mxu0 %v422
        %1451 = vmatpush1.msra.mxu0 %v421
        %1452 = vmatprep.subr.mxu0 %v420
        %1453 = vmatpush1.msra.mxu0 %v419
        %1454 = vmatprep.subr.mxu0 0.0
        %1455 = vmatpush2.msra.mxu0 0.0
        %1456 = vmatprep.subr.mxu0 0.0
        %1457 = vmatpush2.msra.mxu0 0.0
        %1458 = vmatprep.subr.mxu0 0.0
        %1459 = vmatpush2.msra.mxu0 0.0
        %1460 = vmatprep.subr.mxu0 0.0
        %1461 = vmatpush2.msra.mxu0 0.0
        %1462 = vmatprep.subr.mxu0 0.0
        %1463 = vmatpush2.msra.mxu0 0.0
        %1464 = vmatprep.subr.mxu0 0.0
        %1465 = vmatpush2.msra.mxu0 0.0
        %1466 = vmatprep.subr.mxu0 0.0
        %1467 = vmatpush2.msra.mxu0 0.0
        %1468 = vmatprep.subr.mxu0 0.0
        %1469 = vmatpush2.msra.mxu0 0.0
        %1470 = vmatprep.subr.mxu0 0.0
        %1471 = vmatpush2.msra.mxu0 0.0
        %1472 = vmatprep.subr.mxu0 0.0
        %1473 = vmatpush2.msra.mxu0 0.0
        %1474 = vmatprep.subr.mxu0 0.0
        %1475 = vmatpush2.msra.mxu0 0.0
        %1476 = vmatprep.subr.mxu0 0.0
        %1477 = vmatpush2.msra.mxu0 0.0
        %1478 = vmatprep.subr.mxu0 0.0
        %1479 = vmatpush2.msra.mxu0 0.0
        %1480 = vmatprep.subr.mxu0 0.0
        %1481 = vmatpush2.msra.mxu0 0.0
        %1482 = vmatprep.subr.mxu0 0.0
        %1483 = vmatpush2.msra.mxu0 0.0
        %1484 = vmatprep.subr.mxu0 0.0
        %1485 = vmatpush2.msra.mxu0 0.0
        %1486 = vmatprep.mubr.f32.mxu0 0.0
        %1487 = vmatmul.mubr.f32.gmra.mxu0 %v1327
        %v1488 = vpop.f32.mrf.mxu0
        %v1489 = vadd.f32 %v1319, %v1488
        %v1490 = vpop.f32.mrf.mxu0
        %v1491 = vadd.f32 %v1323, %v1490
        %1492 = vmatprep.mubr.f32.mxu0 0.0
        %1493 = vmatmul.mubr.f32.gmra.mxu0 %v1330
        %v1494 = vpop.f32.mrf.mxu0
        %v1495 = vadd.f32 %v1319, %v1494
        %v1496 = vpop.f32.mrf.mxu0
        %v1497 = vadd.f32 %v1323, %v1496
        %1498 = vmatprep.mubr.f32.mxu0 0.0
        %1499 = vmatmul.mubr.f32.gmra.mxu0 %v1333
        %v1500 = vpop.f32.mrf.mxu0
        %v1501 = vadd.f32 %v1319, %v1500
        %v1502 = vpop.f32.mrf.mxu0
        %v1503 = vadd.f32 %v1323, %v1502
        %1504 = vmatprep.mubr.f32.mxu0 0.0
        %1505 = vmatmul.mubr.f32.gmra.mxu0 %v1336
        %v1506 = vpop.f32.mrf.mxu0
        %v1507 = vadd.f32 %v1319, %v1506
        %v1508 = vpop.f32.mrf.mxu0
        %v1509 = vadd.f32 %v1323, %v1508
        %1510 = vmatprep.mubr.f32.mxu0 0.0
        %1511 = vmatmul.mubr.f32.gmra.mxu0 %v1339
        %v1512 = vpop.f32.mrf.mxu0
        %v1513 = vadd.f32 %v1319, %v1512
        %v1514 = vpop.f32.mrf.mxu0
        %v1515 = vadd.f32 %v1323, %v1514
        %1516 = vmatprep.mubr.f32.mxu0 0.0
        %1517 = vmatmul.mubr.f32.gmra.mxu0 %v1342
        %v1518 = vpop.f32.mrf.mxu0
        %v1519 = vadd.f32 %v1319, %v1518
        %v1520 = vpop.f32.mrf.mxu0
        %v1521 = vadd.f32 %v1323, %v1520
        %1522 = vmatprep.mubr.f32.mxu0 0.0
        %1523 = vmatmul.mubr.f32.gmra.mxu0 %v1345
        %v1524 = vpop.f32.mrf.mxu0
        %v1525 = vadd.f32 %v1319, %v1524
        %v1526 = vpop.f32.mrf.mxu0
        %v1527 = vadd.f32 %v1323, %v1526
        %1528 = vmatprep.mubr.f32.mxu0 0.0
        %1529 = vmatmul.mubr.f32.gmra.mxu0 %v1348
        %v1530 = vpop.f32.mrf.mxu0
        %v1531 = vadd.f32 %v1319, %v1530
        %v1532 = vpop.f32.mrf.mxu0
        %v1533 = vadd.f32 %v1323, %v1532
        %1534 = vmatprep.mubr.f32.mxu0 0.0
        %1535 = vmatmul.mubr.f32.gmra.mxu0 %v1351
        %v1536 = vpop.f32.mrf.mxu0
        %v1537 = vadd.f32 %v1319, %v1536
        %v1538 = vpop.f32.mrf.mxu0
        %v1539 = vadd.f32 %v1323, %v1538
        %1540 = vmatprep.mubr.f32.mxu0 0.0
        %1541 = vmatmul.mubr.f32.gmra.mxu0 %v1354
        %v1542 = vpop.f32.mrf.mxu0
        %v1543 = vadd.f32 %v1319, %v1542
        %v1544 = vpop.f32.mrf.mxu0
        %v1545 = vadd.f32 %v1323, %v1544
        %1546 = vmatprep.mubr.f32.mxu0 0.0
        %1547 = vmatmul.mubr.f32.gmra.mxu0 %v1357
        %v1548 = vpop.f32.mrf.mxu0
        %v1549 = vadd.f32 %v1319, %v1548
        %v1550 = vpop.f32.mrf.mxu0
        %v1551 = vadd.f32 %v1323, %v1550
        %1552 = vmatprep.mubr.f32.mxu0 0.0
        %1553 = vmatmul.mubr.f32.gmra.mxu0 %v1360
        %v1554 = vpop.f32.mrf.mxu0
        %v1555 = vadd.f32 %v1319, %v1554
        %v1556 = vpop.f32.mrf.mxu0
        %v1557 = vadd.f32 %v1323, %v1556
        %1558 = vmatprep.mubr.f32.mxu0 0.0
        %1559 = vmatmul.mubr.f32.gmra.mxu0 %v1363
        %v1560 = vpop.f32.mrf.mxu0
        %v1561 = vadd.f32 %v1319, %v1560
        %v1562 = vpop.f32.mrf.mxu0
        %v1563 = vadd.f32 %v1323, %v1562
        %1564 = vmatprep.mubr.f32.mxu0 0.0
        %1565 = vmatmul.mubr.f32.gmra.mxu0 %v1366
        %v1566 = vpop.f32.mrf.mxu0
        %v1567 = vadd.f32 %v1319, %v1566
        %v1568 = vpop.f32.mrf.mxu0
        %v1569 = vadd.f32 %v1323, %v1568
        %1570 = vmatprep.mubr.f32.mxu0 0.0
        %1571 = vmatmul.mubr.f32.gmra.mxu0 %v1369
        %v1572 = vpop.f32.mrf.mxu0
        %v1573 = vadd.f32 %v1319, %v1572
        %v1574 = vpop.f32.mrf.mxu0
        %v1575 = vadd.f32 %v1323, %v1574
        %1576 = vmatprep.mubr.f32.mxu0 0.0
        %1577 = vmatmul.mubr.f32.gmra.mxu0 %v1372
        %v1578 = vpop.f32.mrf.mxu0
        %v1579 = vadd.f32 %v1319, %v1578
        %v1580 = vpop.f32.mrf.mxu0
        %v1581 = vadd.f32 %v1323, %v1580
        %1582 = vmatprep.mubr.f32.mxu0 0.0
        %1583 = vmatmul.mubr.f32.gmra.mxu0 %v1375
        %v1584 = vpop.f32.mrf.mxu0
        %v1585 = vadd.f32 %v1319, %v1584
        %v1586 = vpop.f32.mrf.mxu0
        %v1587 = vadd.f32 %v1323, %v1586
        %1588 = vmatprep.mubr.f32.mxu0 0.0
        %1589 = vmatmul.mubr.f32.gmra.mxu0 %v1378
        %v1590 = vpop.f32.mrf.mxu0
        %v1591 = vadd.f32 %v1319, %v1590
        %v1592 = vpop.f32.mrf.mxu0
        %v1593 = vadd.f32 %v1323, %v1592
        %1594 = vmatprep.mubr.f32.mxu0 0.0
        %1595 = vmatmul.mubr.f32.gmra.mxu0 %v1381
        %v1596 = vpop.f32.mrf.mxu0
        %v1597 = vadd.f32 %v1319, %v1596
        %v1598 = vpop.f32.mrf.mxu0
        %v1599 = vadd.f32 %v1323, %v1598
        %1600 = vmatprep.mubr.f32.mxu0 0.0
        %1601 = vmatmul.mubr.f32.gmra.mxu0 %v1384
        %v1602 = vpop.f32.mrf.mxu0
        %v1603 = vadd.f32 %v1319, %v1602
        %v1604 = vpop.f32.mrf.mxu0
        %v1605 = vadd.f32 %v1323, %v1604
        %1606 = vmatprep.mubr.f32.mxu0 0.0
        %1607 = vmatmul.mubr.f32.gmra.mxu0 %v1387
        %v1608 = vpop.f32.mrf.mxu0
        %v1609 = vadd.f32 %v1319, %v1608
        %v1610 = vpop.f32.mrf.mxu0
        %v1611 = vadd.f32 %v1323, %v1610
        %1612 = vmatprep.mubr.f32.mxu0 0.0
        %1613 = vmatmul.mubr.f32.gmra.mxu0 %v1390
        %v1614 = vpop.f32.mrf.mxu0
        %v1615 = vadd.f32 %v1319, %v1614
        %v1616 = vpop.f32.mrf.mxu0
        %v1617 = vadd.f32 %v1323, %v1616
        %1618 = vmatprep.mubr.f32.mxu0 0.0
        %1619 = vmatmul.mubr.f32.gmra.mxu0 %v1393
        %v1620 = vpop.f32.mrf.mxu0
        %v1621 = vadd.f32 %v1319, %v1620
        %v1622 = vpop.f32.mrf.mxu0
        %v1623 = vadd.f32 %v1323, %v1622
        %1624 = vmatprep.mubr.f32.mxu0 0.0
        %1625 = vmatmul.mubr.f32.gmra.mxu0 %v1396
        %v1626 = vpop.f32.mrf.mxu0
        %v1627 = vadd.f32 %v1319, %v1626
        %v1628 = vpop.f32.mrf.mxu0
        %v1629 = vadd.f32 %v1323, %v1628
        %1630 = vmatprep.mubr.f32.mxu0 0.0
        %1631 = vmatmul.mubr.f32.gmra.mxu0 %v1399
        %v1632 = vpop.f32.mrf.mxu0
        %v1633 = vadd.f32 %v1319, %v1632
        %v1634 = vpop.f32.mrf.mxu0
        %v1635 = vadd.f32 %v1323, %v1634
        %1636 = vmatprep.mubr.f32.mxu0 0.0
        %1637 = vmatmul.mubr.f32.gmra.mxu0 %v1402
        %v1638 = vpop.f32.mrf.mxu0
        %v1639 = vadd.f32 %v1319, %v1638
        %v1640 = vpop.f32.mrf.mxu0
        %v1641 = vadd.f32 %v1323, %v1640
        %1642 = vmatprep.mubr.f32.mxu0 0.0
        %1643 = vmatmul.mubr.f32.gmra.mxu0 %v1405
        %v1644 = vpop.f32.mrf.mxu0
        %v1645 = vadd.f32 %v1319, %v1644
        %v1646 = vpop.f32.mrf.mxu0
        %v1647 = vadd.f32 %v1323, %v1646
        %1648 = vmatprep.mubr.f32.mxu0 0.0
        %1649 = vmatmul.mubr.f32.gmra.mxu0 %v1408
        %v1650 = vpop.f32.mrf.mxu0
        %v1651 = vadd.f32 %v1319, %v1650
        %v1652 = vpop.f32.mrf.mxu0
        %v1653 = vadd.f32 %v1323, %v1652
        %1654 = vmatprep.mubr.f32.mxu0 0.0
        %1655 = vmatmul.mubr.f32.gmra.mxu0 %v1411
        %v1656 = vpop.f32.mrf.mxu0
        %v1657 = vadd.f32 %v1319, %v1656
        %v1658 = vpop.f32.mrf.mxu0
        %v1659 = vadd.f32 %v1323, %v1658
        %1660 = vmatprep.mubr.f32.mxu0 0.0
        %1661 = vmatmul.mubr.f32.gmra.mxu0 %v1414
        %v1662 = vpop.f32.mrf.mxu0
        %v1663 = vadd.f32 %v1319, %v1662
        %v1664 = vpop.f32.mrf.mxu0
        %v1665 = vadd.f32 %v1323, %v1664
        %1666 = vmatprep.mubr.f32.mxu0 0.0
        %1667 = vmatmul.mubr.f32.gmra.mxu0 %v1417
        %v1668 = vpop.f32.mrf.mxu0
        %v1669 = vadd.f32 %v1319, %v1668
        %v1670 = vpop.f32.mrf.mxu0
        %v1671 = vadd.f32 %v1323, %v1670
        %1672 = vmatprep.mubr.f32.mxu0 0.0
        %1673 = vmatmul.mubr.f32.gmra.mxu0 %v1420
        %v1674 = vpop.f32.mrf.mxu0
        %v1675 = vadd.f32 %v1319, %v1674
        %v1676 = vpop.f32.mrf.mxu0
        %v1677 = vadd.f32 %v1323, %v1676
        %1678 = vdwg.mxu0
        %v1679 = vmul.f32 %v1489, 1.442695
        %v1680 = vpow.pop %v1679
        %v1681 = vmul.f32 %v1495, 1.442695
        %v1682 = vpow.pop %v1681
        %v1683 = vmul.f32 %v1501, 1.442695
        %v1684 = vpow.pop %v1683
        %v1685 = vmul.f32 %v1507, 1.442695
        %v1686 = vpow.pop %v1685
        %v1687 = vmul.f32 %v1513, 1.442695
        %v1688 = vpow.pop %v1687
        %v1689 = vmul.f32 %v1519, 1.442695
        %v1690 = vpow.pop %v1689
        %v1691 = vmul.f32 %v1525, 1.442695
        %v1692 = vpow.pop %v1691
        %v1693 = vmul.f32 %v1531, 1.442695
        %v1694 = vpow.pop %v1693
        %v1695 = vmul.f32 %v1537, 1.442695
        %v1696 = vpow.pop %v1695
        %v1697 = vmul.f32 %v1543, 1.442695
        %v1698 = vpow.pop %v1697
        %v1699 = vmul.f32 %v1549, 1.442695
        %v1700 = vpow.pop %v1699
        %v1701 = vmul.f32 %v1555, 1.442695
        %v1702 = vpow.pop %v1701
        %v1703 = vmul.f32 %v1561, 1.442695
        %v1704 = vpow.pop %v1703
        %v1705 = vmul.f32 %v1567, 1.442695
        %v1706 = vpow.pop %v1705
        %v1707 = vmul.f32 %v1573, 1.442695
        %v1708 = vpow.pop %v1707
        %v1709 = vmul.f32 %v1579, 1.442695
        %v1710 = vpow.pop %v1709
        %v1711 = vmul.f32 %v1585, 1.442695
        %v1712 = vpow.pop %v1711
        %v1713 = vmul.f32 %v1591, 1.442695
        %v1714 = vpow.pop %v1713
        %v1715 = vmul.f32 %v1597, 1.442695
        %v1716 = vpow.pop %v1715
        %v1717 = vmul.f32 %v1603, 1.442695
        %v1718 = vpow.pop %v1717
        %v1719 = vmul.f32 %v1609, 1.442695
        %v1720 = vpow.pop %v1719
        %v1721 = vmul.f32 %v1615, 1.442695
        %v1722 = vpow.pop %v1721
        %v1723 = vmul.f32 %v1621, 1.442695
        %v1724 = vpow.pop %v1723
        %v1725 = vmul.f32 %v1627, 1.442695
        %v1726 = vpow.pop %v1725
        %v1727 = vmul.f32 %v1633, 1.442695
        %v1728 = vpow.pop %v1727
        %v1729 = vmul.f32 %v1639, 1.442695
        %v1730 = vpow.pop %v1729
        %v1731 = vmul.f32 %v1645, 1.442695
        %v1732 = vpow.pop %v1731
        %v1733 = vmul.f32 %v1651, 1.442695
        %v1734 = vpow.pop %v1733
        %v1735 = vmul.f32 %v1657, 1.442695
        %v1736 = vpow.pop %v1735
        %v1737 = vmul.f32 %v1663, 1.442695
        %v1738 = vpow.pop %v1737
        %v1739 = vmul.f32 %v1669, 1.442695
        %v1740 = vpow.pop %v1739
        %v1741 = vmul.f32 %v1675, 1.442695
        %v1742 = vpow.pop %v1741
        %v1743 = vmul.f32 %v1680, %v361
        %v1744 = vmul.f32 %v1682, %v362
        %v1745 = vmul.f32 %v1684, %v363
        %v1746 = vmul.f32 %v1686, %v364
        %v1747 = vmul.f32 %v1688, %v365
        %v1748 = vmul.f32 %v1690, %v366
        %v1749 = vmul.f32 %v1692, %v367
        %v1750 = vmul.f32 %v1694, %v368
        %v1751 = vmul.f32 %v1696, %v369
        %v1752 = vmul.f32 %v1698, %v370
        %v1753 = vmul.f32 %v1700, %v371
        %v1754 = vmul.f32 %v1702, %v372
        %v1755 = vmul.f32 %v1704, %v373
        %v1756 = vmul.f32 %v1706, %v374
        %v1757 = vmul.f32 %v1708, %v375
        %v1758 = vmul.f32 %v1710, %v376
        %v1759 = vmul.f32 %v1712, %v377
        %v1760 = vmul.f32 %v1714, %v378
        %v1761 = vmul.f32 %v1716, %v379
        %v1762 = vmul.f32 %v1718, %v380
        %v1763 = vmul.f32 %v1720, %v381
        %v1764 = vmul.f32 %v1722, %v382
        %v1765 = vmul.f32 %v1724, %v383
        %v1766 = vmul.f32 %v1726, %v384
        %v1767 = vmul.f32 %v1728, %v385
        %v1768 = vmul.f32 %v1730, %v386
        %v1769 = vmul.f32 %v1732, %v387
        %v1770 = vmul.f32 %v1734, %v388
        %v1771 = vmul.f32 %v1736, %v389
        %v1772 = vmul.f32 %v1738, %v390
        %v1773 = vmul.f32 %v1740, %v391
        %v1774 = vmul.f32 %v1742, %v392
        %v1775 = vadd.f32 %v1743, %v1491
        %v1776 = vadd.f32 %v1744, %v1497
        %v1777 = vadd.f32 %v1745, %v1503
        %v1778 = vadd.f32 %v1746, %v1509
        %v1779 = vadd.f32 %v1747, %v1515
        %v1780 = vadd.f32 %v1748, %v1521
        %v1781 = vadd.f32 %v1749, %v1527
        %v1782 = vadd.f32 %v1750, %v1533
        %v1783 = vadd.f32 %v1751, %v1539
        %v1784 = vadd.f32 %v1752, %v1545
        %v1785 = vadd.f32 %v1753, %v1551
        %v1786 = vadd.f32 %v1754, %v1557
        %v1787 = vadd.f32 %v1755, %v1563
        %v1788 = vadd.f32 %v1756, %v1569
        %v1789 = vadd.f32 %v1757, %v1575
        %v1790 = vadd.f32 %v1758, %v1581
        %v1791 = vadd.f32 %v1759, %v1587
        %v1792 = vadd.f32 %v1760, %v1593
        %v1793 = vadd.f32 %v1761, %v1599
        %v1794 = vadd.f32 %v1762, %v1605
        %v1795 = vadd.f32 %v1763, %v1611
        %v1796 = vadd.f32 %v1764, %v1617
        %v1797 = vadd.f32 %v1765, %v1623
        %v1798 = vadd.f32 %v1766, %v1629
        %v1799 = vadd.f32 %v1767, %v1635
        %v1800 = vadd.f32 %v1768, %v1641
        %v1801 = vadd.f32 %v1769, %v1647
        %v1802 = vadd.f32 %v1770, %v1653
        %v1803 = vadd.f32 %v1771, %v1659
        %v1804 = vadd.f32 %v1772, %v1665
        %v1805 = vadd.f32 %v1773, %v1671
        %v1806 = vadd.f32 %v1774, %v1677
        %s1807 = scalar_lea.vmem %s1, 128
        %v1808 = vld [vmem:[%s1807] sm:$0xff]
        %v1809 = vld [vmem:[%s1807 + $0x8] sm:$0xff]
        %v1810 = vld [vmem:[%s1807 + $0x10] sm:$0xff]
        %v1811 = vld [vmem:[%s1807 + $0x18] sm:$0xff]
        %v1812 = vld [vmem:[%s1807 + $0x20] sm:$0xff]
        %v1813 = vld [vmem:[%s1807 + $0x28] sm:$0xff]
        %v1814 = vld [vmem:[%s1807 + $0x30] sm:$0xff]
        %v1815 = vld [vmem:[%s1807 + $0x38] sm:$0xff]
        %v1816 = vld [vmem:[%s1807 + $0x40] sm:$0xff]
        %v1817 = vld [vmem:[%s1807 + $0x48] sm:$0xff]
        %v1818 = vld [vmem:[%s1807 + $0x50] sm:$0xff]
        %v1819 = vld [vmem:[%s1807 + $0x58] sm:$0xff]
        %v1820 = vld [vmem:[%s1807 + $0x60] sm:$0xff]
        %v1821 = vld [vmem:[%s1807 + $0x68] sm:$0xff]
        %v1822 = vld [vmem:[%s1807 + $0x70] sm:$0xff]
        %v1823 = vld [vmem:[%s1807 + $0x78] sm:$0xff]
        %s1824 = scalar_lea.vmem [#allocation5], 1
        %v1825 = vld [vmem:[%s1824] sm:$0x1]
        %s1826 = scalar_lea.vmem %s3, 64
        %v1827 = vld [vmem:[%s1826] sm:$0xff]
        %v1828 = vld [vmem:[%s1826 + $0x8] sm:$0xff]
        %v1829 = vld [vmem:[%s1826 + $0x10] sm:$0xff]
        %v1830 = vld [vmem:[%s1826 + $0x18] sm:$0xff]
        %v1831 = vld [vmem:[%s1826 + $0x20] sm:$0xff]
        %v1832 = vld [vmem:[%s1826 + $0x28] sm:$0xff]
        %v1833 = vld [vmem:[%s1826 + $0x30] sm:$0xff]
        %v1834 = vld [vmem:[%s1826 + $0x38] sm:$0xff]
        %s1835 = scalar_lea.vmem [#allocation7], 1
        %v1836 = vld [vmem:[%s1835] sm:$0x1]
        %s1837 = scalar_lea.vmem %s5, 128
        %v1838 = vld [vmem:[%s1837] sm:$0xff]
        %v1839 = vld [vmem:[%s1837 + $0x8] sm:$0xff]
        %v1840 = vld [vmem:[%s1837 + $0x10] sm:$0xff]
        %v1841 = vld [vmem:[%s1837 + $0x18] sm:$0xff]
        %v1842 = vld [vmem:[%s1837 + $0x20] sm:$0xff]
        %v1843 = vld [vmem:[%s1837 + $0x28] sm:$0xff]
        %v1844 = vld [vmem:[%s1837 + $0x30] sm:$0xff]
        %v1845 = vld [vmem:[%s1837 + $0x38] sm:$0xff]
        %v1846 = vld [vmem:[%s1837 + $0x40] sm:$0xff]
        %v1847 = vld [vmem:[%s1837 + $0x48] sm:$0xff]
        %v1848 = vld [vmem:[%s1837 + $0x50] sm:$0xff]
        %v1849 = vld [vmem:[%s1837 + $0x58] sm:$0xff]
        %v1850 = vld [vmem:[%s1837 + $0x60] sm:$0xff]
        %v1851 = vld [vmem:[%s1837 + $0x68] sm:$0xff]
        %v1852 = vld [vmem:[%s1837 + $0x70] sm:$0xff]
        %v1853 = vld [vmem:[%s1837 + $0x78] sm:$0xff]
        %s1854 = scalar_lea.vmem %s6, 2
        %v1855 = vld [vmem:[%s1854] sm:$0x3]
        %v1857 = vlaneseq
        %v1858 = vshrl.u32 %v1857, 7
        %v1859 = vsub.s32 0, %v1858
        %v1860 = vrot.slane %v1825, %v1859
        %1862 = vmatprep.subr.mxu0 0.0
        %1863 = vmatpush1.msra.mxu0 %v1823
        %1864 = vmatprep.subr.mxu0 0.0
        %1865 = vmatpush1.msra.mxu0 %v1822
        %1866 = vmatprep.subr.mxu0 0.0
        %1867 = vmatpush1.msra.mxu0 %v1821
        %1868 = vmatprep.subr.mxu0 0.0
        %1869 = vmatpush1.msra.mxu0 %v1820
        %1870 = vmatprep.subr.mxu0 0.0
        %1871 = vmatpush1.msra.mxu0 %v1819
        %1872 = vmatprep.subr.mxu0 0.0
        %1873 = vmatpush1.msra.mxu0 %v1818
        %1874 = vmatprep.subr.mxu0 0.0
        %1875 = vmatpush1.msra.mxu0 %v1817
        %1876 = vmatprep.subr.mxu0 0.0
        %1877 = vmatpush1.msra.mxu0 %v1816
        %1878 = vmatprep.subr.mxu0 0.0
        %1879 = vmatpush1.msra.mxu0 %v1815
        %1880 = vmatprep.subr.mxu0 0.0
        %1881 = vmatpush1.msra.mxu0 %v1814
        %1882 = vmatprep.subr.mxu0 0.0
        %1883 = vmatpush1.msra.mxu0 %v1813
        %1884 = vmatprep.subr.mxu0 0.0
        %1885 = vmatpush1.msra.mxu0 %v1812
        %1886 = vmatprep.subr.mxu0 0.0
        %1887 = vmatpush1.msra.mxu0 %v1811
        %1888 = vmatprep.subr.mxu0 0.0
        %1889 = vmatpush1.msra.mxu0 %v1810
        %1890 = vmatprep.subr.mxu0 0.0
        %1891 = vmatpush1.msra.mxu0 %v1809
        %1892 = vmatprep.subr.mxu0 0.0
        %1893 = vmatpush1.msra.mxu0 %v1808
        %1894 = vmatprep.subr.mxu0 0.0
        %1895 = vmatpush2.msra.mxu0 0.0
        %1896 = vmatprep.subr.mxu0 0.0
        %1897 = vmatpush2.msra.mxu0 0.0
        %1898 = vmatprep.subr.mxu0 0.0
        %1899 = vmatpush2.msra.mxu0 0.0
        %1900 = vmatprep.subr.mxu0 0.0
        %1901 = vmatpush2.msra.mxu0 0.0
        %1902 = vmatprep.subr.mxu0 0.0
        %1903 = vmatpush2.msra.mxu0 0.0
        %1904 = vmatprep.subr.mxu0 0.0
        %1905 = vmatpush2.msra.mxu0 0.0
        %1906 = vmatprep.subr.mxu0 0.0
        %1907 = vmatpush2.msra.mxu0 0.0
        %1908 = vmatprep.subr.mxu0 0.0
        %1909 = vmatpush2.msra.mxu0 0.0
        %1910 = vmatprep.subr.mxu0 0.0
        %1911 = vmatpush2.msra.mxu0 0.0
        %1912 = vmatprep.subr.mxu0 0.0
        %1913 = vmatpush2.msra.mxu0 0.0
        %1914 = vmatprep.subr.mxu0 0.0
        %1915 = vmatpush2.msra.mxu0 0.0
        %1916 = vmatprep.subr.mxu0 0.0
        %1917 = vmatpush2.msra.mxu0 0.0
        %1918 = vmatprep.subr.mxu0 0.0
        %1919 = vmatpush2.msra.mxu0 0.0
        %1920 = vmatprep.subr.mxu0 0.0
        %1921 = vmatpush2.msra.mxu0 0.0
        %1922 = vmatprep.subr.mxu0 0.0
        %1923 = vmatpush2.msra.mxu0 0.0
        %1924 = vmatprep.subr.mxu0 0.0
        %1925 = vmatpush2.msra.mxu0 0.0
        %1926 = vmatprep.mubr.f32.mxu0 0.0
        %1927 = vmatmul.mubr.f32.gmra.mxu0 %v1775
        %v1928 = vpop.f32.mrf.mxu0
        %v1929 = vadd.f32 %v1860, %v1928
        %v1930 = vpop.f32.mrf.mxu0
        %1931 = vmatprep.mubr.f32.mxu0 0.0
        %1932 = vmatmul.mubr.f32.gmra.mxu0 %v1776
        %v1933 = vpop.f32.mrf.mxu0
        %v1934 = vadd.f32 %v1860, %v1933
        %v1935 = vpop.f32.mrf.mxu0
        %1936 = vmatprep.mubr.f32.mxu0 0.0
        %1937 = vmatmul.mubr.f32.gmra.mxu0 %v1777
        %v1938 = vpop.f32.mrf.mxu0
        %v1939 = vadd.f32 %v1860, %v1938
        %v1940 = vpop.f32.mrf.mxu0
        %1941 = vmatprep.mubr.f32.mxu0 0.0
        %1942 = vmatmul.mubr.f32.gmra.mxu0 %v1778
        %v1943 = vpop.f32.mrf.mxu0
        %v1944 = vadd.f32 %v1860, %v1943
        %v1945 = vpop.f32.mrf.mxu0
        %1946 = vmatprep.mubr.f32.mxu0 0.0
        %1947 = vmatmul.mubr.f32.gmra.mxu0 %v1779
        %v1948 = vpop.f32.mrf.mxu0
        %v1949 = vadd.f32 %v1860, %v1948
        %v1950 = vpop.f32.mrf.mxu0
        %1951 = vmatprep.mubr.f32.mxu0 0.0
        %1952 = vmatmul.mubr.f32.gmra.mxu0 %v1780
        %v1953 = vpop.f32.mrf.mxu0
        %v1954 = vadd.f32 %v1860, %v1953
        %v1955 = vpop.f32.mrf.mxu0
        %1956 = vmatprep.mubr.f32.mxu0 0.0
        %1957 = vmatmul.mubr.f32.gmra.mxu0 %v1781
        %v1958 = vpop.f32.mrf.mxu0
        %v1959 = vadd.f32 %v1860, %v1958
        %v1960 = vpop.f32.mrf.mxu0
        %1961 = vmatprep.mubr.f32.mxu0 0.0
        %1962 = vmatmul.mubr.f32.gmra.mxu0 %v1782
        %v1963 = vpop.f32.mrf.mxu0
        %v1964 = vadd.f32 %v1860, %v1963
        %v1965 = vpop.f32.mrf.mxu0
        %1966 = vmatprep.mubr.f32.mxu0 0.0
        %1967 = vmatmul.mubr.f32.gmra.mxu0 %v1783
        %v1968 = vpop.f32.mrf.mxu0
        %v1969 = vadd.f32 %v1860, %v1968
        %v1970 = vpop.f32.mrf.mxu0
        %1971 = vmatprep.mubr.f32.mxu0 0.0
        %1972 = vmatmul.mubr.f32.gmra.mxu0 %v1784
        %v1973 = vpop.f32.mrf.mxu0
        %v1974 = vadd.f32 %v1860, %v1973
        %v1975 = vpop.f32.mrf.mxu0
        %1976 = vmatprep.mubr.f32.mxu0 0.0
        %1977 = vmatmul.mubr.f32.gmra.mxu0 %v1785
        %v1978 = vpop.f32.mrf.mxu0
        %v1979 = vadd.f32 %v1860, %v1978
        %v1980 = vpop.f32.mrf.mxu0
        %1981 = vmatprep.mubr.f32.mxu0 0.0
        %1982 = vmatmul.mubr.f32.gmra.mxu0 %v1786
        %v1983 = vpop.f32.mrf.mxu0
        %v1984 = vadd.f32 %v1860, %v1983
        %v1985 = vpop.f32.mrf.mxu0
        %1986 = vmatprep.mubr.f32.mxu0 0.0
        %1987 = vmatmul.mubr.f32.gmra.mxu0 %v1787
        %v1988 = vpop.f32.mrf.mxu0
        %v1989 = vadd.f32 %v1860, %v1988
        %v1990 = vpop.f32.mrf.mxu0
        %1991 = vmatprep.mubr.f32.mxu0 0.0
        %1992 = vmatmul.mubr.f32.gmra.mxu0 %v1788
        %v1993 = vpop.f32.mrf.mxu0
        %v1994 = vadd.f32 %v1860, %v1993
        %v1995 = vpop.f32.mrf.mxu0
        %1996 = vmatprep.mubr.f32.mxu0 0.0
        %1997 = vmatmul.mubr.f32.gmra.mxu0 %v1789
        %v1998 = vpop.f32.mrf.mxu0
        %v1999 = vadd.f32 %v1860, %v1998
        %v2000 = vpop.f32.mrf.mxu0
        %2001 = vmatprep.mubr.f32.mxu0 0.0
        %2002 = vmatmul.mubr.f32.gmra.mxu0 %v1790
        %v2003 = vpop.f32.mrf.mxu0
        %v2004 = vadd.f32 %v1860, %v2003
        %v2005 = vpop.f32.mrf.mxu0
        %2006 = vmatprep.mubr.f32.mxu0 0.0
        %2007 = vmatmul.mubr.f32.gmra.mxu0 %v1791
        %v2008 = vpop.f32.mrf.mxu0
        %v2009 = vadd.f32 %v1860, %v2008
        %v2010 = vpop.f32.mrf.mxu0
        %2011 = vmatprep.mubr.f32.mxu0 0.0
        %2012 = vmatmul.mubr.f32.gmra.mxu0 %v1792
        %v2013 = vpop.f32.mrf.mxu0
        %v2014 = vadd.f32 %v1860, %v2013
        %v2015 = vpop.f32.mrf.mxu0
        %2016 = vmatprep.mubr.f32.mxu0 0.0
        %2017 = vmatmul.mubr.f32.gmra.mxu0 %v1793
        %v2018 = vpop.f32.mrf.mxu0
        %v2019 = vadd.f32 %v1860, %v2018
        %v2020 = vpop.f32.mrf.mxu0
        %2021 = vmatprep.mubr.f32.mxu0 0.0
        %2022 = vmatmul.mubr.f32.gmra.mxu0 %v1794
        %v2023 = vpop.f32.mrf.mxu0
        %v2024 = vadd.f32 %v1860, %v2023
        %v2025 = vpop.f32.mrf.mxu0
        %2026 = vmatprep.mubr.f32.mxu0 0.0
        %2027 = vmatmul.mubr.f32.gmra.mxu0 %v1795
        %v2028 = vpop.f32.mrf.mxu0
        %v2029 = vadd.f32 %v1860, %v2028
        %v2030 = vpop.f32.mrf.mxu0
        %2031 = vmatprep.mubr.f32.mxu0 0.0
        %2032 = vmatmul.mubr.f32.gmra.mxu0 %v1796
        %v2033 = vpop.f32.mrf.mxu0
        %v2034 = vadd.f32 %v1860, %v2033
        %v2035 = vpop.f32.mrf.mxu0
        %2036 = vmatprep.mubr.f32.mxu0 0.0
        %2037 = vmatmul.mubr.f32.gmra.mxu0 %v1797
        %v2038 = vpop.f32.mrf.mxu0
        %v2039 = vadd.f32 %v1860, %v2038
        %v2040 = vpop.f32.mrf.mxu0
        %2041 = vmatprep.mubr.f32.mxu0 0.0
        %2042 = vmatmul.mubr.f32.gmra.mxu0 %v1798
        %v2043 = vpop.f32.mrf.mxu0
        %v2044 = vadd.f32 %v1860, %v2043
        %v2045 = vpop.f32.mrf.mxu0
        %2046 = vmatprep.mubr.f32.mxu0 0.0
        %2047 = vmatmul.mubr.f32.gmra.mxu0 %v1799
        %v2048 = vpop.f32.mrf.mxu0
        %v2049 = vadd.f32 %v1860, %v2048
        %v2050 = vpop.f32.mrf.mxu0
        %2051 = vmatprep.mubr.f32.mxu0 0.0
        %2052 = vmatmul.mubr.f32.gmra.mxu0 %v1800
        %v2053 = vpop.f32.mrf.mxu0
        %v2054 = vadd.f32 %v1860, %v2053
        %v2055 = vpop.f32.mrf.mxu0
        %2056 = vmatprep.mubr.f32.mxu0 0.0
        %2057 = vmatmul.mubr.f32.gmra.mxu0 %v1801
        %v2058 = vpop.f32.mrf.mxu0
        %v2059 = vadd.f32 %v1860, %v2058
        %v2060 = vpop.f32.mrf.mxu0
        %2061 = vmatprep.mubr.f32.mxu0 0.0
        %2062 = vmatmul.mubr.f32.gmra.mxu0 %v1802
        %v2063 = vpop.f32.mrf.mxu0
        %v2064 = vadd.f32 %v1860, %v2063
        %v2065 = vpop.f32.mrf.mxu0
        %2066 = vmatprep.mubr.f32.mxu0 0.0
        %2067 = vmatmul.mubr.f32.gmra.mxu0 %v1803
        %v2068 = vpop.f32.mrf.mxu0
        %v2069 = vadd.f32 %v1860, %v2068
        %v2070 = vpop.f32.mrf.mxu0
        %2071 = vmatprep.mubr.f32.mxu0 0.0
        %2072 = vmatmul.mubr.f32.gmra.mxu0 %v1804
        %v2073 = vpop.f32.mrf.mxu0
        %v2074 = vadd.f32 %v1860, %v2073
        %v2075 = vpop.f32.mrf.mxu0
        %2076 = vmatprep.mubr.f32.mxu0 0.0
        %2077 = vmatmul.mubr.f32.gmra.mxu0 %v1805
        %v2078 = vpop.f32.mrf.mxu0
        %v2079 = vadd.f32 %v1860, %v2078
        %v2080 = vpop.f32.mrf.mxu0
        %2081 = vmatprep.mubr.f32.mxu0 0.0
        %2082 = vmatmul.mubr.f32.gmra.mxu0 %v1806
        %v2083 = vpop.f32.mrf.mxu0
        %v2084 = vadd.f32 %v1860, %v2083
        %v2085 = vpop.f32.mrf.mxu0
        %2086 = vdwg.mxu0
        %v2087 = vmul.f32 %v1929, 0.5
        %v2088 = vmul.f32 %v1934, 0.5
        %v2089 = vmul.f32 %v1939, 0.5
        %v2090 = vmul.f32 %v1944, 0.5
        %v2091 = vmul.f32 %v1949, 0.5
        %v2092 = vmul.f32 %v1954, 0.5
        %v2093 = vmul.f32 %v1959, 0.5
        %v2094 = vmul.f32 %v1964, 0.5
        %v2095 = vmul.f32 %v1969, 0.5
        %v2096 = vmul.f32 %v1974, 0.5
        %v2097 = vmul.f32 %v1979, 0.5
        %v2098 = vmul.f32 %v1984, 0.5
        %v2099 = vmul.f32 %v1989, 0.5
        %v2100 = vmul.f32 %v1994, 0.5
        %v2101 = vmul.f32 %v1999, 0.5
        %v2102 = vmul.f32 %v2004, 0.5
        %v2103 = vmul.f32 %v2009, 0.5
        %v2104 = vmul.f32 %v2014, 0.5
        %v2105 = vmul.f32 %v2019, 0.5
        %v2106 = vmul.f32 %v2024, 0.5
        %v2107 = vmul.f32 %v2029, 0.5
        %v2108 = vmul.f32 %v2034, 0.5
        %v2109 = vmul.f32 %v2039, 0.5
        %v2110 = vmul.f32 %v2044, 0.5
        %v2111 = vmul.f32 %v2049, 0.5
        %v2112 = vmul.f32 %v2054, 0.5
        %v2113 = vmul.f32 %v2059, 0.5
        %v2114 = vmul.f32 %v2064, 0.5
        %v2115 = vmul.f32 %v2069, 0.5
        %v2116 = vmul.f32 %v2074, 0.5
        %v2117 = vmul.f32 %v2079, 0.5
        %v2118 = vmul.f32 %v2084, 0.5
        %v2119 = vmul.f32 %v1929, 0.70710677
        %v2120 = vmul.f32 %v1934, 0.70710677
        %v2121 = vmul.f32 %v1939, 0.70710677
        %v2122 = vmul.f32 %v1944, 0.70710677
        %v2123 = vmul.f32 %v1949, 0.70710677
        %v2124 = vmul.f32 %v1954, 0.70710677
        %v2125 = vmul.f32 %v1959, 0.70710677
        %v2126 = vmul.f32 %v1964, 0.70710677
        %v2127 = vmul.f32 %v1969, 0.70710677
        %v2128 = vmul.f32 %v1974, 0.70710677
        %v2129 = vmul.f32 %v1979, 0.70710677
        %v2130 = vmul.f32 %v1984, 0.70710677
        %v2131 = vmul.f32 %v1989, 0.70710677
        %v2132 = vmul.f32 %v1994, 0.70710677
        %v2133 = vmul.f32 %v1999, 0.70710677
        %v2134 = vmul.f32 %v2004, 0.70710677
        %v2135 = vmul.f32 %v2009, 0.70710677
        %v2136 = vmul.f32 %v2014, 0.70710677
        %v2137 = vmul.f32 %v2019, 0.70710677
        %v2138 = vmul.f32 %v2024, 0.70710677
        %v2139 = vmul.f32 %v2029, 0.70710677
        %v2140 = vmul.f32 %v2034, 0.70710677
        %v2141 = vmul.f32 %v2039, 0.70710677
        %v2142 = vmul.f32 %v2044, 0.70710677
        %v2143 = vmul.f32 %v2049, 0.70710677
        %v2144 = vmul.f32 %v2054, 0.70710677
        %v2145 = vmul.f32 %v2059, 0.70710677
        %v2146 = vmul.f32 %v2064, 0.70710677
        %v2147 = vmul.f32 %v2069, 0.70710677
        %v2148 = vmul.f32 %v2074, 0.70710677
        %v2149 = vmul.f32 %v2079, 0.70710677
        %v2150 = vmul.f32 %v2084, 0.70710677
        %v2151 = verf.f32.pop %v2119
        %v2152 = verf.f32.pop %v2120
        %v2153 = verf.f32.pop %v2121
        %v2154 = verf.f32.pop %v2122
        %v2155 = verf.f32.pop %v2123
        %v2156 = verf.f32.pop %v2124
        %v2157 = verf.f32.pop %v2125
        %v2158 = verf.f32.pop %v2126
        %v2159 = verf.f32.pop %v2127
        %v2160 = verf.f32.pop %v2128
        %v2161 = verf.f32.pop %v2129
        %v2162 = verf.f32.pop %v2130
        %v2163 = verf.f32.pop %v2131
        %v2164 = verf.f32.pop %v2132
        %v2165 = verf.f32.pop %v2133
        %v2166 = verf.f32.pop %v2134
        %v2167 = verf.f32.pop %v2135
        %v2168 = verf.f32.pop %v2136
        %v2169 = verf.f32.pop %v2137
        %v2170 = verf.f32.pop %v2138
        %v2171 = verf.f32.pop %v2139
        %v2172 = verf.f32.pop %v2140
        %v2173 = verf.f32.pop %v2141
        %v2174 = verf.f32.pop %v2142
        %v2175 = verf.f32.pop %v2143
        %v2176 = verf.f32.pop %v2144
        %v2177 = verf.f32.pop %v2145
        %v2178 = verf.f32.pop %v2146
        %v2179 = verf.f32.pop %v2147
        %v2180 = verf.f32.pop %v2148
        %v2181 = verf.f32.pop %v2149
        %v2182 = verf.f32.pop %v2150
        %v2183 = vadd.f32 %v2151, 1.0
        %v2184 = vadd.f32 %v2152, 1.0
        %v2185 = vadd.f32 %v2153, 1.0
        %v2186 = vadd.f32 %v2154, 1.0
        %v2187 = vadd.f32 %v2155, 1.0
        %v2188 = vadd.f32 %v2156, 1.0
        %v2189 = vadd.f32 %v2157, 1.0
        %v2190 = vadd.f32 %v2158, 1.0
        %v2191 = vadd.f32 %v2159, 1.0
        %v2192 = vadd.f32 %v2160, 1.0
        %v2193 = vadd.f32 %v2161, 1.0
        %v2194 = vadd.f32 %v2162, 1.0
        %v2195 = vadd.f32 %v2163, 1.0
        %v2196 = vadd.f32 %v2164, 1.0
        %v2197 = vadd.f32 %v2165, 1.0
        %v2198 = vadd.f32 %v2166, 1.0
        %v2199 = vadd.f32 %v2167, 1.0
        %v2200 = vadd.f32 %v2168, 1.0
        %v2201 = vadd.f32 %v2169, 1.0
        %v2202 = vadd.f32 %v2170, 1.0
        %v2203 = vadd.f32 %v2171, 1.0
        %v2204 = vadd.f32 %v2172, 1.0
        %v2205 = vadd.f32 %v2173, 1.0
        %v2206 = vadd.f32 %v2174, 1.0
        %v2207 = vadd.f32 %v2175, 1.0
        %v2208 = vadd.f32 %v2176, 1.0
        %v2209 = vadd.f32 %v2177, 1.0
        %v2210 = vadd.f32 %v2178, 1.0
        %v2211 = vadd.f32 %v2179, 1.0
        %v2212 = vadd.f32 %v2180, 1.0
        %v2213 = vadd.f32 %v2181, 1.0
        %v2214 = vadd.f32 %v2182, 1.0
        %v2215 = vmul.f32 %v2087, %v2183
        %v2216 = vmul.f32 %v2088, %v2184
        %v2217 = vmul.f32 %v2089, %v2185
        %v2218 = vmul.f32 %v2090, %v2186
        %v2219 = vmul.f32 %v2091, %v2187
        %v2220 = vmul.f32 %v2092, %v2188
        %v2221 = vmul.f32 %v2093, %v2189
        %v2222 = vmul.f32 %v2094, %v2190
        %v2223 = vmul.f32 %v2095, %v2191
        %v2224 = vmul.f32 %v2096, %v2192
        %v2225 = vmul.f32 %v2097, %v2193
        %v2226 = vmul.f32 %v2098, %v2194
        %v2227 = vmul.f32 %v2099, %v2195
        %v2228 = vmul.f32 %v2100, %v2196
        %v2229 = vmul.f32 %v2101, %v2197
        %v2230 = vmul.f32 %v2102, %v2198
        %v2231 = vmul.f32 %v2103, %v2199
        %v2232 = vmul.f32 %v2104, %v2200
        %v2233 = vmul.f32 %v2105, %v2201
        %v2234 = vmul.f32 %v2106, %v2202
        %v2235 = vmul.f32 %v2107, %v2203
        %v2236 = vmul.f32 %v2108, %v2204
        %v2237 = vmul.f32 %v2109, %v2205
        %v2238 = vmul.f32 %v2110, %v2206
        %v2239 = vmul.f32 %v2111, %v2207
        %v2240 = vmul.f32 %v2112, %v2208
        %v2241 = vmul.f32 %v2113, %v2209
        %v2242 = vmul.f32 %v2114, %v2210
        %v2243 = vmul.f32 %v2115, %v2211
        %v2244 = vmul.f32 %v2116, %v2212
        %v2245 = vmul.f32 %v2117, %v2213
        %v2246 = vmul.f32 %v2118, %v2214
        %v2248 = vlaneseq
        %v2249 = vshrl.u32 %v2248, 7
        %v2250 = vsub.s32 0, %v2249
        %v2251 = vrot.slane %v1836, %v2250
        %v2254 = vsel %vm833, %v2215, 0
        %v2257 = vsel %vm833, %v2216, 0
        %v2260 = vsel %vm833, %v2217, 0
        %v2263 = vsel %vm833, %v2218, 0
        %v2266 = vsel %vm833, %v2219, 0
        %v2269 = vsel %vm833, %v2220, 0
        %v2272 = vsel %vm833, %v2221, 0
        %v2275 = vsel %vm833, %v2222, 0
        %v2278 = vsel %vm833, %v2223, 0
        %v2281 = vsel %vm833, %v2224, 0
        %v2284 = vsel %vm833, %v2225, 0
        %v2287 = vsel %vm833, %v2226, 0
        %v2290 = vsel %vm833, %v2227, 0
        %v2293 = vsel %vm833, %v2228, 0
        %v2296 = vsel %vm833, %v2229, 0
        %v2299 = vsel %vm833, %v2230, 0
        %v2302 = vsel %vm833, %v2231, 0
        %v2305 = vsel %vm833, %v2232, 0
        %v2308 = vsel %vm833, %v2233, 0
        %v2311 = vsel %vm833, %v2234, 0
        %v2314 = vsel %vm833, %v2235, 0
        %v2317 = vsel %vm833, %v2236, 0
        %v2320 = vsel %vm833, %v2237, 0
        %v2323 = vsel %vm833, %v2238, 0
        %v2326 = vsel %vm833, %v2239, 0
        %v2329 = vsel %vm833, %v2240, 0
        %v2332 = vsel %vm833, %v2241, 0
        %v2335 = vsel %vm833, %v2242, 0
        %v2338 = vsel %vm833, %v2243, 0
        %v2341 = vsel %vm833, %v2244, 0
        %v2344 = vsel %vm833, %v2245, 0
        %v2347 = vsel %vm833, %v2246, 0
        %2349 = vmatprep.subr.mxu0 0.0
        %2350 = vmatpush1.msra.mxu0 0.0
        %2351 = vmatprep.subr.mxu0 0.0
        %2352 = vmatpush1.msra.mxu0 0.0
        %2353 = vmatprep.subr.mxu0 0.0
        %2354 = vmatpush1.msra.mxu0 0.0
        %2355 = vmatprep.subr.mxu0 0.0
        %2356 = vmatpush1.msra.mxu0 0.0
        %2357 = vmatprep.subr.mxu0 0.0
        %2358 = vmatpush1.msra.mxu0 0.0
        %2359 = vmatprep.subr.mxu0 0.0
        %2360 = vmatpush1.msra.mxu0 0.0
        %2361 = vmatprep.subr.mxu0 0.0
        %2362 = vmatpush1.msra.mxu0 0.0
        %2363 = vmatprep.subr.mxu0 0.0
        %2364 = vmatpush1.msra.mxu0 0.0
        %2365 = vmatprep.subr.mxu0 0.0
        %2366 = vmatpush1.msra.mxu0 %v1834
        %2367 = vmatprep.subr.mxu0 0.0
        %2368 = vmatpush1.msra.mxu0 %v1833
        %2369 = vmatprep.subr.mxu0 0.0
        %2370 = vmatpush1.msra.mxu0 %v1832
        %2371 = vmatprep.subr.mxu0 0.0
        %2372 = vmatpush1.msra.mxu0 %v1831
        %2373 = vmatprep.subr.mxu0 0.0
        %2374 = vmatpush1.msra.mxu0 %v1830
        %2375 = vmatprep.subr.mxu0 0.0
        %2376 = vmatpush1.msra.mxu0 %v1829
        %2377 = vmatprep.subr.mxu0 0.0
        %2378 = vmatpush1.msra.mxu0 %v1828
        %2379 = vmatprep.subr.mxu0 0.0
        %2380 = vmatpush1.msra.mxu0 %v1827
        %2381 = vmatprep.subr.mxu0 0.0
        %2382 = vmatpush2.msra.mxu0 0.0
        %2383 = vmatprep.subr.mxu0 0.0
        %2384 = vmatpush2.msra.mxu0 0.0
        %2385 = vmatprep.subr.mxu0 0.0
        %2386 = vmatpush2.msra.mxu0 0.0
        %2387 = vmatprep.subr.mxu0 0.0
        %2388 = vmatpush2.msra.mxu0 0.0
        %2389 = vmatprep.subr.mxu0 0.0
        %2390 = vmatpush2.msra.mxu0 0.0
        %2391 = vmatprep.subr.mxu0 0.0
        %2392 = vmatpush2.msra.mxu0 0.0
        %2393 = vmatprep.subr.mxu0 0.0
        %2394 = vmatpush2.msra.mxu0 0.0
        %2395 = vmatprep.subr.mxu0 0.0
        %2396 = vmatpush2.msra.mxu0 0.0
        %2397 = vmatprep.subr.mxu0 0.0
        %2398 = vmatpush2.msra.mxu0 0.0
        %2399 = vmatprep.subr.mxu0 0.0
        %2400 = vmatpush2.msra.mxu0 0.0
        %2401 = vmatprep.subr.mxu0 0.0
        %2402 = vmatpush2.msra.mxu0 0.0
        %2403 = vmatprep.subr.mxu0 0.0
        %2404 = vmatpush2.msra.mxu0 0.0
        %2405 = vmatprep.subr.mxu0 0.0
        %2406 = vmatpush2.msra.mxu0 0.0
        %2407 = vmatprep.subr.mxu0 0.0
        %2408 = vmatpush2.msra.mxu0 0.0
        %2409 = vmatprep.subr.mxu0 0.0
        %2410 = vmatpush2.msra.mxu0 0.0
        %2411 = vmatprep.subr.mxu0 0.0
        %2412 = vmatpush2.msra.mxu0 0.0
        %2413 = vmatprep.mubr.f32.mxu0 0.0
        %2414 = vmatmul.mubr.f32.gmra.mxu0 %v2254
        %v2415 = vpop.f32.mrf.mxu0
        %v2416 = vadd.f32 %v2251, %v2415
        %v2417 = vpop.f32.mrf.mxu0
        %2418 = vmatprep.mubr.f32.mxu0 0.0
        %2419 = vmatmul.mubr.f32.gmra.mxu0 %v2257
        %v2420 = vpop.f32.mrf.mxu0
        %v2421 = vadd.f32 %v2251, %v2420
        %v2422 = vpop.f32.mrf.mxu0
        %2423 = vmatprep.mubr.f32.mxu0 0.0
        %2424 = vmatmul.mubr.f32.gmra.mxu0 %v2260
        %v2425 = vpop.f32.mrf.mxu0
        %v2426 = vadd.f32 %v2251, %v2425
        %v2427 = vpop.f32.mrf.mxu0
        %2428 = vmatprep.mubr.f32.mxu0 0.0
        %2429 = vmatmul.mubr.f32.gmra.mxu0 %v2263
        %v2430 = vpop.f32.mrf.mxu0
        %v2431 = vadd.f32 %v2251, %v2430
        %v2432 = vpop.f32.mrf.mxu0
        %2433 = vmatprep.mubr.f32.mxu0 0.0
        %2434 = vmatmul.mubr.f32.gmra.mxu0 %v2266
        %v2435 = vpop.f32.mrf.mxu0
        %v2436 = vadd.f32 %v2251, %v2435
        %v2437 = vpop.f32.mrf.mxu0
        %2438 = vmatprep.mubr.f32.mxu0 0.0
        %2439 = vmatmul.mubr.f32.gmra.mxu0 %v2269
        %v2440 = vpop.f32.mrf.mxu0
        %v2441 = vadd.f32 %v2251, %v2440
        %v2442 = vpop.f32.mrf.mxu0
        %2443 = vmatprep.mubr.f32.mxu0 0.0
        %2444 = vmatmul.mubr.f32.gmra.mxu0 %v2272
        %v2445 = vpop.f32.mrf.mxu0
        %v2446 = vadd.f32 %v2251, %v2445
        %v2447 = vpop.f32.mrf.mxu0
        %2448 = vmatprep.mubr.f32.mxu0 0.0
        %2449 = vmatmul.mubr.f32.gmra.mxu0 %v2275
        %v2450 = vpop.f32.mrf.mxu0
        %v2451 = vadd.f32 %v2251, %v2450
        %v2452 = vpop.f32.mrf.mxu0
        %2453 = vmatprep.mubr.f32.mxu0 0.0
        %2454 = vmatmul.mubr.f32.gmra.mxu0 %v2278
        %v2455 = vpop.f32.mrf.mxu0
        %v2456 = vadd.f32 %v2251, %v2455
        %v2457 = vpop.f32.mrf.mxu0
        %2458 = vmatprep.mubr.f32.mxu0 0.0
        %2459 = vmatmul.mubr.f32.gmra.mxu0 %v2281
        %v2460 = vpop.f32.mrf.mxu0
        %v2461 = vadd.f32 %v2251, %v2460
        %v2462 = vpop.f32.mrf.mxu0
        %2463 = vmatprep.mubr.f32.mxu0 0.0
        %2464 = vmatmul.mubr.f32.gmra.mxu0 %v2284
        %v2465 = vpop.f32.mrf.mxu0
        %v2466 = vadd.f32 %v2251, %v2465
        %v2467 = vpop.f32.mrf.mxu0
        %2468 = vmatprep.mubr.f32.mxu0 0.0
        %2469 = vmatmul.mubr.f32.gmra.mxu0 %v2287
        %v2470 = vpop.f32.mrf.mxu0
        %v2471 = vadd.f32 %v2251, %v2470
        %v2472 = vpop.f32.mrf.mxu0
        %2473 = vmatprep.mubr.f32.mxu0 0.0
        %2474 = vmatmul.mubr.f32.gmra.mxu0 %v2290
        %v2475 = vpop.f32.mrf.mxu0
        %v2476 = vadd.f32 %v2251, %v2475
        %v2477 = vpop.f32.mrf.mxu0
        %2478 = vmatprep.mubr.f32.mxu0 0.0
        %2479 = vmatmul.mubr.f32.gmra.mxu0 %v2293
        %v2480 = vpop.f32.mrf.mxu0
        %v2481 = vadd.f32 %v2251, %v2480
        %v2482 = vpop.f32.mrf.mxu0
        %2483 = vmatprep.mubr.f32.mxu0 0.0
        %2484 = vmatmul.mubr.f32.gmra.mxu0 %v2296
        %v2485 = vpop.f32.mrf.mxu0
        %v2486 = vadd.f32 %v2251, %v2485
        %v2487 = vpop.f32.mrf.mxu0
        %2488 = vmatprep.mubr.f32.mxu0 0.0
        %2489 = vmatmul.mubr.f32.gmra.mxu0 %v2299
        %v2490 = vpop.f32.mrf.mxu0
        %v2491 = vadd.f32 %v2251, %v2490
        %v2492 = vpop.f32.mrf.mxu0
        %2493 = vmatprep.mubr.f32.mxu0 0.0
        %2494 = vmatmul.mubr.f32.gmra.mxu0 %v2302
        %v2495 = vpop.f32.mrf.mxu0
        %v2496 = vadd.f32 %v2251, %v2495
        %v2497 = vpop.f32.mrf.mxu0
        %2498 = vmatprep.mubr.f32.mxu0 0.0
        %2499 = vmatmul.mubr.f32.gmra.mxu0 %v2305
        %v2500 = vpop.f32.mrf.mxu0
        %v2501 = vadd.f32 %v2251, %v2500
        %v2502 = vpop.f32.mrf.mxu0
        %2503 = vmatprep.mubr.f32.mxu0 0.0
        %2504 = vmatmul.mubr.f32.gmra.mxu0 %v2308
        %v2505 = vpop.f32.mrf.mxu0
        %v2506 = vadd.f32 %v2251, %v2505
        %v2507 = vpop.f32.mrf.mxu0
        %2508 = vmatprep.mubr.f32.mxu0 0.0
        %2509 = vmatmul.mubr.f32.gmra.mxu0 %v2311
        %v2510 = vpop.f32.mrf.mxu0
        %v2511 = vadd.f32 %v2251, %v2510
        %v2512 = vpop.f32.mrf.mxu0
        %2513 = vmatprep.mubr.f32.mxu0 0.0
        %2514 = vmatmul.mubr.f32.gmra.mxu0 %v2314
        %v2515 = vpop.f32.mrf.mxu0
        %v2516 = vadd.f32 %v2251, %v2515
        %v2517 = vpop.f32.mrf.mxu0
        %2518 = vmatprep.mubr.f32.mxu0 0.0
        %2519 = vmatmul.mubr.f32.gmra.mxu0 %v2317
        %v2520 = vpop.f32.mrf.mxu0
        %v2521 = vadd.f32 %v2251, %v2520
        %v2522 = vpop.f32.mrf.mxu0
        %2523 = vmatprep.mubr.f32.mxu0 0.0
        %2524 = vmatmul.mubr.f32.gmra.mxu0 %v2320
        %v2525 = vpop.f32.mrf.mxu0
        %v2526 = vadd.f32 %v2251, %v2525
        %v2527 = vpop.f32.mrf.mxu0
        %2528 = vmatprep.mubr.f32.mxu0 0.0
        %2529 = vmatmul.mubr.f32.gmra.mxu0 %v2323
        %v2530 = vpop.f32.mrf.mxu0
        %v2531 = vadd.f32 %v2251, %v2530
        %v2532 = vpop.f32.mrf.mxu0
        %2533 = vmatprep.mubr.f32.mxu0 0.0
        %2534 = vmatmul.mubr.f32.gmra.mxu0 %v2326
        %v2535 = vpop.f32.mrf.mxu0
        %v2536 = vadd.f32 %v2251, %v2535
        %v2537 = vpop.f32.mrf.mxu0
        %2538 = vmatprep.mubr.f32.mxu0 0.0
        %2539 = vmatmul.mubr.f32.gmra.mxu0 %v2329
        %v2540 = vpop.f32.mrf.mxu0
        %v2541 = vadd.f32 %v2251, %v2540
        %v2542 = vpop.f32.mrf.mxu0
        %2543 = vmatprep.mubr.f32.mxu0 0.0
        %2544 = vmatmul.mubr.f32.gmra.mxu0 %v2332
        %v2545 = vpop.f32.mrf.mxu0
        %v2546 = vadd.f32 %v2251, %v2545
        %v2547 = vpop.f32.mrf.mxu0
        %2548 = vmatprep.mubr.f32.mxu0 0.0
        %2549 = vmatmul.mubr.f32.gmra.mxu0 %v2335
        %v2550 = vpop.f32.mrf.mxu0
        %v2551 = vadd.f32 %v2251, %v2550
        %v2552 = vpop.f32.mrf.mxu0
        %2553 = vmatprep.mubr.f32.mxu0 0.0
        %2554 = vmatmul.mubr.f32.gmra.mxu0 %v2338
        %v2555 = vpop.f32.mrf.mxu0
        %v2556 = vadd.f32 %v2251, %v2555
        %v2557 = vpop.f32.mrf.mxu0
        %2558 = vmatprep.mubr.f32.mxu0 0.0
        %2559 = vmatmul.mubr.f32.gmra.mxu0 %v2341
        %v2560 = vpop.f32.mrf.mxu0
        %v2561 = vadd.f32 %v2251, %v2560
        %v2562 = vpop.f32.mrf.mxu0
        %2563 = vmatprep.mubr.f32.mxu0 0.0
        %2564 = vmatmul.mubr.f32.gmra.mxu0 %v2344
        %v2565 = vpop.f32.mrf.mxu0
        %v2566 = vadd.f32 %v2251, %v2565
        %v2567 = vpop.f32.mrf.mxu0
        %2568 = vmatprep.mubr.f32.mxu0 0.0
        %2569 = vmatmul.mubr.f32.gmra.mxu0 %v2347
        %v2570 = vpop.f32.mrf.mxu0
        %v2571 = vadd.f32 %v2251, %v2570
        %v2572 = vpop.f32.mrf.mxu0
        %2573 = vdwg.mxu0
        %v2574 = vmul.f32 %v2416, 0.5
        %v2575 = vmul.f32 %v2421, 0.5
        %v2576 = vmul.f32 %v2426, 0.5
        %v2577 = vmul.f32 %v2431, 0.5
        %v2578 = vmul.f32 %v2436, 0.5
        %v2579 = vmul.f32 %v2441, 0.5
        %v2580 = vmul.f32 %v2446, 0.5
        %v2581 = vmul.f32 %v2451, 0.5
        %v2582 = vmul.f32 %v2456, 0.5
        %v2583 = vmul.f32 %v2461, 0.5
        %v2584 = vmul.f32 %v2466, 0.5
        %v2585 = vmul.f32 %v2471, 0.5
        %v2586 = vmul.f32 %v2476, 0.5
        %v2587 = vmul.f32 %v2481, 0.5
        %v2588 = vmul.f32 %v2486, 0.5
        %v2589 = vmul.f32 %v2491, 0.5
        %v2590 = vmul.f32 %v2496, 0.5
        %v2591 = vmul.f32 %v2501, 0.5
        %v2592 = vmul.f32 %v2506, 0.5
        %v2593 = vmul.f32 %v2511, 0.5
        %v2594 = vmul.f32 %v2516, 0.5
        %v2595 = vmul.f32 %v2521, 0.5
        %v2596 = vmul.f32 %v2526, 0.5
        %v2597 = vmul.f32 %v2531, 0.5
        %v2598 = vmul.f32 %v2536, 0.5
        %v2599 = vmul.f32 %v2541, 0.5
        %v2600 = vmul.f32 %v2546, 0.5
        %v2601 = vmul.f32 %v2551, 0.5
        %v2602 = vmul.f32 %v2556, 0.5
        %v2603 = vmul.f32 %v2561, 0.5
        %v2604 = vmul.f32 %v2566, 0.5
        %v2605 = vmul.f32 %v2571, 0.5
        %v2606 = vmul.f32 %v2416, 0.70710677
        %v2607 = vmul.f32 %v2421, 0.70710677
        %v2608 = vmul.f32 %v2426, 0.70710677
        %v2609 = vmul.f32 %v2431, 0.70710677
        %v2610 = vmul.f32 %v2436, 0.70710677
        %v2611 = vmul.f32 %v2441, 0.70710677
        %v2612 = vmul.f32 %v2446, 0.70710677
        %v2613 = vmul.f32 %v2451, 0.70710677
        %v2614 = vmul.f32 %v2456, 0.70710677
        %v2615 = vmul.f32 %v2461, 0.70710677
        %v2616 = vmul.f32 %v2466, 0.70710677
        %v2617 = vmul.f32 %v2471, 0.70710677
        %v2618 = vmul.f32 %v2476, 0.70710677
        %v2619 = vmul.f32 %v2481, 0.70710677
        %v2620 = vmul.f32 %v2486, 0.70710677
        %v2621 = vmul.f32 %v2491, 0.70710677
        %v2622 = vmul.f32 %v2496, 0.70710677
        %v2623 = vmul.f32 %v2501, 0.70710677
        %v2624 = vmul.f32 %v2506, 0.70710677
        %v2625 = vmul.f32 %v2511, 0.70710677
        %v2626 = vmul.f32 %v2516, 0.70710677
        %v2627 = vmul.f32 %v2521, 0.70710677
        %v2628 = vmul.f32 %v2526, 0.70710677
        %v2629 = vmul.f32 %v2531, 0.70710677
        %v2630 = vmul.f32 %v2536, 0.70710677
        %v2631 = vmul.f32 %v2541, 0.70710677
        %v2632 = vmul.f32 %v2546, 0.70710677
        %v2633 = vmul.f32 %v2551, 0.70710677
        %v2634 = vmul.f32 %v2556, 0.70710677
        %v2635 = vmul.f32 %v2561, 0.70710677
        %v2636 = vmul.f32 %v2566, 0.70710677
        %v2637 = vmul.f32 %v2571, 0.70710677
        %v2638 = verf.f32.pop %v2606
        %v2639 = verf.f32.pop %v2607
        %v2640 = verf.f32.pop %v2608
        %v2641 = verf.f32.pop %v2609
        %v2642 = verf.f32.pop %v2610
        %v2643 = verf.f32.pop %v2611
        %v2644 = verf.f32.pop %v2612
        %v2645 = verf.f32.pop %v2613
        %v2646 = verf.f32.pop %v2614
        %v2647 = verf.f32.pop %v2615
        %v2648 = verf.f32.pop %v2616
        %v2649 = verf.f32.pop %v2617
        %v2650 = verf.f32.pop %v2618
        %v2651 = verf.f32.pop %v2619
        %v2652 = verf.f32.pop %v2620
        %v2653 = verf.f32.pop %v2621
        %v2654 = verf.f32.pop %v2622
        %v2655 = verf.f32.pop %v2623
        %v2656 = verf.f32.pop %v2624
        %v2657 = verf.f32.pop %v2625
        %v2658 = verf.f32.pop %v2626
        %v2659 = verf.f32.pop %v2627
        %v2660 = verf.f32.pop %v2628
        %v2661 = verf.f32.pop %v2629
        %v2662 = verf.f32.pop %v2630
        %v2663 = verf.f32.pop %v2631
        %v2664 = verf.f32.pop %v2632
        %v2665 = verf.f32.pop %v2633
        %v2666 = verf.f32.pop %v2634
        %v2667 = verf.f32.pop %v2635
        %v2668 = verf.f32.pop %v2636
        %v2669 = verf.f32.pop %v2637
        %v2670 = vadd.f32 %v2638, 1.0
        %v2671 = vadd.f32 %v2639, 1.0
        %v2672 = vadd.f32 %v2640, 1.0
        %v2673 = vadd.f32 %v2641, 1.0
        %v2674 = vadd.f32 %v2642, 1.0
        %v2675 = vadd.f32 %v2643, 1.0
        %v2676 = vadd.f32 %v2644, 1.0
        %v2677 = vadd.f32 %v2645, 1.0
        %v2678 = vadd.f32 %v2646, 1.0
        %v2679 = vadd.f32 %v2647, 1.0
        %v2680 = vadd.f32 %v2648, 1.0
        %v2681 = vadd.f32 %v2649, 1.0
        %v2682 = vadd.f32 %v2650, 1.0
        %v2683 = vadd.f32 %v2651, 1.0
        %v2684 = vadd.f32 %v2652, 1.0
        %v2685 = vadd.f32 %v2653, 1.0
        %v2686 = vadd.f32 %v2654, 1.0
        %v2687 = vadd.f32 %v2655, 1.0
        %v2688 = vadd.f32 %v2656, 1.0
        %v2689 = vadd.f32 %v2657, 1.0
        %v2690 = vadd.f32 %v2658, 1.0
        %v2691 = vadd.f32 %v2659, 1.0
        %v2692 = vadd.f32 %v2660, 1.0
        %v2693 = vadd.f32 %v2661, 1.0
        %v2694 = vadd.f32 %v2662, 1.0
        %v2695 = vadd.f32 %v2663, 1.0
        %v2696 = vadd.f32 %v2664, 1.0
        %v2697 = vadd.f32 %v2665, 1.0
        %v2698 = vadd.f32 %v2666, 1.0
        %v2699 = vadd.f32 %v2667, 1.0
        %v2700 = vadd.f32 %v2668, 1.0
        %v2701 = vadd.f32 %v2669, 1.0
        %v2702 = vmul.f32 %v2574, %v2670
        %v2703 = vmul.f32 %v2575, %v2671
        %v2704 = vmul.f32 %v2576, %v2672
        %v2705 = vmul.f32 %v2577, %v2673
        %v2706 = vmul.f32 %v2578, %v2674
        %v2707 = vmul.f32 %v2579, %v2675
        %v2708 = vmul.f32 %v2580, %v2676
        %v2709 = vmul.f32 %v2581, %v2677
        %v2710 = vmul.f32 %v2582, %v2678
        %v2711 = vmul.f32 %v2583, %v2679
        %v2712 = vmul.f32 %v2584, %v2680
        %v2713 = vmul.f32 %v2585, %v2681
        %v2714 = vmul.f32 %v2586, %v2682
        %v2715 = vmul.f32 %v2587, %v2683
        %v2716 = vmul.f32 %v2588, %v2684
        %v2717 = vmul.f32 %v2589, %v2685
        %v2718 = vmul.f32 %v2590, %v2686
        %v2719 = vmul.f32 %v2591, %v2687
        %v2720 = vmul.f32 %v2592, %v2688
        %v2721 = vmul.f32 %v2593, %v2689
        %v2722 = vmul.f32 %v2594, %v2690
        %v2723 = vmul.f32 %v2595, %v2691
        %v2724 = vmul.f32 %v2596, %v2692
        %v2725 = vmul.f32 %v2597, %v2693
        %v2726 = vmul.f32 %v2598, %v2694
        %v2727 = vmul.f32 %v2599, %v2695
        %v2728 = vmul.f32 %v2600, %v2696
        %v2729 = vmul.f32 %v2601, %v2697
        %v2730 = vmul.f32 %v2602, %v2698
        %v2731 = vmul.f32 %v2603, %v2699
        %v2732 = vmul.f32 %v2604, %v2700
        %v2733 = vmul.f32 %v2605, %v2701
        %v2735 = vlaneseq
        %v2736 = vshrl.u32 %v2735, 7
        %v2737 = vsub.s32 0, %v2736
        %v2738 = vrot.slane %v1855, %v2737
        %v2739 = vlaneseq
        %v2740 = vshrl.u32 %v2739, 7
        %v2741 = vsub.s32 1, %v2740
        %v2742 = vrot.slane %v1855, %v2741
        %v2746 = vsel %vm833, %v2702, 0
        %v2749 = vsel %vm833, %v2703, 0
        %v2752 = vsel %vm833, %v2704, 0
        %v2755 = vsel %vm833, %v2705, 0
        %v2758 = vsel %vm833, %v2706, 0
        %v2761 = vsel %vm833, %v2707, 0
        %v2764 = vsel %vm833, %v2708, 0
        %v2767 = vsel %vm833, %v2709, 0
        %v2770 = vsel %vm833, %v2710, 0
        %v2773 = vsel %vm833, %v2711, 0
        %v2776 = vsel %vm833, %v2712, 0
        %v2779 = vsel %vm833, %v2713, 0
        %v2782 = vsel %vm833, %v2714, 0
        %v2785 = vsel %vm833, %v2715, 0
        %v2788 = vsel %vm833, %v2716, 0
        %v2791 = vsel %vm833, %v2717, 0
        %v2794 = vsel %vm833, %v2718, 0
        %v2797 = vsel %vm833, %v2719, 0
        %v2800 = vsel %vm833, %v2720, 0
        %v2803 = vsel %vm833, %v2721, 0
        %v2806 = vsel %vm833, %v2722, 0
        %v2809 = vsel %vm833, %v2723, 0
        %v2812 = vsel %vm833, %v2724, 0
        %v2815 = vsel %vm833, %v2725, 0
        %v2818 = vsel %vm833, %v2726, 0
        %v2821 = vsel %vm833, %v2727, 0
        %v2824 = vsel %vm833, %v2728, 0
        %v2827 = vsel %vm833, %v2729, 0
        %v2830 = vsel %vm833, %v2730, 0
        %v2833 = vsel %vm833, %v2731, 0
        %v2836 = vsel %vm833, %v2732, 0
        %v2839 = vsel %vm833, %v2733, 0
        %2841 = vmatprep.subr.mxu0 0.0
        %2842 = vmatpush1.msra.mxu0 0.0
        %2843 = vmatprep.subr.mxu0 0.0
        %2844 = vmatpush1.msra.mxu0 0.0
        %2845 = vmatprep.subr.mxu0 0.0
        %2846 = vmatpush1.msra.mxu0 0.0
        %2847 = vmatprep.subr.mxu0 0.0
        %2848 = vmatpush1.msra.mxu0 0.0
        %2849 = vmatprep.subr.mxu0 0.0
        %2850 = vmatpush1.msra.mxu0 0.0
        %2851 = vmatprep.subr.mxu0 0.0
        %2852 = vmatpush1.msra.mxu0 0.0
        %2853 = vmatprep.subr.mxu0 0.0
        %2854 = vmatpush1.msra.mxu0 0.0
        %2855 = vmatprep.subr.mxu0 0.0
        %2856 = vmatpush1.msra.mxu0 0.0
        %2857 = vmatprep.subr.mxu0 %v1853
        %2858 = vmatpush1.msra.mxu0 %v1852
        %2859 = vmatprep.subr.mxu0 %v1851
        %2860 = vmatpush1.msra.mxu0 %v1850
        %2861 = vmatprep.subr.mxu0 %v1849
        %2862 = vmatpush1.msra.mxu0 %v1848
        %2863 = vmatprep.subr.mxu0 %v1847
        %2864 = vmatpush1.msra.mxu0 %v1846
        %2865 = vmatprep.subr.mxu0 %v1845
        %2866 = vmatpush1.msra.mxu0 %v1844
        %2867 = vmatprep.subr.mxu0 %v1843
        %2868 = vmatpush1.msra.mxu0 %v1842
        %2869 = vmatprep.subr.mxu0 %v1841
        %2870 = vmatpush1.msra.mxu0 %v1840
        %2871 = vmatprep.subr.mxu0 %v1839
        %2872 = vmatpush1.msra.mxu0 %v1838
        %2873 = vmatprep.subr.mxu0 0.0
        %2874 = vmatpush2.msra.mxu0 0.0
        %2875 = vmatprep.subr.mxu0 0.0
        %2876 = vmatpush2.msra.mxu0 0.0
        %2877 = vmatprep.subr.mxu0 0.0
        %2878 = vmatpush2.msra.mxu0 0.0
        %2879 = vmatprep.subr.mxu0 0.0
        %2880 = vmatpush2.msra.mxu0 0.0
        %2881 = vmatprep.subr.mxu0 0.0
        %2882 = vmatpush2.msra.mxu0 0.0
        %2883 = vmatprep.subr.mxu0 0.0
        %2884 = vmatpush2.msra.mxu0 0.0
        %2885 = vmatprep.subr.mxu0 0.0
        %2886 = vmatpush2.msra.mxu0 0.0
        %2887 = vmatprep.subr.mxu0 0.0
        %2888 = vmatpush2.msra.mxu0 0.0
        %2889 = vmatprep.subr.mxu0 0.0
        %2890 = vmatpush2.msra.mxu0 0.0
        %2891 = vmatprep.subr.mxu0 0.0
        %2892 = vmatpush2.msra.mxu0 0.0
        %2893 = vmatprep.subr.mxu0 0.0
        %2894 = vmatpush2.msra.mxu0 0.0
        %2895 = vmatprep.subr.mxu0 0.0
        %2896 = vmatpush2.msra.mxu0 0.0
        %2897 = vmatprep.subr.mxu0 0.0
        %2898 = vmatpush2.msra.mxu0 0.0
        %2899 = vmatprep.subr.mxu0 0.0
        %2900 = vmatpush2.msra.mxu0 0.0
        %2901 = vmatprep.subr.mxu0 0.0
        %2902 = vmatpush2.msra.mxu0 0.0
        %2903 = vmatprep.subr.mxu0 0.0
        %2904 = vmatpush2.msra.mxu0 0.0
        %2905 = vmatprep.mubr.f32.mxu0 0.0
        %2906 = vmatmul.mubr.f32.gmra.mxu0 %v2746
        %v2907 = vpop.f32.mrf.mxu0
        %v2908 = vadd.f32 %v2738, %v2907
        %v2909 = vpop.f32.mrf.mxu0
        %v2910 = vadd.f32 %v2742, %v2909
        %2911 = vmatprep.mubr.f32.mxu0 0.0
        %2912 = vmatmul.mubr.f32.gmra.mxu0 %v2749
        %v2913 = vpop.f32.mrf.mxu0
        %v2914 = vadd.f32 %v2738, %v2913
        %v2915 = vpop.f32.mrf.mxu0
        %v2916 = vadd.f32 %v2742, %v2915
        %2917 = vmatprep.mubr.f32.mxu0 0.0
        %2918 = vmatmul.mubr.f32.gmra.mxu0 %v2752
        %v2919 = vpop.f32.mrf.mxu0
        %v2920 = vadd.f32 %v2738, %v2919
        %v2921 = vpop.f32.mrf.mxu0
        %v2922 = vadd.f32 %v2742, %v2921
        %2923 = vmatprep.mubr.f32.mxu0 0.0
        %2924 = vmatmul.mubr.f32.gmra.mxu0 %v2755
        %v2925 = vpop.f32.mrf.mxu0
        %v2926 = vadd.f32 %v2738, %v2925
        %v2927 = vpop.f32.mrf.mxu0
        %v2928 = vadd.f32 %v2742, %v2927
        %2929 = vmatprep.mubr.f32.mxu0 0.0
        %2930 = vmatmul.mubr.f32.gmra.mxu0 %v2758
        %v2931 = vpop.f32.mrf.mxu0
        %v2932 = vadd.f32 %v2738, %v2931
        %v2933 = vpop.f32.mrf.mxu0
        %v2934 = vadd.f32 %v2742, %v2933
        %2935 = vmatprep.mubr.f32.mxu0 0.0
        %2936 = vmatmul.mubr.f32.gmra.mxu0 %v2761
        %v2937 = vpop.f32.mrf.mxu0
        %v2938 = vadd.f32 %v2738, %v2937
        %v2939 = vpop.f32.mrf.mxu0
        %v2940 = vadd.f32 %v2742, %v2939
        %2941 = vmatprep.mubr.f32.mxu0 0.0
        %2942 = vmatmul.mubr.f32.gmra.mxu0 %v2764
        %v2943 = vpop.f32.mrf.mxu0
        %v2944 = vadd.f32 %v2738, %v2943
        %v2945 = vpop.f32.mrf.mxu0
        %v2946 = vadd.f32 %v2742, %v2945
        %2947 = vmatprep.mubr.f32.mxu0 0.0
        %2948 = vmatmul.mubr.f32.gmra.mxu0 %v2767
        %v2949 = vpop.f32.mrf.mxu0
        %v2950 = vadd.f32 %v2738, %v2949
        %v2951 = vpop.f32.mrf.mxu0
        %v2952 = vadd.f32 %v2742, %v2951
        %2953 = vmatprep.mubr.f32.mxu0 0.0
        %2954 = vmatmul.mubr.f32.gmra.mxu0 %v2770
        %v2955 = vpop.f32.mrf.mxu0
        %v2956 = vadd.f32 %v2738, %v2955
        %v2957 = vpop.f32.mrf.mxu0
        %v2958 = vadd.f32 %v2742, %v2957
        %2959 = vmatprep.mubr.f32.mxu0 0.0
        %2960 = vmatmul.mubr.f32.gmra.mxu0 %v2773
        %v2961 = vpop.f32.mrf.mxu0
        %v2962 = vadd.f32 %v2738, %v2961
        %v2963 = vpop.f32.mrf.mxu0
        %v2964 = vadd.f32 %v2742, %v2963
        %2965 = vmatprep.mubr.f32.mxu0 0.0
        %2966 = vmatmul.mubr.f32.gmra.mxu0 %v2776
        %v2967 = vpop.f32.mrf.mxu0
        %v2968 = vadd.f32 %v2738, %v2967
        %v2969 = vpop.f32.mrf.mxu0
        %v2970 = vadd.f32 %v2742, %v2969
        %2971 = vmatprep.mubr.f32.mxu0 0.0
        %2972 = vmatmul.mubr.f32.gmra.mxu0 %v2779
        %v2973 = vpop.f32.mrf.mxu0
        %v2974 = vadd.f32 %v2738, %v2973
        %v2975 = vpop.f32.mrf.mxu0
        %v2976 = vadd.f32 %v2742, %v2975
        %2977 = vmatprep.mubr.f32.mxu0 0.0
        %2978 = vmatmul.mubr.f32.gmra.mxu0 %v2782
        %v2979 = vpop.f32.mrf.mxu0
        %v2980 = vadd.f32 %v2738, %v2979
        %v2981 = vpop.f32.mrf.mxu0
        %v2982 = vadd.f32 %v2742, %v2981
        %2983 = vmatprep.mubr.f32.mxu0 0.0
        %2984 = vmatmul.mubr.f32.gmra.mxu0 %v2785
        %v2985 = vpop.f32.mrf.mxu0
        %v2986 = vadd.f32 %v2738, %v2985
        %v2987 = vpop.f32.mrf.mxu0
        %v2988 = vadd.f32 %v2742, %v2987
        %2989 = vmatprep.mubr.f32.mxu0 0.0
        %2990 = vmatmul.mubr.f32.gmra.mxu0 %v2788
        %v2991 = vpop.f32.mrf.mxu0
        %v2992 = vadd.f32 %v2738, %v2991
        %v2993 = vpop.f32.mrf.mxu0
        %v2994 = vadd.f32 %v2742, %v2993
        %2995 = vmatprep.mubr.f32.mxu0 0.0
        %2996 = vmatmul.mubr.f32.gmra.mxu0 %v2791
        %v2997 = vpop.f32.mrf.mxu0
        %v2998 = vadd.f32 %v2738, %v2997
        %v2999 = vpop.f32.mrf.mxu0
        %v3000 = vadd.f32 %v2742, %v2999
        %3001 = vmatprep.mubr.f32.mxu0 0.0
        %3002 = vmatmul.mubr.f32.gmra.mxu0 %v2794
        %v3003 = vpop.f32.mrf.mxu0
        %v3004 = vadd.f32 %v2738, %v3003
        %v3005 = vpop.f32.mrf.mxu0
        %v3006 = vadd.f32 %v2742, %v3005
        %3007 = vmatprep.mubr.f32.mxu0 0.0
        %3008 = vmatmul.mubr.f32.gmra.mxu0 %v2797
        %v3009 = vpop.f32.mrf.mxu0
        %v3010 = vadd.f32 %v2738, %v3009
        %v3011 = vpop.f32.mrf.mxu0
        %v3012 = vadd.f32 %v2742, %v3011
        %3013 = vmatprep.mubr.f32.mxu0 0.0
        %3014 = vmatmul.mubr.f32.gmra.mxu0 %v2800
        %v3015 = vpop.f32.mrf.mxu0
        %v3016 = vadd.f32 %v2738, %v3015
        %v3017 = vpop.f32.mrf.mxu0
        %v3018 = vadd.f32 %v2742, %v3017
        %3019 = vmatprep.mubr.f32.mxu0 0.0
        %3020 = vmatmul.mubr.f32.gmra.mxu0 %v2803
        %v3021 = vpop.f32.mrf.mxu0
        %v3022 = vadd.f32 %v2738, %v3021
        %v3023 = vpop.f32.mrf.mxu0
        %v3024 = vadd.f32 %v2742, %v3023
        %3025 = vmatprep.mubr.f32.mxu0 0.0
        %3026 = vmatmul.mubr.f32.gmra.mxu0 %v2806
        %v3027 = vpop.f32.mrf.mxu0
        %v3028 = vadd.f32 %v2738, %v3027
        %v3029 = vpop.f32.mrf.mxu0
        %v3030 = vadd.f32 %v2742, %v3029
        %3031 = vmatprep.mubr.f32.mxu0 0.0
        %3032 = vmatmul.mubr.f32.gmra.mxu0 %v2809
        %v3033 = vpop.f32.mrf.mxu0
        %v3034 = vadd.f32 %v2738, %v3033
        %v3035 = vpop.f32.mrf.mxu0
        %v3036 = vadd.f32 %v2742, %v3035
        %3037 = vmatprep.mubr.f32.mxu0 0.0
        %3038 = vmatmul.mubr.f32.gmra.mxu0 %v2812
        %v3039 = vpop.f32.mrf.mxu0
        %v3040 = vadd.f32 %v2738, %v3039
        %v3041 = vpop.f32.mrf.mxu0
        %v3042 = vadd.f32 %v2742, %v3041
        %3043 = vmatprep.mubr.f32.mxu0 0.0
        %3044 = vmatmul.mubr.f32.gmra.mxu0 %v2815
        %v3045 = vpop.f32.mrf.mxu0
        %v3046 = vadd.f32 %v2738, %v3045
        %v3047 = vpop.f32.mrf.mxu0
        %v3048 = vadd.f32 %v2742, %v3047
        %3049 = vmatprep.mubr.f32.mxu0 0.0
        %3050 = vmatmul.mubr.f32.gmra.mxu0 %v2818
        %v3051 = vpop.f32.mrf.mxu0
        %v3052 = vadd.f32 %v2738, %v3051
        %v3053 = vpop.f32.mrf.mxu0
        %v3054 = vadd.f32 %v2742, %v3053
        %3055 = vmatprep.mubr.f32.mxu0 0.0
        %3056 = vmatmul.mubr.f32.gmra.mxu0 %v2821
        %v3057 = vpop.f32.mrf.mxu0
        %v3058 = vadd.f32 %v2738, %v3057
        %v3059 = vpop.f32.mrf.mxu0
        %v3060 = vadd.f32 %v2742, %v3059
        %3061 = vmatprep.mubr.f32.mxu0 0.0
        %3062 = vmatmul.mubr.f32.gmra.mxu0 %v2824
        %v3063 = vpop.f32.mrf.mxu0
        %v3064 = vadd.f32 %v2738, %v3063
        %v3065 = vpop.f32.mrf.mxu0
        %v3066 = vadd.f32 %v2742, %v3065
        %3067 = vmatprep.mubr.f32.mxu0 0.0
        %3068 = vmatmul.mubr.f32.gmra.mxu0 %v2827
        %v3069 = vpop.f32.mrf.mxu0
        %v3070 = vadd.f32 %v2738, %v3069
        %v3071 = vpop.f32.mrf.mxu0
        %v3072 = vadd.f32 %v2742, %v3071
        %3073 = vmatprep.mubr.f32.mxu0 0.0
        %3074 = vmatmul.mubr.f32.gmra.mxu0 %v2830
        %v3075 = vpop.f32.mrf.mxu0
        %v3076 = vadd.f32 %v2738, %v3075
        %v3077 = vpop.f32.mrf.mxu0
        %v3078 = vadd.f32 %v2742, %v3077
        %3079 = vmatprep.mubr.f32.mxu0 0.0
        %3080 = vmatmul.mubr.f32.gmra.mxu0 %v2833
        %v3081 = vpop.f32.mrf.mxu0
        %v3082 = vadd.f32 %v2738, %v3081
        %v3083 = vpop.f32.mrf.mxu0
        %v3084 = vadd.f32 %v2742, %v3083
        %3085 = vmatprep.mubr.f32.mxu0 0.0
        %3086 = vmatmul.mubr.f32.gmra.mxu0 %v2836
        %v3087 = vpop.f32.mrf.mxu0
        %v3088 = vadd.f32 %v2738, %v3087
        %v3089 = vpop.f32.mrf.mxu0
        %v3090 = vadd.f32 %v2742, %v3089
        %3091 = vmatprep.mubr.f32.mxu0 0.0
        %3092 = vmatmul.mubr.f32.gmra.mxu0 %v2839
        %v3093 = vpop.f32.mrf.mxu0
        %v3094 = vadd.f32 %v2738, %v3093
        %v3095 = vpop.f32.mrf.mxu0
        %v3096 = vadd.f32 %v2742, %v3095
        %3097 = vdwg.mxu0
        %v3098 = vmul.f32 %v2908, 1.442695
        %v3099 = vpow.pop %v3098
        %v3100 = vmul.f32 %v2914, 1.442695
        %v3101 = vpow.pop %v3100
        %v3102 = vmul.f32 %v2920, 1.442695
        %v3103 = vpow.pop %v3102
        %v3104 = vmul.f32 %v2926, 1.442695
        %v3105 = vpow.pop %v3104
        %v3106 = vmul.f32 %v2932, 1.442695
        %v3107 = vpow.pop %v3106
        %v3108 = vmul.f32 %v2938, 1.442695
        %v3109 = vpow.pop %v3108
        %v3110 = vmul.f32 %v2944, 1.442695
        %v3111 = vpow.pop %v3110
        %v3112 = vmul.f32 %v2950, 1.442695
        %v3113 = vpow.pop %v3112
        %v3114 = vmul.f32 %v2956, 1.442695
        %v3115 = vpow.pop %v3114
        %v3116 = vmul.f32 %v2962, 1.442695
        %v3117 = vpow.pop %v3116
        %v3118 = vmul.f32 %v2968, 1.442695
        %v3119 = vpow.pop %v3118
        %v3120 = vmul.f32 %v2974, 1.442695
        %v3121 = vpow.pop %v3120
        %v3122 = vmul.f32 %v2980, 1.442695
        %v3123 = vpow.pop %v3122
        %v3124 = vmul.f32 %v2986, 1.442695
        %v3125 = vpow.pop %v3124
        %v3126 = vmul.f32 %v2992, 1.442695
        %v3127 = vpow.pop %v3126
        %v3128 = vmul.f32 %v2998, 1.442695
        %v3129 = vpow.pop %v3128
        %v3130 = vmul.f32 %v3004, 1.442695
        %v3131 = vpow.pop %v3130
        %v3132 = vmul.f32 %v3010, 1.442695
        %v3133 = vpow.pop %v3132
        %v3134 = vmul.f32 %v3016, 1.442695
        %v3135 = vpow.pop %v3134
        %v3136 = vmul.f32 %v3022, 1.442695
        %v3137 = vpow.pop %v3136
        %v3138 = vmul.f32 %v3028, 1.442695
        %v3139 = vpow.pop %v3138
        %v3140 = vmul.f32 %v3034, 1.442695
        %v3141 = vpow.pop %v3140
        %v3142 = vmul.f32 %v3040, 1.442695
        %v3143 = vpow.pop %v3142
        %v3144 = vmul.f32 %v3046, 1.442695
        %v3145 = vpow.pop %v3144
        %v3146 = vmul.f32 %v3052, 1.442695
        %v3147 = vpow.pop %v3146
        %v3148 = vmul.f32 %v3058, 1.442695
        %v3149 = vpow.pop %v3148
        %v3150 = vmul.f32 %v3064, 1.442695
        %v3151 = vpow.pop %v3150
        %v3152 = vmul.f32 %v3070, 1.442695
        %v3153 = vpow.pop %v3152
        %v3154 = vmul.f32 %v3076, 1.442695
        %v3155 = vpow.pop %v3154
        %v3156 = vmul.f32 %v3082, 1.442695
        %v3157 = vpow.pop %v3156
        %v3158 = vmul.f32 %v3088, 1.442695
        %v3159 = vpow.pop %v3158
        %v3160 = vmul.f32 %v3094, 1.442695
        %v3161 = vpow.pop %v3160
        %v3162 = vmul.f32 %v3099, %v329
        %v3163 = vmul.f32 %v3101, %v330
        %v3164 = vmul.f32 %v3103, %v331
        %v3165 = vmul.f32 %v3105, %v332
        %v3166 = vmul.f32 %v3107, %v333
        %v3167 = vmul.f32 %v3109, %v334
        %v3168 = vmul.f32 %v3111, %v335
        %v3169 = vmul.f32 %v3113, %v336
        %v3170 = vmul.f32 %v3115, %v337
        %v3171 = vmul.f32 %v3117, %v338
        %v3172 = vmul.f32 %v3119, %v339
        %v3173 = vmul.f32 %v3121, %v340
        %v3174 = vmul.f32 %v3123, %v341
        %v3175 = vmul.f32 %v3125, %v342
        %v3176 = vmul.f32 %v3127, %v343
        %v3177 = vmul.f32 %v3129, %v344
        %v3178 = vmul.f32 %v3131, %v345
        %v3179 = vmul.f32 %v3133, %v346
        %v3180 = vmul.f32 %v3135, %v347
        %v3181 = vmul.f32 %v3137, %v348
        %v3182 = vmul.f32 %v3139, %v349
        %v3183 = vmul.f32 %v3141, %v350
        %v3184 = vmul.f32 %v3143, %v351
        %v3185 = vmul.f32 %v3145, %v352
        %v3186 = vmul.f32 %v3147, %v353
        %v3187 = vmul.f32 %v3149, %v354
        %v3188 = vmul.f32 %v3151, %v355
        %v3189 = vmul.f32 %v3153, %v356
        %v3190 = vmul.f32 %v3155, %v357
        %v3191 = vmul.f32 %v3157, %v358
        %v3192 = vmul.f32 %v3159, %v359
        %v3193 = vmul.f32 %v3161, %v360
        %v3194 = vadd.f32 %v3162, %v2910
        %v3195 = vadd.f32 %v3163, %v2916
        %v3196 = vadd.f32 %v3164, %v2922
        %v3197 = vadd.f32 %v3165, %v2928
        %v3198 = vadd.f32 %v3166, %v2934
        %v3199 = vadd.f32 %v3167, %v2940
        %v3200 = vadd.f32 %v3168, %v2946
        %v3201 = vadd.f32 %v3169, %v2952
        %v3202 = vadd.f32 %v3170, %v2958
        %v3203 = vadd.f32 %v3171, %v2964
        %v3204 = vadd.f32 %v3172, %v2970
        %v3205 = vadd.f32 %v3173, %v2976
        %v3206 = vadd.f32 %v3174, %v2982
        %v3207 = vadd.f32 %v3175, %v2988
        %v3208 = vadd.f32 %v3176, %v2994
        %v3209 = vadd.f32 %v3177, %v3000
        %v3210 = vadd.f32 %v3178, %v3006
        %v3211 = vadd.f32 %v3179, %v3012
        %v3212 = vadd.f32 %v3180, %v3018
        %v3213 = vadd.f32 %v3181, %v3024
        %v3214 = vadd.f32 %v3182, %v3030
        %v3215 = vadd.f32 %v3183, %v3036
        %v3216 = vadd.f32 %v3184, %v3042
        %v3217 = vadd.f32 %v3185, %v3048
        %v3218 = vadd.f32 %v3186, %v3054
        %v3219 = vadd.f32 %v3187, %v3060
        %v3220 = vadd.f32 %v3188, %v3066
        %v3221 = vadd.f32 %v3189, %v3072
        %v3222 = vadd.f32 %v3190, %v3078
        %v3223 = vadd.f32 %v3191, %v3084
        %v3224 = vadd.f32 %v3192, %v3090
        %v3225 = vadd.f32 %v3193, %v3096
        %s3226 = scalar_lea.vmem %s1, 256
        %v3227 = vld [vmem:[%s3226] sm:$0xff]
        %v3228 = vld [vmem:[%s3226 + $0x8] sm:$0xff]
        %v3229 = vld [vmem:[%s3226 + $0x10] sm:$0xff]
        %v3230 = vld [vmem:[%s3226 + $0x18] sm:$0xff]
        %v3231 = vld [vmem:[%s3226 + $0x20] sm:$0xff]
        %v3232 = vld [vmem:[%s3226 + $0x28] sm:$0xff]
        %v3233 = vld [vmem:[%s3226 + $0x30] sm:$0xff]
        %v3234 = vld [vmem:[%s3226 + $0x38] sm:$0xff]
        %v3235 = vld [vmem:[%s3226 + $0x40] sm:$0xff]
        %v3236 = vld [vmem:[%s3226 + $0x48] sm:$0xff]
        %v3237 = vld [vmem:[%s3226 + $0x50] sm:$0xff]
        %v3238 = vld [vmem:[%s3226 + $0x58] sm:$0xff]
        %v3239 = vld [vmem:[%s3226 + $0x60] sm:$0xff]
        %v3240 = vld [vmem:[%s3226 + $0x68] sm:$0xff]
        %v3241 = vld [vmem:[%s3226 + $0x70] sm:$0xff]
        %v3242 = vld [vmem:[%s3226 + $0x78] sm:$0xff]
        %s3243 = scalar_lea.vmem [#allocation5], 2
        %v3244 = vld [vmem:[%s3243] sm:$0x1]
        %s3245 = scalar_lea.vmem %s3, 128
        %v3246 = vld [vmem:[%s3245] sm:$0xff]
        %v3247 = vld [vmem:[%s3245 + $0x8] sm:$0xff]
        %v3248 = vld [vmem:[%s3245 + $0x10] sm:$0xff]
        %v3249 = vld [vmem:[%s3245 + $0x18] sm:$0xff]
        %v3250 = vld [vmem:[%s3245 + $0x20] sm:$0xff]
        %v3251 = vld [vmem:[%s3245 + $0x28] sm:$0xff]
        %v3252 = vld [vmem:[%s3245 + $0x30] sm:$0xff]
        %v3253 = vld [vmem:[%s3245 + $0x38] sm:$0xff]
        %s3254 = scalar_lea.vmem [#allocation7], 2
        %v3255 = vld [vmem:[%s3254] sm:$0x1]
        %s3256 = scalar_lea.vmem %s5, 256
        %v3257 = vld [vmem:[%s3256] sm:$0xff]
        %v3258 = vld [vmem:[%s3256 + $0x8] sm:$0xff]
        %v3259 = vld [vmem:[%s3256 + $0x10] sm:$0xff]
        %v3260 = vld [vmem:[%s3256 + $0x18] sm:$0xff]
        %v3261 = vld [vmem:[%s3256 + $0x20] sm:$0xff]
        %v3262 = vld [vmem:[%s3256 + $0x28] sm:$0xff]
        %v3263 = vld [vmem:[%s3256 + $0x30] sm:$0xff]
        %v3264 = vld [vmem:[%s3256 + $0x38] sm:$0xff]
        %v3265 = vld [vmem:[%s3256 + $0x40] sm:$0xff]
        %v3266 = vld [vmem:[%s3256 + $0x48] sm:$0xff]
        %v3267 = vld [vmem:[%s3256 + $0x50] sm:$0xff]
        %v3268 = vld [vmem:[%s3256 + $0x58] sm:$0xff]
        %v3269 = vld [vmem:[%s3256 + $0x60] sm:$0xff]
        %v3270 = vld [vmem:[%s3256 + $0x68] sm:$0xff]
        %v3271 = vld [vmem:[%s3256 + $0x70] sm:$0xff]
        %v3272 = vld [vmem:[%s3256 + $0x78] sm:$0xff]
        %s3273 = scalar_lea.vmem %s6, 4
        %v3274 = vld [vmem:[%s3273] sm:$0x3]
        %v3276 = vlaneseq
        %v3277 = vshrl.u32 %v3276, 7
        %v3278 = vsub.s32 0, %v3277
        %v3279 = vrot.slane %v3244, %v3278
        %3281 = vmatprep.subr.mxu0 0.0
        %3282 = vmatpush1.msra.mxu0 %v3242
        %3283 = vmatprep.subr.mxu0 0.0
        %3284 = vmatpush1.msra.mxu0 %v3241
        %3285 = vmatprep.subr.mxu0 0.0
        %3286 = vmatpush1.msra.mxu0 %v3240
        %3287 = vmatprep.subr.mxu0 0.0
        %3288 = vmatpush1.msra.mxu0 %v3239
        %3289 = vmatprep.subr.mxu0 0.0
        %3290 = vmatpush1.msra.mxu0 %v3238
        %3291 = vmatprep.subr.mxu0 0.0
        %3292 = vmatpush1.msra.mxu0 %v3237
        %3293 = vmatprep.subr.mxu0 0.0
        %3294 = vmatpush1.msra.mxu0 %v3236
        %3295 = vmatprep.subr.mxu0 0.0
        %3296 = vmatpush1.msra.mxu0 %v3235
        %3297 = vmatprep.subr.mxu0 0.0
        %3298 = vmatpush1.msra.mxu0 %v3234
        %3299 = vmatprep.subr.mxu0 0.0
        %3300 = vmatpush1.msra.mxu0 %v3233
        %3301 = vmatprep.subr.mxu0 0.0
        %3302 = vmatpush1.msra.mxu0 %v3232
        %3303 = vmatprep.subr.mxu0 0.0
        %3304 = vmatpush1.msra.mxu0 %v3231
        %3305 = vmatprep.subr.mxu0 0.0
        %3306 = vmatpush1.msra.mxu0 %v3230
        %3307 = vmatprep.subr.mxu0 0.0
        %3308 = vmatpush1.msra.mxu0 %v3229
        %3309 = vmatprep.subr.mxu0 0.0
        %3310 = vmatpush1.msra.mxu0 %v3228
        %3311 = vmatprep.subr.mxu0 0.0
        %3312 = vmatpush1.msra.mxu0 %v3227
        %3313 = vmatprep.subr.mxu0 0.0
        %3314 = vmatpush2.msra.mxu0 0.0
        %3315 = vmatprep.subr.mxu0 0.0
        %3316 = vmatpush2.msra.mxu0 0.0
        %3317 = vmatprep.subr.mxu0 0.0
        %3318 = vmatpush2.msra.mxu0 0.0
        %3319 = vmatprep.subr.mxu0 0.0
        %3320 = vmatpush2.msra.mxu0 0.0
        %3321 = vmatprep.subr.mxu0 0.0
        %3322 = vmatpush2.msra.mxu0 0.0
        %3323 = vmatprep.subr.mxu0 0.0
        %3324 = vmatpush2.msra.mxu0 0.0
        %3325 = vmatprep.subr.mxu0 0.0
        %3326 = vmatpush2.msra.mxu0 0.0
        %3327 = vmatprep.subr.mxu0 0.0
        %3328 = vmatpush2.msra.mxu0 0.0
        %3329 = vmatprep.subr.mxu0 0.0
        %3330 = vmatpush2.msra.mxu0 0.0
        %3331 = vmatprep.subr.mxu0 0.0
        %3332 = vmatpush2.msra.mxu0 0.0
        %3333 = vmatprep.subr.mxu0 0.0
        %3334 = vmatpush2.msra.mxu0 0.0
        %3335 = vmatprep.subr.mxu0 0.0
        %3336 = vmatpush2.msra.mxu0 0.0
        %3337 = vmatprep.subr.mxu0 0.0
        %3338 = vmatpush2.msra.mxu0 0.0
        %3339 = vmatprep.subr.mxu0 0.0
        %3340 = vmatpush2.msra.mxu0 0.0
        %3341 = vmatprep.subr.mxu0 0.0
        %3342 = vmatpush2.msra.mxu0 0.0
        %3343 = vmatprep.subr.mxu0 0.0
        %3344 = vmatpush2.msra.mxu0 0.0
        %3345 = vmatprep.mubr.f32.mxu0 0.0
        %3346 = vmatmul.mubr.f32.gmra.mxu0 %v3194
        %v3347 = vpop.f32.mrf.mxu0
        %v3348 = vadd.f32 %v3279, %v3347
        %v3349 = vpop.f32.mrf.mxu0
        %3350 = vmatprep.mubr.f32.mxu0 0.0
        %3351 = vmatmul.mubr.f32.gmra.mxu0 %v3195
        %v3352 = vpop.f32.mrf.mxu0
        %v3353 = vadd.f32 %v3279, %v3352
        %v3354 = vpop.f32.mrf.mxu0
        %3355 = vmatprep.mubr.f32.mxu0 0.0
        %3356 = vmatmul.mubr.f32.gmra.mxu0 %v3196
        %v3357 = vpop.f32.mrf.mxu0
        %v3358 = vadd.f32 %v3279, %v3357
        %v3359 = vpop.f32.mrf.mxu0
        %3360 = vmatprep.mubr.f32.mxu0 0.0
        %3361 = vmatmul.mubr.f32.gmra.mxu0 %v3197
        %v3362 = vpop.f32.mrf.mxu0
        %v3363 = vadd.f32 %v3279, %v3362
        %v3364 = vpop.f32.mrf.mxu0
        %3365 = vmatprep.mubr.f32.mxu0 0.0
        %3366 = vmatmul.mubr.f32.gmra.mxu0 %v3198
        %v3367 = vpop.f32.mrf.mxu0
        %v3368 = vadd.f32 %v3279, %v3367
        %v3369 = vpop.f32.mrf.mxu0
        %3370 = vmatprep.mubr.f32.mxu0 0.0
        %3371 = vmatmul.mubr.f32.gmra.mxu0 %v3199
        %v3372 = vpop.f32.mrf.mxu0
        %v3373 = vadd.f32 %v3279, %v3372
        %v3374 = vpop.f32.mrf.mxu0
        %3375 = vmatprep.mubr.f32.mxu0 0.0
        %3376 = vmatmul.mubr.f32.gmra.mxu0 %v3200
        %v3377 = vpop.f32.mrf.mxu0
        %v3378 = vadd.f32 %v3279, %v3377
        %v3379 = vpop.f32.mrf.mxu0
        %3380 = vmatprep.mubr.f32.mxu0 0.0
        %3381 = vmatmul.mubr.f32.gmra.mxu0 %v3201
        %v3382 = vpop.f32.mrf.mxu0
        %v3383 = vadd.f32 %v3279, %v3382
        %v3384 = vpop.f32.mrf.mxu0
        %3385 = vmatprep.mubr.f32.mxu0 0.0
        %3386 = vmatmul.mubr.f32.gmra.mxu0 %v3202
        %v3387 = vpop.f32.mrf.mxu0
        %v3388 = vadd.f32 %v3279, %v3387
        %v3389 = vpop.f32.mrf.mxu0
        %3390 = vmatprep.mubr.f32.mxu0 0.0
        %3391 = vmatmul.mubr.f32.gmra.mxu0 %v3203
        %v3392 = vpop.f32.mrf.mxu0
        %v3393 = vadd.f32 %v3279, %v3392
        %v3394 = vpop.f32.mrf.mxu0
        %3395 = vmatprep.mubr.f32.mxu0 0.0
        %3396 = vmatmul.mubr.f32.gmra.mxu0 %v3204
        %v3397 = vpop.f32.mrf.mxu0
        %v3398 = vadd.f32 %v3279, %v3397
        %v3399 = vpop.f32.mrf.mxu0
        %3400 = vmatprep.mubr.f32.mxu0 0.0
        %3401 = vmatmul.mubr.f32.gmra.mxu0 %v3205
        %v3402 = vpop.f32.mrf.mxu0
        %v3403 = vadd.f32 %v3279, %v3402
        %v3404 = vpop.f32.mrf.mxu0
        %3405 = vmatprep.mubr.f32.mxu0 0.0
        %3406 = vmatmul.mubr.f32.gmra.mxu0 %v3206
        %v3407 = vpop.f32.mrf.mxu0
        %v3408 = vadd.f32 %v3279, %v3407
        %v3409 = vpop.f32.mrf.mxu0
        %3410 = vmatprep.mubr.f32.mxu0 0.0
        %3411 = vmatmul.mubr.f32.gmra.mxu0 %v3207
        %v3412 = vpop.f32.mrf.mxu0
        %v3413 = vadd.f32 %v3279, %v3412
        %v3414 = vpop.f32.mrf.mxu0
        %3415 = vmatprep.mubr.f32.mxu0 0.0
        %3416 = vmatmul.mubr.f32.gmra.mxu0 %v3208
        %v3417 = vpop.f32.mrf.mxu0
        %v3418 = vadd.f32 %v3279, %v3417
        %v3419 = vpop.f32.mrf.mxu0
        %3420 = vmatprep.mubr.f32.mxu0 0.0
        %3421 = vmatmul.mubr.f32.gmra.mxu0 %v3209
        %v3422 = vpop.f32.mrf.mxu0
        %v3423 = vadd.f32 %v3279, %v3422
        %v3424 = vpop.f32.mrf.mxu0
        %3425 = vmatprep.mubr.f32.mxu0 0.0
        %3426 = vmatmul.mubr.f32.gmra.mxu0 %v3210
        %v3427 = vpop.f32.mrf.mxu0
        %v3428 = vadd.f32 %v3279, %v3427
        %v3429 = vpop.f32.mrf.mxu0
        %3430 = vmatprep.mubr.f32.mxu0 0.0
        %3431 = vmatmul.mubr.f32.gmra.mxu0 %v3211
        %v3432 = vpop.f32.mrf.mxu0
        %v3433 = vadd.f32 %v3279, %v3432
        %v3434 = vpop.f32.mrf.mxu0
        %3435 = vmatprep.mubr.f32.mxu0 0.0
        %3436 = vmatmul.mubr.f32.gmra.mxu0 %v3212
        %v3437 = vpop.f32.mrf.mxu0
        %v3438 = vadd.f32 %v3279, %v3437
        %v3439 = vpop.f32.mrf.mxu0
        %3440 = vmatprep.mubr.f32.mxu0 0.0
        %3441 = vmatmul.mubr.f32.gmra.mxu0 %v3213
        %v3442 = vpop.f32.mrf.mxu0
        %v3443 = vadd.f32 %v3279, %v3442
        %v3444 = vpop.f32.mrf.mxu0
        %3445 = vmatprep.mubr.f32.mxu0 0.0
        %3446 = vmatmul.mubr.f32.gmra.mxu0 %v3214
        %v3447 = vpop.f32.mrf.mxu0
        %v3448 = vadd.f32 %v3279, %v3447
        %v3449 = vpop.f32.mrf.mxu0
        %3450 = vmatprep.mubr.f32.mxu0 0.0
        %3451 = vmatmul.mubr.f32.gmra.mxu0 %v3215
        %v3452 = vpop.f32.mrf.mxu0
        %v3453 = vadd.f32 %v3279, %v3452
        %v3454 = vpop.f32.mrf.mxu0
        %3455 = vmatprep.mubr.f32.mxu0 0.0
        %3456 = vmatmul.mubr.f32.gmra.mxu0 %v3216
        %v3457 = vpop.f32.mrf.mxu0
        %v3458 = vadd.f32 %v3279, %v3457
        %v3459 = vpop.f32.mrf.mxu0
        %3460 = vmatprep.mubr.f32.mxu0 0.0
        %3461 = vmatmul.mubr.f32.gmra.mxu0 %v3217
        %v3462 = vpop.f32.mrf.mxu0
        %v3463 = vadd.f32 %v3279, %v3462
        %v3464 = vpop.f32.mrf.mxu0
        %3465 = vmatprep.mubr.f32.mxu0 0.0
        %3466 = vmatmul.mubr.f32.gmra.mxu0 %v3218
        %v3467 = vpop.f32.mrf.mxu0
        %v3468 = vadd.f32 %v3279, %v3467
        %v3469 = vpop.f32.mrf.mxu0
        %3470 = vmatprep.mubr.f32.mxu0 0.0
        %3471 = vmatmul.mubr.f32.gmra.mxu0 %v3219
        %v3472 = vpop.f32.mrf.mxu0
        %v3473 = vadd.f32 %v3279, %v3472
        %v3474 = vpop.f32.mrf.mxu0
        %3475 = vmatprep.mubr.f32.mxu0 0.0
        %3476 = vmatmul.mubr.f32.gmra.mxu0 %v3220
        %v3477 = vpop.f32.mrf.mxu0
        %v3478 = vadd.f32 %v3279, %v3477
        %v3479 = vpop.f32.mrf.mxu0
        %3480 = vmatprep.mubr.f32.mxu0 0.0
        %3481 = vmatmul.mubr.f32.gmra.mxu0 %v3221
        %v3482 = vpop.f32.mrf.mxu0
        %v3483 = vadd.f32 %v3279, %v3482
        %v3484 = vpop.f32.mrf.mxu0
        %3485 = vmatprep.mubr.f32.mxu0 0.0
        %3486 = vmatmul.mubr.f32.gmra.mxu0 %v3222
        %v3487 = vpop.f32.mrf.mxu0
        %v3488 = vadd.f32 %v3279, %v3487
        %v3489 = vpop.f32.mrf.mxu0
        %3490 = vmatprep.mubr.f32.mxu0 0.0
        %3491 = vmatmul.mubr.f32.gmra.mxu0 %v3223
        %v3492 = vpop.f32.mrf.mxu0
        %v3493 = vadd.f32 %v3279, %v3492
        %v3494 = vpop.f32.mrf.mxu0
        %3495 = vmatprep.mubr.f32.mxu0 0.0
        %3496 = vmatmul.mubr.f32.gmra.mxu0 %v3224
        %v3497 = vpop.f32.mrf.mxu0
        %v3498 = vadd.f32 %v3279, %v3497
        %v3499 = vpop.f32.mrf.mxu0
        %3500 = vmatprep.mubr.f32.mxu0 0.0
        %3501 = vmatmul.mubr.f32.gmra.mxu0 %v3225
        %v3502 = vpop.f32.mrf.mxu0
        %v3503 = vadd.f32 %v3279, %v3502
        %v3504 = vpop.f32.mrf.mxu0
        %3505 = vdwg.mxu0
        %v3506 = vmul.f32 %v3348, 0.5
        %v3507 = vmul.f32 %v3353, 0.5
        %v3508 = vmul.f32 %v3358, 0.5
        %v3509 = vmul.f32 %v3363, 0.5
        %v3510 = vmul.f32 %v3368, 0.5
        %v3511 = vmul.f32 %v3373, 0.5
        %v3512 = vmul.f32 %v3378, 0.5
        %v3513 = vmul.f32 %v3383, 0.5
        %v3514 = vmul.f32 %v3388, 0.5
        %v3515 = vmul.f32 %v3393, 0.5
        %v3516 = vmul.f32 %v3398, 0.5
        %v3517 = vmul.f32 %v3403, 0.5
        %v3518 = vmul.f32 %v3408, 0.5
        %v3519 = vmul.f32 %v3413, 0.5
        %v3520 = vmul.f32 %v3418, 0.5
        %v3521 = vmul.f32 %v3423, 0.5
        %v3522 = vmul.f32 %v3428, 0.5
        %v3523 = vmul.f32 %v3433, 0.5
        %v3524 = vmul.f32 %v3438, 0.5
        %v3525 = vmul.f32 %v3443, 0.5
        %v3526 = vmul.f32 %v3448, 0.5
        %v3527 = vmul.f32 %v3453, 0.5
        %v3528 = vmul.f32 %v3458, 0.5
        %v3529 = vmul.f32 %v3463, 0.5
        %v3530 = vmul.f32 %v3468, 0.5
        %v3531 = vmul.f32 %v3473, 0.5
        %v3532 = vmul.f32 %v3478, 0.5
        %v3533 = vmul.f32 %v3483, 0.5
        %v3534 = vmul.f32 %v3488, 0.5
        %v3535 = vmul.f32 %v3493, 0.5
        %v3536 = vmul.f32 %v3498, 0.5
        %v3537 = vmul.f32 %v3503, 0.5
        %v3538 = vmul.f32 %v3348, 0.70710677
        %v3539 = vmul.f32 %v3353, 0.70710677
        %v3540 = vmul.f32 %v3358, 0.70710677
        %v3541 = vmul.f32 %v3363, 0.70710677
        %v3542 = vmul.f32 %v3368, 0.70710677
        %v3543 = vmul.f32 %v3373, 0.70710677
        %v3544 = vmul.f32 %v3378, 0.70710677
        %v3545 = vmul.f32 %v3383, 0.70710677
        %v3546 = vmul.f32 %v3388, 0.70710677
        %v3547 = vmul.f32 %v3393, 0.70710677
        %v3548 = vmul.f32 %v3398, 0.70710677
        %v3549 = vmul.f32 %v3403, 0.70710677
        %v3550 = vmul.f32 %v3408, 0.70710677
        %v3551 = vmul.f32 %v3413, 0.70710677
        %v3552 = vmul.f32 %v3418, 0.70710677
        %v3553 = vmul.f32 %v3423, 0.70710677
        %v3554 = vmul.f32 %v3428, 0.70710677
        %v3555 = vmul.f32 %v3433, 0.70710677
        %v3556 = vmul.f32 %v3438, 0.70710677
        %v3557 = vmul.f32 %v3443, 0.70710677
        %v3558 = vmul.f32 %v3448, 0.70710677
        %v3559 = vmul.f32 %v3453, 0.70710677
        %v3560 = vmul.f32 %v3458, 0.70710677
        %v3561 = vmul.f32 %v3463, 0.70710677
        %v3562 = vmul.f32 %v3468, 0.70710677
        %v3563 = vmul.f32 %v3473, 0.70710677
        %v3564 = vmul.f32 %v3478, 0.70710677
        %v3565 = vmul.f32 %v3483, 0.70710677
        %v3566 = vmul.f32 %v3488, 0.70710677
        %v3567 = vmul.f32 %v3493, 0.70710677
        %v3568 = vmul.f32 %v3498, 0.70710677
        %v3569 = vmul.f32 %v3503, 0.70710677
        %v3570 = verf.f32.pop %v3538
        %v3571 = verf.f32.pop %v3539
        %v3572 = verf.f32.pop %v3540
        %v3573 = verf.f32.pop %v3541
        %v3574 = verf.f32.pop %v3542
        %v3575 = verf.f32.pop %v3543
        %v3576 = verf.f32.pop %v3544
        %v3577 = verf.f32.pop %v3545
        %v3578 = verf.f32.pop %v3546
        %v3579 = verf.f32.pop %v3547
        %v3580 = verf.f32.pop %v3548
        %v3581 = verf.f32.pop %v3549
        %v3582 = verf.f32.pop %v3550
        %v3583 = verf.f32.pop %v3551
        %v3584 = verf.f32.pop %v3552
        %v3585 = verf.f32.pop %v3553
        %v3586 = verf.f32.pop %v3554
        %v3587 = verf.f32.pop %v3555
        %v3588 = verf.f32.pop %v3556
        %v3589 = verf.f32.pop %v3557
        %v3590 = verf.f32.pop %v3558
        %v3591 = verf.f32.pop %v3559
        %v3592 = verf.f32.pop %v3560
        %v3593 = verf.f32.pop %v3561
        %v3594 = verf.f32.pop %v3562
        %v3595 = verf.f32.pop %v3563
        %v3596 = verf.f32.pop %v3564
        %v3597 = verf.f32.pop %v3565
        %v3598 = verf.f32.pop %v3566
        %v3599 = verf.f32.pop %v3567
        %v3600 = verf.f32.pop %v3568
        %v3601 = verf.f32.pop %v3569
        %v3602 = vadd.f32 %v3570, 1.0
        %v3603 = vadd.f32 %v3571, 1.0
        %v3604 = vadd.f32 %v3572, 1.0
        %v3605 = vadd.f32 %v3573, 1.0
        %v3606 = vadd.f32 %v3574, 1.0
        %v3607 = vadd.f32 %v3575, 1.0
        %v3608 = vadd.f32 %v3576, 1.0
        %v3609 = vadd.f32 %v3577, 1.0
        %v3610 = vadd.f32 %v3578, 1.0
        %v3611 = vadd.f32 %v3579, 1.0
        %v3612 = vadd.f32 %v3580, 1.0
        %v3613 = vadd.f32 %v3581, 1.0
        %v3614 = vadd.f32 %v3582, 1.0
        %v3615 = vadd.f32 %v3583, 1.0
        %v3616 = vadd.f32 %v3584, 1.0
        %v3617 = vadd.f32 %v3585, 1.0
        %v3618 = vadd.f32 %v3586, 1.0
        %v3619 = vadd.f32 %v3587, 1.0
        %v3620 = vadd.f32 %v3588, 1.0
        %v3621 = vadd.f32 %v3589, 1.0
        %v3622 = vadd.f32 %v3590, 1.0
        %v3623 = vadd.f32 %v3591, 1.0
        %v3624 = vadd.f32 %v3592, 1.0
        %v3625 = vadd.f32 %v3593, 1.0
        %v3626 = vadd.f32 %v3594, 1.0
        %v3627 = vadd.f32 %v3595, 1.0
        %v3628 = vadd.f32 %v3596, 1.0
        %v3629 = vadd.f32 %v3597, 1.0
        %v3630 = vadd.f32 %v3598, 1.0
        %v3631 = vadd.f32 %v3599, 1.0
        %v3632 = vadd.f32 %v3600, 1.0
        %v3633 = vadd.f32 %v3601, 1.0
        %v3634 = vmul.f32 %v3506, %v3602
        %v3635 = vmul.f32 %v3507, %v3603
        %v3636 = vmul.f32 %v3508, %v3604
        %v3637 = vmul.f32 %v3509, %v3605
        %v3638 = vmul.f32 %v3510, %v3606
        %v3639 = vmul.f32 %v3511, %v3607
        %v3640 = vmul.f32 %v3512, %v3608
        %v3641 = vmul.f32 %v3513, %v3609
        %v3642 = vmul.f32 %v3514, %v3610
        %v3643 = vmul.f32 %v3515, %v3611
        %v3644 = vmul.f32 %v3516, %v3612
        %v3645 = vmul.f32 %v3517, %v3613
        %v3646 = vmul.f32 %v3518, %v3614
        %v3647 = vmul.f32 %v3519, %v3615
        %v3648 = vmul.f32 %v3520, %v3616
        %v3649 = vmul.f32 %v3521, %v3617
        %v3650 = vmul.f32 %v3522, %v3618
        %v3651 = vmul.f32 %v3523, %v3619
        %v3652 = vmul.f32 %v3524, %v3620
        %v3653 = vmul.f32 %v3525, %v3621
        %v3654 = vmul.f32 %v3526, %v3622
        %v3655 = vmul.f32 %v3527, %v3623
        %v3656 = vmul.f32 %v3528, %v3624
        %v3657 = vmul.f32 %v3529, %v3625
        %v3658 = vmul.f32 %v3530, %v3626
        %v3659 = vmul.f32 %v3531, %v3627
        %v3660 = vmul.f32 %v3532, %v3628
        %v3661 = vmul.f32 %v3533, %v3629
        %v3662 = vmul.f32 %v3534, %v3630
        %v3663 = vmul.f32 %v3535, %v3631
        %v3664 = vmul.f32 %v3536, %v3632
        %v3665 = vmul.f32 %v3537, %v3633
        %v3667 = vlaneseq
        %v3668 = vshrl.u32 %v3667, 7
        %v3669 = vsub.s32 0, %v3668
        %v3670 = vrot.slane %v3255, %v3669
        %v3673 = vsel %vm833, %v3634, 0
        %v3676 = vsel %vm833, %v3635, 0
        %v3679 = vsel %vm833, %v3636, 0
        %v3682 = vsel %vm833, %v3637, 0
        %v3685 = vsel %vm833, %v3638, 0
        %v3688 = vsel %vm833, %v3639, 0
        %v3691 = vsel %vm833, %v3640, 0
        %v3694 = vsel %vm833, %v3641, 0
        %v3697 = vsel %vm833, %v3642, 0
        %v3700 = vsel %vm833, %v3643, 0
        %v3703 = vsel %vm833, %v3644, 0
        %v3706 = vsel %vm833, %v3645, 0
        %v3709 = vsel %vm833, %v3646, 0
        %v3712 = vsel %vm833, %v3647, 0
        %v3715 = vsel %vm833, %v3648, 0
        %v3718 = vsel %vm833, %v3649, 0
        %v3721 = vsel %vm833, %v3650, 0
        %v3724 = vsel %vm833, %v3651, 0
        %v3727 = vsel %vm833, %v3652, 0
        %v3730 = vsel %vm833, %v3653, 0
        %v3733 = vsel %vm833, %v3654, 0
        %v3736 = vsel %vm833, %v3655, 0
        %v3739 = vsel %vm833, %v3656, 0
        %v3742 = vsel %vm833, %v3657, 0
        %v3745 = vsel %vm833, %v3658, 0
        %v3748 = vsel %vm833, %v3659, 0
        %v3751 = vsel %vm833, %v3660, 0
        %v3754 = vsel %vm833, %v3661, 0
        %v3757 = vsel %vm833, %v3662, 0
        %v3760 = vsel %vm833, %v3663, 0
        %v3763 = vsel %vm833, %v3664, 0
        %v3766 = vsel %vm833, %v3665, 0
        %3768 = vmatprep.subr.mxu0 0.0
        %3769 = vmatpush1.msra.mxu0 0.0
        %3770 = vmatprep.subr.mxu0 0.0
        %3771 = vmatpush1.msra.mxu0 0.0
        %3772 = vmatprep.subr.mxu0 0.0
        %3773 = vmatpush1.msra.mxu0 0.0
        %3774 = vmatprep.subr.mxu0 0.0
        %3775 = vmatpush1.msra.mxu0 0.0
        %3776 = vmatprep.subr.mxu0 0.0
        %3777 = vmatpush1.msra.mxu0 0.0
        %3778 = vmatprep.subr.mxu0 0.0
        %3779 = vmatpush1.msra.mxu0 0.0
        %3780 = vmatprep.subr.mxu0 0.0
        %3781 = vmatpush1.msra.mxu0 0.0
        %3782 = vmatprep.subr.mxu0 0.0
        %3783 = vmatpush1.msra.mxu0 0.0
        %3784 = vmatprep.subr.mxu0 0.0
        %3785 = vmatpush1.msra.mxu0 %v3253
        %3786 = vmatprep.subr.mxu0 0.0
        %3787 = vmatpush1.msra.mxu0 %v3252
        %3788 = vmatprep.subr.mxu0 0.0
        %3789 = vmatpush1.msra.mxu0 %v3251
        %3790 = vmatprep.subr.mxu0 0.0
        %3791 = vmatpush1.msra.mxu0 %v3250
        %3792 = vmatprep.subr.mxu0 0.0
        %3793 = vmatpush1.msra.mxu0 %v3249
        %3794 = vmatprep.subr.mxu0 0.0
        %3795 = vmatpush1.msra.mxu0 %v3248
        %3796 = vmatprep.subr.mxu0 0.0
        %3797 = vmatpush1.msra.mxu0 %v3247
        %3798 = vmatprep.subr.mxu0 0.0
        %3799 = vmatpush1.msra.mxu0 %v3246
        %3800 = vmatprep.subr.mxu0 0.0
        %3801 = vmatpush2.msra.mxu0 0.0
        %3802 = vmatprep.subr.mxu0 0.0
        %3803 = vmatpush2.msra.mxu0 0.0
        %3804 = vmatprep.subr.mxu0 0.0
        %3805 = vmatpush2.msra.mxu0 0.0
        %3806 = vmatprep.subr.mxu0 0.0
        %3807 = vmatpush2.msra.mxu0 0.0
        %3808 = vmatprep.subr.mxu0 0.0
        %3809 = vmatpush2.msra.mxu0 0.0
        %3810 = vmatprep.subr.mxu0 0.0
        %3811 = vmatpush2.msra.mxu0 0.0
        %3812 = vmatprep.subr.mxu0 0.0
        %3813 = vmatpush2.msra.mxu0 0.0
        %3814 = vmatprep.subr.mxu0 0.0
        %3815 = vmatpush2.msra.mxu0 0.0
        %3816 = vmatprep.subr.mxu0 0.0
        %3817 = vmatpush2.msra.mxu0 0.0
        %3818 = vmatprep.subr.mxu0 0.0
        %3819 = vmatpush2.msra.mxu0 0.0
        %3820 = vmatprep.subr.mxu0 0.0
        %3821 = vmatpush2.msra.mxu0 0.0
        %3822 = vmatprep.subr.mxu0 0.0
        %3823 = vmatpush2.msra.mxu0 0.0
        %3824 = vmatprep.subr.mxu0 0.0
        %3825 = vmatpush2.msra.mxu0 0.0
        %3826 = vmatprep.subr.mxu0 0.0
        %3827 = vmatpush2.msra.mxu0 0.0
        %3828 = vmatprep.subr.mxu0 0.0
        %3829 = vmatpush2.msra.mxu0 0.0
        %3830 = vmatprep.subr.mxu0 0.0
        %3831 = vmatpush2.msra.mxu0 0.0
        %3832 = vmatprep.mubr.f32.mxu0 0.0
        %3833 = vmatmul.mubr.f32.gmra.mxu0 %v3673
        %v3834 = vpop.f32.mrf.mxu0
        %v3835 = vadd.f32 %v3670, %v3834
        %v3836 = vpop.f32.mrf.mxu0
        %3837 = vmatprep.mubr.f32.mxu0 0.0
        %3838 = vmatmul.mubr.f32.gmra.mxu0 %v3676
        %v3839 = vpop.f32.mrf.mxu0
        %v3840 = vadd.f32 %v3670, %v3839
        %v3841 = vpop.f32.mrf.mxu0
        %3842 = vmatprep.mubr.f32.mxu0 0.0
        %3843 = vmatmul.mubr.f32.gmra.mxu0 %v3679
        %v3844 = vpop.f32.mrf.mxu0
        %v3845 = vadd.f32 %v3670, %v3844
        %v3846 = vpop.f32.mrf.mxu0
        %3847 = vmatprep.mubr.f32.mxu0 0.0
        %3848 = vmatmul.mubr.f32.gmra.mxu0 %v3682
        %v3849 = vpop.f32.mrf.mxu0
        %v3850 = vadd.f32 %v3670, %v3849
        %v3851 = vpop.f32.mrf.mxu0
        %3852 = vmatprep.mubr.f32.mxu0 0.0
        %3853 = vmatmul.mubr.f32.gmra.mxu0 %v3685
        %v3854 = vpop.f32.mrf.mxu0
        %v3855 = vadd.f32 %v3670, %v3854
        %v3856 = vpop.f32.mrf.mxu0
        %3857 = vmatprep.mubr.f32.mxu0 0.0
        %3858 = vmatmul.mubr.f32.gmra.mxu0 %v3688
        %v3859 = vpop.f32.mrf.mxu0
        %v3860 = vadd.f32 %v3670, %v3859
        %v3861 = vpop.f32.mrf.mxu0
        %3862 = vmatprep.mubr.f32.mxu0 0.0
        %3863 = vmatmul.mubr.f32.gmra.mxu0 %v3691
        %v3864 = vpop.f32.mrf.mxu0
        %v3865 = vadd.f32 %v3670, %v3864
        %v3866 = vpop.f32.mrf.mxu0
        %3867 = vmatprep.mubr.f32.mxu0 0.0
        %3868 = vmatmul.mubr.f32.gmra.mxu0 %v3694
        %v3869 = vpop.f32.mrf.mxu0
        %v3870 = vadd.f32 %v3670, %v3869
        %v3871 = vpop.f32.mrf.mxu0
        %3872 = vmatprep.mubr.f32.mxu0 0.0
        %3873 = vmatmul.mubr.f32.gmra.mxu0 %v3697
        %v3874 = vpop.f32.mrf.mxu0
        %v3875 = vadd.f32 %v3670, %v3874
        %v3876 = vpop.f32.mrf.mxu0
        %3877 = vmatprep.mubr.f32.mxu0 0.0
        %3878 = vmatmul.mubr.f32.gmra.mxu0 %v3700
        %v3879 = vpop.f32.mrf.mxu0
        %v3880 = vadd.f32 %v3670, %v3879
        %v3881 = vpop.f32.mrf.mxu0
        %3882 = vmatprep.mubr.f32.mxu0 0.0
        %3883 = vmatmul.mubr.f32.gmra.mxu0 %v3703
        %v3884 = vpop.f32.mrf.mxu0
        %v3885 = vadd.f32 %v3670, %v3884
        %v3886 = vpop.f32.mrf.mxu0
        %3887 = vmatprep.mubr.f32.mxu0 0.0
        %3888 = vmatmul.mubr.f32.gmra.mxu0 %v3706
        %v3889 = vpop.f32.mrf.mxu0
        %v3890 = vadd.f32 %v3670, %v3889
        %v3891 = vpop.f32.mrf.mxu0
        %3892 = vmatprep.mubr.f32.mxu0 0.0
        %3893 = vmatmul.mubr.f32.gmra.mxu0 %v3709
        %v3894 = vpop.f32.mrf.mxu0
        %v3895 = vadd.f32 %v3670, %v3894
        %v3896 = vpop.f32.mrf.mxu0
        %3897 = vmatprep.mubr.f32.mxu0 0.0
        %3898 = vmatmul.mubr.f32.gmra.mxu0 %v3712
        %v3899 = vpop.f32.mrf.mxu0
        %v3900 = vadd.f32 %v3670, %v3899
        %v3901 = vpop.f32.mrf.mxu0
        %3902 = vmatprep.mubr.f32.mxu0 0.0
        %3903 = vmatmul.mubr.f32.gmra.mxu0 %v3715
        %v3904 = vpop.f32.mrf.mxu0
        %v3905 = vadd.f32 %v3670, %v3904
        %v3906 = vpop.f32.mrf.mxu0
        %3907 = vmatprep.mubr.f32.mxu0 0.0
        %3908 = vmatmul.mubr.f32.gmra.mxu0 %v3718
        %v3909 = vpop.f32.mrf.mxu0
        %v3910 = vadd.f32 %v3670, %v3909
        %v3911 = vpop.f32.mrf.mxu0
        %3912 = vmatprep.mubr.f32.mxu0 0.0
        %3913 = vmatmul.mubr.f32.gmra.mxu0 %v3721
        %v3914 = vpop.f32.mrf.mxu0
        %v3915 = vadd.f32 %v3670, %v3914
        %v3916 = vpop.f32.mrf.mxu0
        %3917 = vmatprep.mubr.f32.mxu0 0.0
        %3918 = vmatmul.mubr.f32.gmra.mxu0 %v3724
        %v3919 = vpop.f32.mrf.mxu0
        %v3920 = vadd.f32 %v3670, %v3919
        %v3921 = vpop.f32.mrf.mxu0
        %3922 = vmatprep.mubr.f32.mxu0 0.0
        %3923 = vmatmul.mubr.f32.gmra.mxu0 %v3727
        %v3924 = vpop.f32.mrf.mxu0
        %v3925 = vadd.f32 %v3670, %v3924
        %v3926 = vpop.f32.mrf.mxu0
        %3927 = vmatprep.mubr.f32.mxu0 0.0
        %3928 = vmatmul.mubr.f32.gmra.mxu0 %v3730
        %v3929 = vpop.f32.mrf.mxu0
        %v3930 = vadd.f32 %v3670, %v3929
        %v3931 = vpop.f32.mrf.mxu0
        %3932 = vmatprep.mubr.f32.mxu0 0.0
        %3933 = vmatmul.mubr.f32.gmra.mxu0 %v3733
        %v3934 = vpop.f32.mrf.mxu0
        %v3935 = vadd.f32 %v3670, %v3934
        %v3936 = vpop.f32.mrf.mxu0
        %3937 = vmatprep.mubr.f32.mxu0 0.0
        %3938 = vmatmul.mubr.f32.gmra.mxu0 %v3736
        %v3939 = vpop.f32.mrf.mxu0
        %v3940 = vadd.f32 %v3670, %v3939
        %v3941 = vpop.f32.mrf.mxu0
        %3942 = vmatprep.mubr.f32.mxu0 0.0
        %3943 = vmatmul.mubr.f32.gmra.mxu0 %v3739
        %v3944 = vpop.f32.mrf.mxu0
        %v3945 = vadd.f32 %v3670, %v3944
        %v3946 = vpop.f32.mrf.mxu0
        %3947 = vmatprep.mubr.f32.mxu0 0.0
        %3948 = vmatmul.mubr.f32.gmra.mxu0 %v3742
        %v3949 = vpop.f32.mrf.mxu0
        %v3950 = vadd.f32 %v3670, %v3949
        %v3951 = vpop.f32.mrf.mxu0
        %3952 = vmatprep.mubr.f32.mxu0 0.0
        %3953 = vmatmul.mubr.f32.gmra.mxu0 %v3745
        %v3954 = vpop.f32.mrf.mxu0
        %v3955 = vadd.f32 %v3670, %v3954
        %v3956 = vpop.f32.mrf.mxu0
        %3957 = vmatprep.mubr.f32.mxu0 0.0
        %3958 = vmatmul.mubr.f32.gmra.mxu0 %v3748
        %v3959 = vpop.f32.mrf.mxu0
        %v3960 = vadd.f32 %v3670, %v3959
        %v3961 = vpop.f32.mrf.mxu0
        %3962 = vmatprep.mubr.f32.mxu0 0.0
        %3963 = vmatmul.mubr.f32.gmra.mxu0 %v3751
        %v3964 = vpop.f32.mrf.mxu0
        %v3965 = vadd.f32 %v3670, %v3964
        %v3966 = vpop.f32.mrf.mxu0
        %3967 = vmatprep.mubr.f32.mxu0 0.0
        %3968 = vmatmul.mubr.f32.gmra.mxu0 %v3754
        %v3969 = vpop.f32.mrf.mxu0
        %v3970 = vadd.f32 %v3670, %v3969
        %v3971 = vpop.f32.mrf.mxu0
        %3972 = vmatprep.mubr.f32.mxu0 0.0
        %3973 = vmatmul.mubr.f32.gmra.mxu0 %v3757
        %v3974 = vpop.f32.mrf.mxu0
        %v3975 = vadd.f32 %v3670, %v3974
        %v3976 = vpop.f32.mrf.mxu0
        %3977 = vmatprep.mubr.f32.mxu0 0.0
        %3978 = vmatmul.mubr.f32.gmra.mxu0 %v3760
        %v3979 = vpop.f32.mrf.mxu0
        %v3980 = vadd.f32 %v3670, %v3979
        %v3981 = vpop.f32.mrf.mxu0
        %3982 = vmatprep.mubr.f32.mxu0 0.0
        %3983 = vmatmul.mubr.f32.gmra.mxu0 %v3763
        %v3984 = vpop.f32.mrf.mxu0
        %v3985 = vadd.f32 %v3670, %v3984
        %v3986 = vpop.f32.mrf.mxu0
        %3987 = vmatprep.mubr.f32.mxu0 0.0
        %3988 = vmatmul.mubr.f32.gmra.mxu0 %v3766
        %v3989 = vpop.f32.mrf.mxu0
        %v3990 = vadd.f32 %v3670, %v3989
        %v3991 = vpop.f32.mrf.mxu0
        %3992 = vdwg.mxu0
        %v3993 = vmul.f32 %v3835, 0.5
        %v3994 = vmul.f32 %v3840, 0.5
        %v3995 = vmul.f32 %v3845, 0.5
        %v3996 = vmul.f32 %v3850, 0.5
        %v3997 = vmul.f32 %v3855, 0.5
        %v3998 = vmul.f32 %v3860, 0.5
        %v3999 = vmul.f32 %v3865, 0.5
        %v4000 = vmul.f32 %v3870, 0.5
        %v4001 = vmul.f32 %v3875, 0.5
        %v4002 = vmul.f32 %v3880, 0.5
        %v4003 = vmul.f32 %v3885, 0.5
        %v4004 = vmul.f32 %v3890, 0.5
        %v4005 = vmul.f32 %v3895, 0.5
        %v4006 = vmul.f32 %v3900, 0.5
        %v4007 = vmul.f32 %v3905, 0.5
        %v4008 = vmul.f32 %v3910, 0.5
        %v4009 = vmul.f32 %v3915, 0.5
        %v4010 = vmul.f32 %v3920, 0.5
        %v4011 = vmul.f32 %v3925, 0.5
        %v4012 = vmul.f32 %v3930, 0.5
        %v4013 = vmul.f32 %v3935, 0.5
        %v4014 = vmul.f32 %v3940, 0.5
        %v4015 = vmul.f32 %v3945, 0.5
        %v4016 = vmul.f32 %v3950, 0.5
        %v4017 = vmul.f32 %v3955, 0.5
        %v4018 = vmul.f32 %v3960, 0.5
        %v4019 = vmul.f32 %v3965, 0.5
        %v4020 = vmul.f32 %v3970, 0.5
        %v4021 = vmul.f32 %v3975, 0.5
        %v4022 = vmul.f32 %v3980, 0.5
        %v4023 = vmul.f32 %v3985, 0.5
        %v4024 = vmul.f32 %v3990, 0.5
        %v4025 = vmul.f32 %v3835, 0.70710677
        %v4026 = vmul.f32 %v3840, 0.70710677
        %v4027 = vmul.f32 %v3845, 0.70710677
        %v4028 = vmul.f32 %v3850, 0.70710677
        %v4029 = vmul.f32 %v3855, 0.70710677
        %v4030 = vmul.f32 %v3860, 0.70710677
        %v4031 = vmul.f32 %v3865, 0.70710677
        %v4032 = vmul.f32 %v3870, 0.70710677
        %v4033 = vmul.f32 %v3875, 0.70710677
        %v4034 = vmul.f32 %v3880, 0.70710677
        %v4035 = vmul.f32 %v3885, 0.70710677
        %v4036 = vmul.f32 %v3890, 0.70710677
        %v4037 = vmul.f32 %v3895, 0.70710677
        %v4038 = vmul.f32 %v3900, 0.70710677
        %v4039 = vmul.f32 %v3905, 0.70710677
        %v4040 = vmul.f32 %v3910, 0.70710677
        %v4041 = vmul.f32 %v3915, 0.70710677
        %v4042 = vmul.f32 %v3920, 0.70710677
        %v4043 = vmul.f32 %v3925, 0.70710677
        %v4044 = vmul.f32 %v3930, 0.70710677
        %v4045 = vmul.f32 %v3935, 0.70710677
        %v4046 = vmul.f32 %v3940, 0.70710677
        %v4047 = vmul.f32 %v3945, 0.70710677
        %v4048 = vmul.f32 %v3950, 0.70710677
        %v4049 = vmul.f32 %v3955, 0.70710677
        %v4050 = vmul.f32 %v3960, 0.70710677
        %v4051 = vmul.f32 %v3965, 0.70710677
        %v4052 = vmul.f32 %v3970, 0.70710677
        %v4053 = vmul.f32 %v3975, 0.70710677
        %v4054 = vmul.f32 %v3980, 0.70710677
        %v4055 = vmul.f32 %v3985, 0.70710677
        %v4056 = vmul.f32 %v3990, 0.70710677
        %v4057 = verf.f32.pop %v4025
        %v4058 = verf.f32.pop %v4026
        %v4059 = verf.f32.pop %v4027
        %v4060 = verf.f32.pop %v4028
        %v4061 = verf.f32.pop %v4029
        %v4062 = verf.f32.pop %v4030
        %v4063 = verf.f32.pop %v4031
        %v4064 = verf.f32.pop %v4032
        %v4065 = verf.f32.pop %v4033
        %v4066 = verf.f32.pop %v4034
        %v4067 = verf.f32.pop %v4035
        %v4068 = verf.f32.pop %v4036
        %v4069 = verf.f32.pop %v4037
        %v4070 = verf.f32.pop %v4038
        %v4071 = verf.f32.pop %v4039
        %v4072 = verf.f32.pop %v4040
        %v4073 = verf.f32.pop %v4041
        %v4074 = verf.f32.pop %v4042
        %v4075 = verf.f32.pop %v4043
        %v4076 = verf.f32.pop %v4044
        %v4077 = verf.f32.pop %v4045
        %v4078 = verf.f32.pop %v4046
        %v4079 = verf.f32.pop %v4047
        %v4080 = verf.f32.pop %v4048
        %v4081 = verf.f32.pop %v4049
        %v4082 = verf.f32.pop %v4050
        %v4083 = verf.f32.pop %v4051
        %v4084 = verf.f32.pop %v4052
        %v4085 = verf.f32.pop %v4053
        %v4086 = verf.f32.pop %v4054
        %v4087 = verf.f32.pop %v4055
        %v4088 = verf.f32.pop %v4056
        %v4089 = vadd.f32 %v4057, 1.0
        %v4090 = vadd.f32 %v4058, 1.0
        %v4091 = vadd.f32 %v4059, 1.0
        %v4092 = vadd.f32 %v4060, 1.0
        %v4093 = vadd.f32 %v4061, 1.0
        %v4094 = vadd.f32 %v4062, 1.0
        %v4095 = vadd.f32 %v4063, 1.0
        %v4096 = vadd.f32 %v4064, 1.0
        %v4097 = vadd.f32 %v4065, 1.0
        %v4098 = vadd.f32 %v4066, 1.0
        %v4099 = vadd.f32 %v4067, 1.0
        %v4100 = vadd.f32 %v4068, 1.0
        %v4101 = vadd.f32 %v4069, 1.0
        %v4102 = vadd.f32 %v4070, 1.0
        %v4103 = vadd.f32 %v4071, 1.0
        %v4104 = vadd.f32 %v4072, 1.0
        %v4105 = vadd.f32 %v4073, 1.0
        %v4106 = vadd.f32 %v4074, 1.0
        %v4107 = vadd.f32 %v4075, 1.0
        %v4108 = vadd.f32 %v4076, 1.0
        %v4109 = vadd.f32 %v4077, 1.0
        %v4110 = vadd.f32 %v4078, 1.0
        %v4111 = vadd.f32 %v4079, 1.0
        %v4112 = vadd.f32 %v4080, 1.0
        %v4113 = vadd.f32 %v4081, 1.0
        %v4114 = vadd.f32 %v4082, 1.0
        %v4115 = vadd.f32 %v4083, 1.0
        %v4116 = vadd.f32 %v4084, 1.0
        %v4117 = vadd.f32 %v4085, 1.0
        %v4118 = vadd.f32 %v4086, 1.0
        %v4119 = vadd.f32 %v4087, 1.0
        %v4120 = vadd.f32 %v4088, 1.0
        %v4121 = vmul.f32 %v3993, %v4089
        %v4122 = vmul.f32 %v3994, %v4090
        %v4123 = vmul.f32 %v3995, %v4091
        %v4124 = vmul.f32 %v3996, %v4092
        %v4125 = vmul.f32 %v3997, %v4093
        %v4126 = vmul.f32 %v3998, %v4094
        %v4127 = vmul.f32 %v3999, %v4095
        %v4128 = vmul.f32 %v4000, %v4096
        %v4129 = vmul.f32 %v4001, %v4097
        %v4130 = vmul.f32 %v4002, %v4098
        %v4131 = vmul.f32 %v4003, %v4099
        %v4132 = vmul.f32 %v4004, %v4100
        %v4133 = vmul.f32 %v4005, %v4101
        %v4134 = vmul.f32 %v4006, %v4102
        %v4135 = vmul.f32 %v4007, %v4103
        %v4136 = vmul.f32 %v4008, %v4104
        %v4137 = vmul.f32 %v4009, %v4105
        %v4138 = vmul.f32 %v4010, %v4106
        %v4139 = vmul.f32 %v4011, %v4107
        %v4140 = vmul.f32 %v4012, %v4108
        %v4141 = vmul.f32 %v4013, %v4109
        %v4142 = vmul.f32 %v4014, %v4110
        %v4143 = vmul.f32 %v4015, %v4111
        %v4144 = vmul.f32 %v4016, %v4112
        %v4145 = vmul.f32 %v4017, %v4113
        %v4146 = vmul.f32 %v4018, %v4114
        %v4147 = vmul.f32 %v4019, %v4115
        %v4148 = vmul.f32 %v4020, %v4116
        %v4149 = vmul.f32 %v4021, %v4117
        %v4150 = vmul.f32 %v4022, %v4118
        %v4151 = vmul.f32 %v4023, %v4119
        %v4152 = vmul.f32 %v4024, %v4120
        %v4154 = vlaneseq
        %v4155 = vshrl.u32 %v4154, 7
        %v4156 = vsub.s32 0, %v4155
        %v4157 = vrot.slane %v3274, %v4156
        %v4158 = vlaneseq
        %v4159 = vshrl.u32 %v4158, 7
        %v4160 = vsub.s32 1, %v4159
        %v4161 = vrot.slane %v3274, %v4160
        %v4165 = vsel %vm833, %v4121, 0
        %v4168 = vsel %vm833, %v4122, 0
        %v4171 = vsel %vm833, %v4123, 0
        %v4174 = vsel %vm833, %v4124, 0
        %v4177 = vsel %vm833, %v4125, 0
        %v4180 = vsel %vm833, %v4126, 0
        %v4183 = vsel %vm833, %v4127, 0
        %v4186 = vsel %vm833, %v4128, 0
        %v4189 = vsel %vm833, %v4129, 0
        %v4192 = vsel %vm833, %v4130, 0
        %v4195 = vsel %vm833, %v4131, 0
        %v4198 = vsel %vm833, %v4132, 0
        %v4201 = vsel %vm833, %v4133, 0
        %v4204 = vsel %vm833, %v4134, 0
        %v4207 = vsel %vm833, %v4135, 0
        %v4210 = vsel %vm833, %v4136, 0
        %v4213 = vsel %vm833, %v4137, 0
        %v4216 = vsel %vm833, %v4138, 0
        %v4219 = vsel %vm833, %v4139, 0
        %v4222 = vsel %vm833, %v4140, 0
        %v4225 = vsel %vm833, %v4141, 0
        %v4228 = vsel %vm833, %v4142, 0
        %v4231 = vsel %vm833, %v4143, 0
        %v4234 = vsel %vm833, %v4144, 0
        %v4237 = vsel %vm833, %v4145, 0
        %v4240 = vsel %vm833, %v4146, 0
        %v4243 = vsel %vm833, %v4147, 0
        %v4246 = vsel %vm833, %v4148, 0
        %v4249 = vsel %vm833, %v4149, 0
        %v4252 = vsel %vm833, %v4150, 0
        %v4255 = vsel %vm833, %v4151, 0
        %v4258 = vsel %vm833, %v4152, 0
        %4260 = vmatprep.subr.mxu0 0.0
        %4261 = vmatpush1.msra.mxu0 0.0
        %4262 = vmatprep.subr.mxu0 0.0
        %4263 = vmatpush1.msra.mxu0 0.0
        %4264 = vmatprep.subr.mxu0 0.0
        %4265 = vmatpush1.msra.mxu0 0.0
        %4266 = vmatprep.subr.mxu0 0.0
        %4267 = vmatpush1.msra.mxu0 0.0
        %4268 = vmatprep.subr.mxu0 0.0
        %4269 = vmatpush1.msra.mxu0 0.0
        %4270 = vmatprep.subr.mxu0 0.0
        %4271 = vmatpush1.msra.mxu0 0.0
        %4272 = vmatprep.subr.mxu0 0.0
        %4273 = vmatpush1.msra.mxu0 0.0
        %4274 = vmatprep.subr.mxu0 0.0
        %4275 = vmatpush1.msra.mxu0 0.0
        %4276 = vmatprep.subr.mxu0 %v3272
        %4277 = vmatpush1.msra.mxu0 %v3271
        %4278 = vmatprep.subr.mxu0 %v3270
        %4279 = vmatpush1.msra.mxu0 %v3269
        %4280 = vmatprep.subr.mxu0 %v3268
        %4281 = vmatpush1.msra.mxu0 %v3267
        %4282 = vmatprep.subr.mxu0 %v3266
        %4283 = vmatpush1.msra.mxu0 %v3265
        %4284 = vmatprep.subr.mxu0 %v3264
        %4285 = vmatpush1.msra.mxu0 %v3263
        %4286 = vmatprep.subr.mxu0 %v3262
        %4287 = vmatpush1.msra.mxu0 %v3261
        %4288 = vmatprep.subr.mxu0 %v3260
        %4289 = vmatpush1.msra.mxu0 %v3259
        %4290 = vmatprep.subr.mxu0 %v3258
        %4291 = vmatpush1.msra.mxu0 %v3257
        %4292 = vmatprep.subr.mxu0 0.0
        %4293 = vmatpush2.msra.mxu0 0.0
        %4294 = vmatprep.subr.mxu0 0.0
        %4295 = vmatpush2.msra.mxu0 0.0
        %4296 = vmatprep.subr.mxu0 0.0
        %4297 = vmatpush2.msra.mxu0 0.0
        %4298 = vmatprep.subr.mxu0 0.0
        %4299 = vmatpush2.msra.mxu0 0.0
        %4300 = vmatprep.subr.mxu0 0.0
        %4301 = vmatpush2.msra.mxu0 0.0
        %4302 = vmatprep.subr.mxu0 0.0
        %4303 = vmatpush2.msra.mxu0 0.0
        %4304 = vmatprep.subr.mxu0 0.0
        %4305 = vmatpush2.msra.mxu0 0.0
        %4306 = vmatprep.subr.mxu0 0.0
        %4307 = vmatpush2.msra.mxu0 0.0
        %4308 = vmatprep.subr.mxu0 0.0
        %4309 = vmatpush2.msra.mxu0 0.0
        %4310 = vmatprep.subr.mxu0 0.0
        %4311 = vmatpush2.msra.mxu0 0.0
        %4312 = vmatprep.subr.mxu0 0.0
        %4313 = vmatpush2.msra.mxu0 0.0
        %4314 = vmatprep.subr.mxu0 0.0
        %4315 = vmatpush2.msra.mxu0 0.0
        %4316 = vmatprep.subr.mxu0 0.0
        %4317 = vmatpush2.msra.mxu0 0.0
        %4318 = vmatprep.subr.mxu0 0.0
        %4319 = vmatpush2.msra.mxu0 0.0
        %4320 = vmatprep.subr.mxu0 0.0
        %4321 = vmatpush2.msra.mxu0 0.0
        %4322 = vmatprep.subr.mxu0 0.0
        %4323 = vmatpush2.msra.mxu0 0.0
        %4324 = vmatprep.mubr.f32.mxu0 0.0
        %4325 = vmatmul.mubr.f32.gmra.mxu0 %v4165
        %v4326 = vpop.f32.mrf.mxu0
        %v4327 = vadd.f32 %v4157, %v4326
        %v4328 = vpop.f32.mrf.mxu0
        %v4329 = vadd.f32 %v4161, %v4328
        %4330 = vmatprep.mubr.f32.mxu0 0.0
        %4331 = vmatmul.mubr.f32.gmra.mxu0 %v4168
        %v4332 = vpop.f32.mrf.mxu0
        %v4333 = vadd.f32 %v4157, %v4332
        %v4334 = vpop.f32.mrf.mxu0
        %v4335 = vadd.f32 %v4161, %v4334
        %4336 = vmatprep.mubr.f32.mxu0 0.0
        %4337 = vmatmul.mubr.f32.gmra.mxu0 %v4171
        %v4338 = vpop.f32.mrf.mxu0
        %v4339 = vadd.f32 %v4157, %v4338
        %v4340 = vpop.f32.mrf.mxu0
        %v4341 = vadd.f32 %v4161, %v4340
        %4342 = vmatprep.mubr.f32.mxu0 0.0
        %4343 = vmatmul.mubr.f32.gmra.mxu0 %v4174
        %v4344 = vpop.f32.mrf.mxu0
        %v4345 = vadd.f32 %v4157, %v4344
        %v4346 = vpop.f32.mrf.mxu0
        %v4347 = vadd.f32 %v4161, %v4346
        %4348 = vmatprep.mubr.f32.mxu0 0.0
        %4349 = vmatmul.mubr.f32.gmra.mxu0 %v4177
        %v4350 = vpop.f32.mrf.mxu0
        %v4351 = vadd.f32 %v4157, %v4350
        %v4352 = vpop.f32.mrf.mxu0
        %v4353 = vadd.f32 %v4161, %v4352
        %4354 = vmatprep.mubr.f32.mxu0 0.0
        %4355 = vmatmul.mubr.f32.gmra.mxu0 %v4180
        %v4356 = vpop.f32.mrf.mxu0
        %v4357 = vadd.f32 %v4157, %v4356
        %v4358 = vpop.f32.mrf.mxu0
        %v4359 = vadd.f32 %v4161, %v4358
        %4360 = vmatprep.mubr.f32.mxu0 0.0
        %4361 = vmatmul.mubr.f32.gmra.mxu0 %v4183
        %v4362 = vpop.f32.mrf.mxu0
        %v4363 = vadd.f32 %v4157, %v4362
        %v4364 = vpop.f32.mrf.mxu0
        %v4365 = vadd.f32 %v4161, %v4364
        %4366 = vmatprep.mubr.f32.mxu0 0.0
        %4367 = vmatmul.mubr.f32.gmra.mxu0 %v4186
        %v4368 = vpop.f32.mrf.mxu0
        %v4369 = vadd.f32 %v4157, %v4368
        %v4370 = vpop.f32.mrf.mxu0
        %v4371 = vadd.f32 %v4161, %v4370
        %4372 = vmatprep.mubr.f32.mxu0 0.0
        %4373 = vmatmul.mubr.f32.gmra.mxu0 %v4189
        %v4374 = vpop.f32.mrf.mxu0
        %v4375 = vadd.f32 %v4157, %v4374
        %v4376 = vpop.f32.mrf.mxu0
        %v4377 = vadd.f32 %v4161, %v4376
        %4378 = vmatprep.mubr.f32.mxu0 0.0
        %4379 = vmatmul.mubr.f32.gmra.mxu0 %v4192
        %v4380 = vpop.f32.mrf.mxu0
        %v4381 = vadd.f32 %v4157, %v4380
        %v4382 = vpop.f32.mrf.mxu0
        %v4383 = vadd.f32 %v4161, %v4382
        %4384 = vmatprep.mubr.f32.mxu0 0.0
        %4385 = vmatmul.mubr.f32.gmra.mxu0 %v4195
        %v4386 = vpop.f32.mrf.mxu0
        %v4387 = vadd.f32 %v4157, %v4386
        %v4388 = vpop.f32.mrf.mxu0
        %v4389 = vadd.f32 %v4161, %v4388
        %4390 = vmatprep.mubr.f32.mxu0 0.0
        %4391 = vmatmul.mubr.f32.gmra.mxu0 %v4198
        %v4392 = vpop.f32.mrf.mxu0
        %v4393 = vadd.f32 %v4157, %v4392
        %v4394 = vpop.f32.mrf.mxu0
        %v4395 = vadd.f32 %v4161, %v4394
        %4396 = vmatprep.mubr.f32.mxu0 0.0
        %4397 = vmatmul.mubr.f32.gmra.mxu0 %v4201
        %v4398 = vpop.f32.mrf.mxu0
        %v4399 = vadd.f32 %v4157, %v4398
        %v4400 = vpop.f32.mrf.mxu0
        %v4401 = vadd.f32 %v4161, %v4400
        %4402 = vmatprep.mubr.f32.mxu0 0.0
        %4403 = vmatmul.mubr.f32.gmra.mxu0 %v4204
        %v4404 = vpop.f32.mrf.mxu0
        %v4405 = vadd.f32 %v4157, %v4404
        %v4406 = vpop.f32.mrf.mxu0
        %v4407 = vadd.f32 %v4161, %v4406
        %4408 = vmatprep.mubr.f32.mxu0 0.0
        %4409 = vmatmul.mubr.f32.gmra.mxu0 %v4207
        %v4410 = vpop.f32.mrf.mxu0
        %v4411 = vadd.f32 %v4157, %v4410
        %v4412 = vpop.f32.mrf.mxu0
        %v4413 = vadd.f32 %v4161, %v4412
        %4414 = vmatprep.mubr.f32.mxu0 0.0
        %4415 = vmatmul.mubr.f32.gmra.mxu0 %v4210
        %v4416 = vpop.f32.mrf.mxu0
        %v4417 = vadd.f32 %v4157, %v4416
        %v4418 = vpop.f32.mrf.mxu0
        %v4419 = vadd.f32 %v4161, %v4418
        %4420 = vmatprep.mubr.f32.mxu0 0.0
        %4421 = vmatmul.mubr.f32.gmra.mxu0 %v4213
        %v4422 = vpop.f32.mrf.mxu0
        %v4423 = vadd.f32 %v4157, %v4422
        %v4424 = vpop.f32.mrf.mxu0
        %v4425 = vadd.f32 %v4161, %v4424
        %4426 = vmatprep.mubr.f32.mxu0 0.0
        %4427 = vmatmul.mubr.f32.gmra.mxu0 %v4216
        %v4428 = vpop.f32.mrf.mxu0
        %v4429 = vadd.f32 %v4157, %v4428
        %v4430 = vpop.f32.mrf.mxu0
        %v4431 = vadd.f32 %v4161, %v4430
        %4432 = vmatprep.mubr.f32.mxu0 0.0
        %4433 = vmatmul.mubr.f32.gmra.mxu0 %v4219
        %v4434 = vpop.f32.mrf.mxu0
        %v4435 = vadd.f32 %v4157, %v4434
        %v4436 = vpop.f32.mrf.mxu0
        %v4437 = vadd.f32 %v4161, %v4436
        %4438 = vmatprep.mubr.f32.mxu0 0.0
        %4439 = vmatmul.mubr.f32.gmra.mxu0 %v4222
        %v4440 = vpop.f32.mrf.mxu0
        %v4441 = vadd.f32 %v4157, %v4440
        %v4442 = vpop.f32.mrf.mxu0
        %v4443 = vadd.f32 %v4161, %v4442
        %4444 = vmatprep.mubr.f32.mxu0 0.0
        %4445 = vmatmul.mubr.f32.gmra.mxu0 %v4225
        %v4446 = vpop.f32.mrf.mxu0
        %v4447 = vadd.f32 %v4157, %v4446
        %v4448 = vpop.f32.mrf.mxu0
        %v4449 = vadd.f32 %v4161, %v4448
        %4450 = vmatprep.mubr.f32.mxu0 0.0
        %4451 = vmatmul.mubr.f32.gmra.mxu0 %v4228
        %v4452 = vpop.f32.mrf.mxu0
        %v4453 = vadd.f32 %v4157, %v4452
        %v4454 = vpop.f32.mrf.mxu0
        %v4455 = vadd.f32 %v4161, %v4454
        %4456 = vmatprep.mubr.f32.mxu0 0.0
        %4457 = vmatmul.mubr.f32.gmra.mxu0 %v4231
        %v4458 = vpop.f32.mrf.mxu0
        %v4459 = vadd.f32 %v4157, %v4458
        %v4460 = vpop.f32.mrf.mxu0
        %v4461 = vadd.f32 %v4161, %v4460
        %4462 = vmatprep.mubr.f32.mxu0 0.0
        %4463 = vmatmul.mubr.f32.gmra.mxu0 %v4234
        %v4464 = vpop.f32.mrf.mxu0
        %v4465 = vadd.f32 %v4157, %v4464
        %v4466 = vpop.f32.mrf.mxu0
        %v4467 = vadd.f32 %v4161, %v4466
        %4468 = vmatprep.mubr.f32.mxu0 0.0
        %4469 = vmatmul.mubr.f32.gmra.mxu0 %v4237
        %v4470 = vpop.f32.mrf.mxu0
        %v4471 = vadd.f32 %v4157, %v4470
        %v4472 = vpop.f32.mrf.mxu0
        %v4473 = vadd.f32 %v4161, %v4472
        %4474 = vmatprep.mubr.f32.mxu0 0.0
        %4475 = vmatmul.mubr.f32.gmra.mxu0 %v4240
        %v4476 = vpop.f32.mrf.mxu0
        %v4477 = vadd.f32 %v4157, %v4476
        %v4478 = vpop.f32.mrf.mxu0
        %v4479 = vadd.f32 %v4161, %v4478
        %4480 = vmatprep.mubr.f32.mxu0 0.0
        %4481 = vmatmul.mubr.f32.gmra.mxu0 %v4243
        %v4482 = vpop.f32.mrf.mxu0
        %v4483 = vadd.f32 %v4157, %v4482
        %v4484 = vpop.f32.mrf.mxu0
        %v4485 = vadd.f32 %v4161, %v4484
        %4486 = vmatprep.mubr.f32.mxu0 0.0
        %4487 = vmatmul.mubr.f32.gmra.mxu0 %v4246
        %v4488 = vpop.f32.mrf.mxu0
        %v4489 = vadd.f32 %v4157, %v4488
        %v4490 = vpop.f32.mrf.mxu0
        %v4491 = vadd.f32 %v4161, %v4490
        %4492 = vmatprep.mubr.f32.mxu0 0.0
        %4493 = vmatmul.mubr.f32.gmra.mxu0 %v4249
        %v4494 = vpop.f32.mrf.mxu0
        %v4495 = vadd.f32 %v4157, %v4494
        %v4496 = vpop.f32.mrf.mxu0
        %v4497 = vadd.f32 %v4161, %v4496
        %4498 = vmatprep.mubr.f32.mxu0 0.0
        %4499 = vmatmul.mubr.f32.gmra.mxu0 %v4252
        %v4500 = vpop.f32.mrf.mxu0
        %v4501 = vadd.f32 %v4157, %v4500
        %v4502 = vpop.f32.mrf.mxu0
        %v4503 = vadd.f32 %v4161, %v4502
        %4504 = vmatprep.mubr.f32.mxu0 0.0
        %4505 = vmatmul.mubr.f32.gmra.mxu0 %v4255
        %v4506 = vpop.f32.mrf.mxu0
        %v4507 = vadd.f32 %v4157, %v4506
        %v4508 = vpop.f32.mrf.mxu0
        %v4509 = vadd.f32 %v4161, %v4508
        %4510 = vmatprep.mubr.f32.mxu0 0.0
        %4511 = vmatmul.mubr.f32.gmra.mxu0 %v4258
        %v4512 = vpop.f32.mrf.mxu0
        %v4513 = vadd.f32 %v4157, %v4512
        %v4514 = vpop.f32.mrf.mxu0
        %v4515 = vadd.f32 %v4161, %v4514
        %4516 = vdwg.mxu0
        %v4517 = vmul.f32 %v4327, 1.442695
        %v4518 = vpow.pop %v4517
        %v4519 = vmul.f32 %v4333, 1.442695
        %v4520 = vpow.pop %v4519
        %v4521 = vmul.f32 %v4339, 1.442695
        %v4522 = vpow.pop %v4521
        %v4523 = vmul.f32 %v4345, 1.442695
        %v4524 = vpow.pop %v4523
        %v4525 = vmul.f32 %v4351, 1.442695
        %v4526 = vpow.pop %v4525
        %v4527 = vmul.f32 %v4357, 1.442695
        %v4528 = vpow.pop %v4527
        %v4529 = vmul.f32 %v4363, 1.442695
        %v4530 = vpow.pop %v4529
        %v4531 = vmul.f32 %v4369, 1.442695
        %v4532 = vpow.pop %v4531
        %v4533 = vmul.f32 %v4375, 1.442695
        %v4534 = vpow.pop %v4533
        %v4535 = vmul.f32 %v4381, 1.442695
        %v4536 = vpow.pop %v4535
        %v4537 = vmul.f32 %v4387, 1.442695
        %v4538 = vpow.pop %v4537
        %v4539 = vmul.f32 %v4393, 1.442695
        %v4540 = vpow.pop %v4539
        %v4541 = vmul.f32 %v4399, 1.442695
        %v4542 = vpow.pop %v4541
        %v4543 = vmul.f32 %v4405, 1.442695
        %v4544 = vpow.pop %v4543
        %v4545 = vmul.f32 %v4411, 1.442695
        %v4546 = vpow.pop %v4545
        %v4547 = vmul.f32 %v4417, 1.442695
        %v4548 = vpow.pop %v4547
        %v4549 = vmul.f32 %v4423, 1.442695
        %v4550 = vpow.pop %v4549
        %v4551 = vmul.f32 %v4429, 1.442695
        %v4552 = vpow.pop %v4551
        %v4553 = vmul.f32 %v4435, 1.442695
        %v4554 = vpow.pop %v4553
        %v4555 = vmul.f32 %v4441, 1.442695
        %v4556 = vpow.pop %v4555
        %v4557 = vmul.f32 %v4447, 1.442695
        %v4558 = vpow.pop %v4557
        %v4559 = vmul.f32 %v4453, 1.442695
        %v4560 = vpow.pop %v4559
        %v4561 = vmul.f32 %v4459, 1.442695
        %v4562 = vpow.pop %v4561
        %v4563 = vmul.f32 %v4465, 1.442695
        %v4564 = vpow.pop %v4563
        %v4565 = vmul.f32 %v4471, 1.442695
        %v4566 = vpow.pop %v4565
        %v4567 = vmul.f32 %v4477, 1.442695
        %v4568 = vpow.pop %v4567
        %v4569 = vmul.f32 %v4483, 1.442695
        %v4570 = vpow.pop %v4569
        %v4571 = vmul.f32 %v4489, 1.442695
        %v4572 = vpow.pop %v4571
        %v4573 = vmul.f32 %v4495, 1.442695
        %v4574 = vpow.pop %v4573
        %v4575 = vmul.f32 %v4501, 1.442695
        %v4576 = vpow.pop %v4575
        %v4577 = vmul.f32 %v4507, 1.442695
        %v4578 = vpow.pop %v4577
        %v4579 = vmul.f32 %v4513, 1.442695
        %v4580 = vpow.pop %v4579
        %v4581 = vmul.f32 %v4518, %v1775
        %v4582 = vmul.f32 %v4520, %v1776
        %v4583 = vmul.f32 %v4522, %v1777
        %v4584 = vmul.f32 %v4524, %v1778
        %v4585 = vmul.f32 %v4526, %v1779
        %v4586 = vmul.f32 %v4528, %v1780
        %v4587 = vmul.f32 %v4530, %v1781
        %v4588 = vmul.f32 %v4532, %v1782
        %v4589 = vmul.f32 %v4534, %v1783
        %v4590 = vmul.f32 %v4536, %v1784
        %v4591 = vmul.f32 %v4538, %v1785
        %v4592 = vmul.f32 %v4540, %v1786
        %v4593 = vmul.f32 %v4542, %v1787
        %v4594 = vmul.f32 %v4544, %v1788
        %v4595 = vmul.f32 %v4546, %v1789
        %v4596 = vmul.f32 %v4548, %v1790
        %v4597 = vmul.f32 %v4550, %v1791
        %v4598 = vmul.f32 %v4552, %v1792
        %v4599 = vmul.f32 %v4554, %v1793
        %v4600 = vmul.f32 %v4556, %v1794
        %v4601 = vmul.f32 %v4558, %v1795
        %v4602 = vmul.f32 %v4560, %v1796
        %v4603 = vmul.f32 %v4562, %v1797
        %v4604 = vmul.f32 %v4564, %v1798
        %v4605 = vmul.f32 %v4566, %v1799
        %v4606 = vmul.f32 %v4568, %v1800
        %v4607 = vmul.f32 %v4570, %v1801
        %v4608 = vmul.f32 %v4572, %v1802
        %v4609 = vmul.f32 %v4574, %v1803
        %v4610 = vmul.f32 %v4576, %v1804
        %v4611 = vmul.f32 %v4578, %v1805
        %v4612 = vmul.f32 %v4580, %v1806
        %v4613 = vadd.f32 %v4581, %v4329
        %v4614 = vadd.f32 %v4582, %v4335
        %v4615 = vadd.f32 %v4583, %v4341
        %v4616 = vadd.f32 %v4584, %v4347
        %v4617 = vadd.f32 %v4585, %v4353
        %v4618 = vadd.f32 %v4586, %v4359
        %v4619 = vadd.f32 %v4587, %v4365
        %v4620 = vadd.f32 %v4588, %v4371
        %v4621 = vadd.f32 %v4589, %v4377
        %v4622 = vadd.f32 %v4590, %v4383
        %v4623 = vadd.f32 %v4591, %v4389
        %v4624 = vadd.f32 %v4592, %v4395
        %v4625 = vadd.f32 %v4593, %v4401
        %v4626 = vadd.f32 %v4594, %v4407
        %v4627 = vadd.f32 %v4595, %v4413
        %v4628 = vadd.f32 %v4596, %v4419
        %v4629 = vadd.f32 %v4597, %v4425
        %v4630 = vadd.f32 %v4598, %v4431
        %v4631 = vadd.f32 %v4599, %v4437
        %v4632 = vadd.f32 %v4600, %v4443
        %v4633 = vadd.f32 %v4601, %v4449
        %v4634 = vadd.f32 %v4602, %v4455
        %v4635 = vadd.f32 %v4603, %v4461
        %v4636 = vadd.f32 %v4604, %v4467
        %v4637 = vadd.f32 %v4605, %v4473
        %v4638 = vadd.f32 %v4606, %v4479
        %v4639 = vadd.f32 %v4607, %v4485
        %v4640 = vadd.f32 %v4608, %v4491
        %v4641 = vadd.f32 %v4609, %v4497
        %v4642 = vadd.f32 %v4610, %v4503
        %v4643 = vadd.f32 %v4611, %v4509
        %v4644 = vadd.f32 %v4612, %v4515
        %s4645 = scalar_lea.vmem %s1, 384
        %v4646 = vld [vmem:[%s4645] sm:$0xff]
        %v4647 = vld [vmem:[%s4645 + $0x8] sm:$0xff]
        %v4648 = vld [vmem:[%s4645 + $0x10] sm:$0xff]
        %v4649 = vld [vmem:[%s4645 + $0x18] sm:$0xff]
        %v4650 = vld [vmem:[%s4645 + $0x20] sm:$0xff]
        %v4651 = vld [vmem:[%s4645 + $0x28] sm:$0xff]
        %v4652 = vld [vmem:[%s4645 + $0x30] sm:$0xff]
        %v4653 = vld [vmem:[%s4645 + $0x38] sm:$0xff]
        %v4654 = vld [vmem:[%s4645 + $0x40] sm:$0xff]
        %v4655 = vld [vmem:[%s4645 + $0x48] sm:$0xff]
        %v4656 = vld [vmem:[%s4645 + $0x50] sm:$0xff]
        %v4657 = vld [vmem:[%s4645 + $0x58] sm:$0xff]
        %v4658 = vld [vmem:[%s4645 + $0x60] sm:$0xff]
        %v4659 = vld [vmem:[%s4645 + $0x68] sm:$0xff]
        %v4660 = vld [vmem:[%s4645 + $0x70] sm:$0xff]
        %v4661 = vld [vmem:[%s4645 + $0x78] sm:$0xff]
        %s4662 = scalar_lea.vmem [#allocation5], 3
        %v4663 = vld [vmem:[%s4662] sm:$0x1]
        %s4664 = scalar_lea.vmem %s3, 192
        %v4665 = vld [vmem:[%s4664] sm:$0xff]
        %v4666 = vld [vmem:[%s4664 + $0x8] sm:$0xff]
        %v4667 = vld [vmem:[%s4664 + $0x10] sm:$0xff]
        %v4668 = vld [vmem:[%s4664 + $0x18] sm:$0xff]
        %v4669 = vld [vmem:[%s4664 + $0x20] sm:$0xff]
        %v4670 = vld [vmem:[%s4664 + $0x28] sm:$0xff]
        %v4671 = vld [vmem:[%s4664 + $0x30] sm:$0xff]
        %v4672 = vld [vmem:[%s4664 + $0x38] sm:$0xff]
        %s4673 = scalar_lea.vmem [#allocation7], 3
        %v4674 = vld [vmem:[%s4673] sm:$0x1]
        %s4675 = scalar_lea.vmem %s5, 384
        %v4676 = vld [vmem:[%s4675] sm:$0xff]
        %v4677 = vld [vmem:[%s4675 + $0x8] sm:$0xff]
        %v4678 = vld [vmem:[%s4675 + $0x10] sm:$0xff]
        %v4679 = vld [vmem:[%s4675 + $0x18] sm:$0xff]
        %v4680 = vld [vmem:[%s4675 + $0x20] sm:$0xff]
        %v4681 = vld [vmem:[%s4675 + $0x28] sm:$0xff]
        %v4682 = vld [vmem:[%s4675 + $0x30] sm:$0xff]
        %v4683 = vld [vmem:[%s4675 + $0x38] sm:$0xff]
        %v4684 = vld [vmem:[%s4675 + $0x40] sm:$0xff]
        %v4685 = vld [vmem:[%s4675 + $0x48] sm:$0xff]
        %v4686 = vld [vmem:[%s4675 + $0x50] sm:$0xff]
        %v4687 = vld [vmem:[%s4675 + $0x58] sm:$0xff]
        %v4688 = vld [vmem:[%s4675 + $0x60] sm:$0xff]
        %v4689 = vld [vmem:[%s4675 + $0x68] sm:$0xff]
        %v4690 = vld [vmem:[%s4675 + $0x70] sm:$0xff]
        %v4691 = vld [vmem:[%s4675 + $0x78] sm:$0xff]
        %s4692 = scalar_lea.vmem %s6, 6
        %v4693 = vld [vmem:[%s4692] sm:$0x3]
        %v4695 = vlaneseq
        %v4696 = vshrl.u32 %v4695, 7
        %v4697 = vsub.s32 0, %v4696
        %v4698 = vrot.slane %v4663, %v4697
        %4700 = vmatprep.subr.mxu0 0.0
        %4701 = vmatpush1.msra.mxu0 %v4661
        %4702 = vmatprep.subr.mxu0 0.0
        %4703 = vmatpush1.msra.mxu0 %v4660
        %4704 = vmatprep.subr.mxu0 0.0
        %4705 = vmatpush1.msra.mxu0 %v4659
        %4706 = vmatprep.subr.mxu0 0.0
        %4707 = vmatpush1.msra.mxu0 %v4658
        %4708 = vmatprep.subr.mxu0 0.0
        %4709 = vmatpush1.msra.mxu0 %v4657
        %4710 = vmatprep.subr.mxu0 0.0
        %4711 = vmatpush1.msra.mxu0 %v4656
        %4712 = vmatprep.subr.mxu0 0.0
        %4713 = vmatpush1.msra.mxu0 %v4655
        %4714 = vmatprep.subr.mxu0 0.0
        %4715 = vmatpush1.msra.mxu0 %v4654
        %4716 = vmatprep.subr.mxu0 0.0
        %4717 = vmatpush1.msra.mxu0 %v4653
        %4718 = vmatprep.subr.mxu0 0.0
        %4719 = vmatpush1.msra.mxu0 %v4652
        %4720 = vmatprep.subr.mxu0 0.0
        %4721 = vmatpush1.msra.mxu0 %v4651
        %4722 = vmatprep.subr.mxu0 0.0
        %4723 = vmatpush1.msra.mxu0 %v4650
        %4724 = vmatprep.subr.mxu0 0.0
        %4725 = vmatpush1.msra.mxu0 %v4649
        %4726 = vmatprep.subr.mxu0 0.0
        %4727 = vmatpush1.msra.mxu0 %v4648
        %4728 = vmatprep.subr.mxu0 0.0
        %4729 = vmatpush1.msra.mxu0 %v4647
        %4730 = vmatprep.subr.mxu0 0.0
        %4731 = vmatpush1.msra.mxu0 %v4646
        %4732 = vmatprep.subr.mxu0 0.0
        %4733 = vmatpush2.msra.mxu0 0.0
        %4734 = vmatprep.subr.mxu0 0.0
        %4735 = vmatpush2.msra.mxu0 0.0
        %4736 = vmatprep.subr.mxu0 0.0
        %4737 = vmatpush2.msra.mxu0 0.0
        %4738 = vmatprep.subr.mxu0 0.0
        %4739 = vmatpush2.msra.mxu0 0.0
        %4740 = vmatprep.subr.mxu0 0.0
        %4741 = vmatpush2.msra.mxu0 0.0
        %4742 = vmatprep.subr.mxu0 0.0
        %4743 = vmatpush2.msra.mxu0 0.0
        %4744 = vmatprep.subr.mxu0 0.0
        %4745 = vmatpush2.msra.mxu0 0.0
        %4746 = vmatprep.subr.mxu0 0.0
        %4747 = vmatpush2.msra.mxu0 0.0
        %4748 = vmatprep.subr.mxu0 0.0
        %4749 = vmatpush2.msra.mxu0 0.0
        %4750 = vmatprep.subr.mxu0 0.0
        %4751 = vmatpush2.msra.mxu0 0.0
        %4752 = vmatprep.subr.mxu0 0.0
        %4753 = vmatpush2.msra.mxu0 0.0
        %4754 = vmatprep.subr.mxu0 0.0
        %4755 = vmatpush2.msra.mxu0 0.0
        %4756 = vmatprep.subr.mxu0 0.0
        %4757 = vmatpush2.msra.mxu0 0.0
        %4758 = vmatprep.subr.mxu0 0.0
        %4759 = vmatpush2.msra.mxu0 0.0
        %4760 = vmatprep.subr.mxu0 0.0
        %4761 = vmatpush2.msra.mxu0 0.0
        %4762 = vmatprep.subr.mxu0 0.0
        %4763 = vmatpush2.msra.mxu0 0.0
        %4764 = vmatprep.mubr.f32.mxu0 0.0
        %4765 = vmatmul.mubr.f32.gmra.mxu0 %v4613
        %v4766 = vpop.f32.mrf.mxu0
        %v4767 = vadd.f32 %v4698, %v4766
        %v4768 = vpop.f32.mrf.mxu0
        %4769 = vmatprep.mubr.f32.mxu0 0.0
        %4770 = vmatmul.mubr.f32.gmra.mxu0 %v4614
        %v4771 = vpop.f32.mrf.mxu0
        %v4772 = vadd.f32 %v4698, %v4771
        %v4773 = vpop.f32.mrf.mxu0
        %4774 = vmatprep.mubr.f32.mxu0 0.0
        %4775 = vmatmul.mubr.f32.gmra.mxu0 %v4615
        %v4776 = vpop.f32.mrf.mxu0
        %v4777 = vadd.f32 %v4698, %v4776
        %v4778 = vpop.f32.mrf.mxu0
        %4779 = vmatprep.mubr.f32.mxu0 0.0
        %4780 = vmatmul.mubr.f32.gmra.mxu0 %v4616
        %v4781 = vpop.f32.mrf.mxu0
        %v4782 = vadd.f32 %v4698, %v4781
        %v4783 = vpop.f32.mrf.mxu0
        %4784 = vmatprep.mubr.f32.mxu0 0.0
        %4785 = vmatmul.mubr.f32.gmra.mxu0 %v4617
        %v4786 = vpop.f32.mrf.mxu0
        %v4787 = vadd.f32 %v4698, %v4786
        %v4788 = vpop.f32.mrf.mxu0
        %4789 = vmatprep.mubr.f32.mxu0 0.0
        %4790 = vmatmul.mubr.f32.gmra.mxu0 %v4618
        %v4791 = vpop.f32.mrf.mxu0
        %v4792 = vadd.f32 %v4698, %v4791
        %v4793 = vpop.f32.mrf.mxu0
        %4794 = vmatprep.mubr.f32.mxu0 0.0
        %4795 = vmatmul.mubr.f32.gmra.mxu0 %v4619
        %v4796 = vpop.f32.mrf.mxu0
        %v4797 = vadd.f32 %v4698, %v4796
        %v4798 = vpop.f32.mrf.mxu0
        %4799 = vmatprep.mubr.f32.mxu0 0.0
        %4800 = vmatmul.mubr.f32.gmra.mxu0 %v4620
        %v4801 = vpop.f32.mrf.mxu0
        %v4802 = vadd.f32 %v4698, %v4801
        %v4803 = vpop.f32.mrf.mxu0
        %4804 = vmatprep.mubr.f32.mxu0 0.0
        %4805 = vmatmul.mubr.f32.gmra.mxu0 %v4621
        %v4806 = vpop.f32.mrf.mxu0
        %v4807 = vadd.f32 %v4698, %v4806
        %v4808 = vpop.f32.mrf.mxu0
        %4809 = vmatprep.mubr.f32.mxu0 0.0
        %4810 = vmatmul.mubr.f32.gmra.mxu0 %v4622
        %v4811 = vpop.f32.mrf.mxu0
        %v4812 = vadd.f32 %v4698, %v4811
        %v4813 = vpop.f32.mrf.mxu0
        %4814 = vmatprep.mubr.f32.mxu0 0.0
        %4815 = vmatmul.mubr.f32.gmra.mxu0 %v4623
        %v4816 = vpop.f32.mrf.mxu0
        %v4817 = vadd.f32 %v4698, %v4816
        %v4818 = vpop.f32.mrf.mxu0
        %4819 = vmatprep.mubr.f32.mxu0 0.0
        %4820 = vmatmul.mubr.f32.gmra.mxu0 %v4624
        %v4821 = vpop.f32.mrf.mxu0
        %v4822 = vadd.f32 %v4698, %v4821
        %v4823 = vpop.f32.mrf.mxu0
        %4824 = vmatprep.mubr.f32.mxu0 0.0
        %4825 = vmatmul.mubr.f32.gmra.mxu0 %v4625
        %v4826 = vpop.f32.mrf.mxu0
        %v4827 = vadd.f32 %v4698, %v4826
        %v4828 = vpop.f32.mrf.mxu0
        %4829 = vmatprep.mubr.f32.mxu0 0.0
        %4830 = vmatmul.mubr.f32.gmra.mxu0 %v4626
        %v4831 = vpop.f32.mrf.mxu0
        %v4832 = vadd.f32 %v4698, %v4831
        %v4833 = vpop.f32.mrf.mxu0
        %4834 = vmatprep.mubr.f32.mxu0 0.0
        %4835 = vmatmul.mubr.f32.gmra.mxu0 %v4627
        %v4836 = vpop.f32.mrf.mxu0
        %v4837 = vadd.f32 %v4698, %v4836
        %v4838 = vpop.f32.mrf.mxu0
        %4839 = vmatprep.mubr.f32.mxu0 0.0
        %4840 = vmatmul.mubr.f32.gmra.mxu0 %v4628
        %v4841 = vpop.f32.mrf.mxu0
        %v4842 = vadd.f32 %v4698, %v4841
        %v4843 = vpop.f32.mrf.mxu0
        %4844 = vmatprep.mubr.f32.mxu0 0.0
        %4845 = vmatmul.mubr.f32.gmra.mxu0 %v4629
        %v4846 = vpop.f32.mrf.mxu0
        %v4847 = vadd.f32 %v4698, %v4846
        %v4848 = vpop.f32.mrf.mxu0
        %4849 = vmatprep.mubr.f32.mxu0 0.0
        %4850 = vmatmul.mubr.f32.gmra.mxu0 %v4630
        %v4851 = vpop.f32.mrf.mxu0
        %v4852 = vadd.f32 %v4698, %v4851
        %v4853 = vpop.f32.mrf.mxu0
        %4854 = vmatprep.mubr.f32.mxu0 0.0
        %4855 = vmatmul.mubr.f32.gmra.mxu0 %v4631
        %v4856 = vpop.f32.mrf.mxu0
        %v4857 = vadd.f32 %v4698, %v4856
        %v4858 = vpop.f32.mrf.mxu0
        %4859 = vmatprep.mubr.f32.mxu0 0.0
        %4860 = vmatmul.mubr.f32.gmra.mxu0 %v4632
        %v4861 = vpop.f32.mrf.mxu0
        %v4862 = vadd.f32 %v4698, %v4861
        %v4863 = vpop.f32.mrf.mxu0
        %4864 = vmatprep.mubr.f32.mxu0 0.0
        %4865 = vmatmul.mubr.f32.gmra.mxu0 %v4633
        %v4866 = vpop.f32.mrf.mxu0
        %v4867 = vadd.f32 %v4698, %v4866
        %v4868 = vpop.f32.mrf.mxu0
        %4869 = vmatprep.mubr.f32.mxu0 0.0
        %4870 = vmatmul.mubr.f32.gmra.mxu0 %v4634
        %v4871 = vpop.f32.mrf.mxu0
        %v4872 = vadd.f32 %v4698, %v4871
        %v4873 = vpop.f32.mrf.mxu0
        %4874 = vmatprep.mubr.f32.mxu0 0.0
        %4875 = vmatmul.mubr.f32.gmra.mxu0 %v4635
        %v4876 = vpop.f32.mrf.mxu0
        %v4877 = vadd.f32 %v4698, %v4876
        %v4878 = vpop.f32.mrf.mxu0
        %4879 = vmatprep.mubr.f32.mxu0 0.0
        %4880 = vmatmul.mubr.f32.gmra.mxu0 %v4636
        %v4881 = vpop.f32.mrf.mxu0
        %v4882 = vadd.f32 %v4698, %v4881
        %v4883 = vpop.f32.mrf.mxu0
        %4884 = vmatprep.mubr.f32.mxu0 0.0
        %4885 = vmatmul.mubr.f32.gmra.mxu0 %v4637
        %v4886 = vpop.f32.mrf.mxu0
        %v4887 = vadd.f32 %v4698, %v4886
        %v4888 = vpop.f32.mrf.mxu0
        %4889 = vmatprep.mubr.f32.mxu0 0.0
        %4890 = vmatmul.mubr.f32.gmra.mxu0 %v4638
        %v4891 = vpop.f32.mrf.mxu0
        %v4892 = vadd.f32 %v4698, %v4891
        %v4893 = vpop.f32.mrf.mxu0
        %4894 = vmatprep.mubr.f32.mxu0 0.0
        %4895 = vmatmul.mubr.f32.gmra.mxu0 %v4639
        %v4896 = vpop.f32.mrf.mxu0
        %v4897 = vadd.f32 %v4698, %v4896
        %v4898 = vpop.f32.mrf.mxu0
        %4899 = vmatprep.mubr.f32.mxu0 0.0
        %4900 = vmatmul.mubr.f32.gmra.mxu0 %v4640
        %v4901 = vpop.f32.mrf.mxu0
        %v4902 = vadd.f32 %v4698, %v4901
        %v4903 = vpop.f32.mrf.mxu0
        %4904 = vmatprep.mubr.f32.mxu0 0.0
        %4905 = vmatmul.mubr.f32.gmra.mxu0 %v4641
        %v4906 = vpop.f32.mrf.mxu0
        %v4907 = vadd.f32 %v4698, %v4906
        %v4908 = vpop.f32.mrf.mxu0
        %4909 = vmatprep.mubr.f32.mxu0 0.0
        %4910 = vmatmul.mubr.f32.gmra.mxu0 %v4642
        %v4911 = vpop.f32.mrf.mxu0
        %v4912 = vadd.f32 %v4698, %v4911
        %v4913 = vpop.f32.mrf.mxu0
        %4914 = vmatprep.mubr.f32.mxu0 0.0
        %4915 = vmatmul.mubr.f32.gmra.mxu0 %v4643
        %v4916 = vpop.f32.mrf.mxu0
        %v4917 = vadd.f32 %v4698, %v4916
        %v4918 = vpop.f32.mrf.mxu0
        %4919 = vmatprep.mubr.f32.mxu0 0.0
        %4920 = vmatmul.mubr.f32.gmra.mxu0 %v4644
        %v4921 = vpop.f32.mrf.mxu0
        %v4922 = vadd.f32 %v4698, %v4921
        %v4923 = vpop.f32.mrf.mxu0
        %4924 = vdwg.mxu0
        %v4925 = vmul.f32 %v4767, 0.5
        %v4926 = vmul.f32 %v4772, 0.5
        %v4927 = vmul.f32 %v4777, 0.5
        %v4928 = vmul.f32 %v4782, 0.5
        %v4929 = vmul.f32 %v4787, 0.5
        %v4930 = vmul.f32 %v4792, 0.5
        %v4931 = vmul.f32 %v4797, 0.5
        %v4932 = vmul.f32 %v4802, 0.5
        %v4933 = vmul.f32 %v4807, 0.5
        %v4934 = vmul.f32 %v4812, 0.5
        %v4935 = vmul.f32 %v4817, 0.5
        %v4936 = vmul.f32 %v4822, 0.5
        %v4937 = vmul.f32 %v4827, 0.5
        %v4938 = vmul.f32 %v4832, 0.5
        %v4939 = vmul.f32 %v4837, 0.5
        %v4940 = vmul.f32 %v4842, 0.5
        %v4941 = vmul.f32 %v4847, 0.5
        %v4942 = vmul.f32 %v4852, 0.5
        %v4943 = vmul.f32 %v4857, 0.5
        %v4944 = vmul.f32 %v4862, 0.5
        %v4945 = vmul.f32 %v4867, 0.5
        %v4946 = vmul.f32 %v4872, 0.5
        %v4947 = vmul.f32 %v4877, 0.5
        %v4948 = vmul.f32 %v4882, 0.5
        %v4949 = vmul.f32 %v4887, 0.5
        %v4950 = vmul.f32 %v4892, 0.5
        %v4951 = vmul.f32 %v4897, 0.5
        %v4952 = vmul.f32 %v4902, 0.5
        %v4953 = vmul.f32 %v4907, 0.5
        %v4954 = vmul.f32 %v4912, 0.5
        %v4955 = vmul.f32 %v4917, 0.5
        %v4956 = vmul.f32 %v4922, 0.5
        %v4957 = vmul.f32 %v4767, 0.70710677
        %v4958 = vmul.f32 %v4772, 0.70710677
        %v4959 = vmul.f32 %v4777, 0.70710677
        %v4960 = vmul.f32 %v4782, 0.70710677
        %v4961 = vmul.f32 %v4787, 0.70710677
        %v4962 = vmul.f32 %v4792, 0.70710677
        %v4963 = vmul.f32 %v4797, 0.70710677
        %v4964 = vmul.f32 %v4802, 0.70710677
        %v4965 = vmul.f32 %v4807, 0.70710677
        %v4966 = vmul.f32 %v4812, 0.70710677
        %v4967 = vmul.f32 %v4817, 0.70710677
        %v4968 = vmul.f32 %v4822, 0.70710677
        %v4969 = vmul.f32 %v4827, 0.70710677
        %v4970 = vmul.f32 %v4832, 0.70710677
        %v4971 = vmul.f32 %v4837, 0.70710677
        %v4972 = vmul.f32 %v4842, 0.70710677
        %v4973 = vmul.f32 %v4847, 0.70710677
        %v4974 = vmul.f32 %v4852, 0.70710677
        %v4975 = vmul.f32 %v4857, 0.70710677
        %v4976 = vmul.f32 %v4862, 0.70710677
        %v4977 = vmul.f32 %v4867, 0.70710677
        %v4978 = vmul.f32 %v4872, 0.70710677
        %v4979 = vmul.f32 %v4877, 0.70710677
        %v4980 = vmul.f32 %v4882, 0.70710677
        %v4981 = vmul.f32 %v4887, 0.70710677
        %v4982 = vmul.f32 %v4892, 0.70710677
        %v4983 = vmul.f32 %v4897, 0.70710677
        %v4984 = vmul.f32 %v4902, 0.70710677
        %v4985 = vmul.f32 %v4907, 0.70710677
        %v4986 = vmul.f32 %v4912, 0.70710677
        %v4987 = vmul.f32 %v4917, 0.70710677
        %v4988 = vmul.f32 %v4922, 0.70710677
        %v4989 = verf.f32.pop %v4957
        %v4990 = verf.f32.pop %v4958
        %v4991 = verf.f32.pop %v4959
        %v4992 = verf.f32.pop %v4960
        %v4993 = verf.f32.pop %v4961
        %v4994 = verf.f32.pop %v4962
        %v4995 = verf.f32.pop %v4963
        %v4996 = verf.f32.pop %v4964
        %v4997 = verf.f32.pop %v4965
        %v4998 = verf.f32.pop %v4966
        %v4999 = verf.f32.pop %v4967
        %v5000 = verf.f32.pop %v4968
        %v5001 = verf.f32.pop %v4969
        %v5002 = verf.f32.pop %v4970
        %v5003 = verf.f32.pop %v4971
        %v5004 = verf.f32.pop %v4972
        %v5005 = verf.f32.pop %v4973
        %v5006 = verf.f32.pop %v4974
        %v5007 = verf.f32.pop %v4975
        %v5008 = verf.f32.pop %v4976
        %v5009 = verf.f32.pop %v4977
        %v5010 = verf.f32.pop %v4978
        %v5011 = verf.f32.pop %v4979
        %v5012 = verf.f32.pop %v4980
        %v5013 = verf.f32.pop %v4981
        %v5014 = verf.f32.pop %v4982
        %v5015 = verf.f32.pop %v4983
        %v5016 = verf.f32.pop %v4984
        %v5017 = verf.f32.pop %v4985
        %v5018 = verf.f32.pop %v4986
        %v5019 = verf.f32.pop %v4987
        %v5020 = verf.f32.pop %v4988
        %v5021 = vadd.f32 %v4989, 1.0
        %v5022 = vadd.f32 %v4990, 1.0
        %v5023 = vadd.f32 %v4991, 1.0
        %v5024 = vadd.f32 %v4992, 1.0
        %v5025 = vadd.f32 %v4993, 1.0
        %v5026 = vadd.f32 %v4994, 1.0
        %v5027 = vadd.f32 %v4995, 1.0
        %v5028 = vadd.f32 %v4996, 1.0
        %v5029 = vadd.f32 %v4997, 1.0
        %v5030 = vadd.f32 %v4998, 1.0
        %v5031 = vadd.f32 %v4999, 1.0
        %v5032 = vadd.f32 %v5000, 1.0
        %v5033 = vadd.f32 %v5001, 1.0
        %v5034 = vadd.f32 %v5002, 1.0
        %v5035 = vadd.f32 %v5003, 1.0
        %v5036 = vadd.f32 %v5004, 1.0
        %v5037 = vadd.f32 %v5005, 1.0
        %v5038 = vadd.f32 %v5006, 1.0
        %v5039 = vadd.f32 %v5007, 1.0
        %v5040 = vadd.f32 %v5008, 1.0
        %v5041 = vadd.f32 %v5009, 1.0
        %v5042 = vadd.f32 %v5010, 1.0
        %v5043 = vadd.f32 %v5011, 1.0
        %v5044 = vadd.f32 %v5012, 1.0
        %v5045 = vadd.f32 %v5013, 1.0
        %v5046 = vadd.f32 %v5014, 1.0
        %v5047 = vadd.f32 %v5015, 1.0
        %v5048 = vadd.f32 %v5016, 1.0
        %v5049 = vadd.f32 %v5017, 1.0
        %v5050 = vadd.f32 %v5018, 1.0
        %v5051 = vadd.f32 %v5019, 1.0
        %v5052 = vadd.f32 %v5020, 1.0
        %v5053 = vmul.f32 %v4925, %v5021
        %v5054 = vmul.f32 %v4926, %v5022
        %v5055 = vmul.f32 %v4927, %v5023
        %v5056 = vmul.f32 %v4928, %v5024
        %v5057 = vmul.f32 %v4929, %v5025
        %v5058 = vmul.f32 %v4930, %v5026
        %v5059 = vmul.f32 %v4931, %v5027
        %v5060 = vmul.f32 %v4932, %v5028
        %v5061 = vmul.f32 %v4933, %v5029
        %v5062 = vmul.f32 %v4934, %v5030
        %v5063 = vmul.f32 %v4935, %v5031
        %v5064 = vmul.f32 %v4936, %v5032
        %v5065 = vmul.f32 %v4937, %v5033
        %v5066 = vmul.f32 %v4938, %v5034
        %v5067 = vmul.f32 %v4939, %v5035
        %v5068 = vmul.f32 %v4940, %v5036
        %v5069 = vmul.f32 %v4941, %v5037
        %v5070 = vmul.f32 %v4942, %v5038
        %v5071 = vmul.f32 %v4943, %v5039
        %v5072 = vmul.f32 %v4944, %v5040
        %v5073 = vmul.f32 %v4945, %v5041
        %v5074 = vmul.f32 %v4946, %v5042
        %v5075 = vmul.f32 %v4947, %v5043
        %v5076 = vmul.f32 %v4948, %v5044
        %v5077 = vmul.f32 %v4949, %v5045
        %v5078 = vmul.f32 %v4950, %v5046
        %v5079 = vmul.f32 %v4951, %v5047
        %v5080 = vmul.f32 %v4952, %v5048
        %v5081 = vmul.f32 %v4953, %v5049
        %v5082 = vmul.f32 %v4954, %v5050
        %v5083 = vmul.f32 %v4955, %v5051
        %v5084 = vmul.f32 %v4956, %v5052
        %v5086 = vlaneseq
        %v5087 = vshrl.u32 %v5086, 7
        %v5088 = vsub.s32 0, %v5087
        %v5089 = vrot.slane %v4674, %v5088
        %v5092 = vsel %vm833, %v5053, 0
        %v5095 = vsel %vm833, %v5054, 0
        %v5098 = vsel %vm833, %v5055, 0
        %v5101 = vsel %vm833, %v5056, 0
        %v5104 = vsel %vm833, %v5057, 0
        %v5107 = vsel %vm833, %v5058, 0
        %v5110 = vsel %vm833, %v5059, 0
        %v5113 = vsel %vm833, %v5060, 0
        %v5116 = vsel %vm833, %v5061, 0
        %v5119 = vsel %vm833, %v5062, 0
        %v5122 = vsel %vm833, %v5063, 0
        %v5125 = vsel %vm833, %v5064, 0
        %v5128 = vsel %vm833, %v5065, 0
        %v5131 = vsel %vm833, %v5066, 0
        %v5134 = vsel %vm833, %v5067, 0
        %v5137 = vsel %vm833, %v5068, 0
        %v5140 = vsel %vm833, %v5069, 0
        %v5143 = vsel %vm833, %v5070, 0
        %v5146 = vsel %vm833, %v5071, 0
        %v5149 = vsel %vm833, %v5072, 0
        %v5152 = vsel %vm833, %v5073, 0
        %v5155 = vsel %vm833, %v5074, 0
        %v5158 = vsel %vm833, %v5075, 0
        %v5161 = vsel %vm833, %v5076, 0
        %v5164 = vsel %vm833, %v5077, 0
        %v5167 = vsel %vm833, %v5078, 0
        %v5170 = vsel %vm833, %v5079, 0
        %v5173 = vsel %vm833, %v5080, 0
        %v5176 = vsel %vm833, %v5081, 0
        %v5179 = vsel %vm833, %v5082, 0
        %v5182 = vsel %vm833, %v5083, 0
        %v5185 = vsel %vm833, %v5084, 0
        %5187 = vmatprep.subr.mxu0 0.0
        %5188 = vmatpush1.msra.mxu0 0.0
        %5189 = vmatprep.subr.mxu0 0.0
        %5190 = vmatpush1.msra.mxu0 0.0
        %5191 = vmatprep.subr.mxu0 0.0
        %5192 = vmatpush1.msra.mxu0 0.0
        %5193 = vmatprep.subr.mxu0 0.0
        %5194 = vmatpush1.msra.mxu0 0.0
        %5195 = vmatprep.subr.mxu0 0.0
        %5196 = vmatpush1.msra.mxu0 0.0
        %5197 = vmatprep.subr.mxu0 0.0
        %5198 = vmatpush1.msra.mxu0 0.0
        %5199 = vmatprep.subr.mxu0 0.0
        %5200 = vmatpush1.msra.mxu0 0.0
        %5201 = vmatprep.subr.mxu0 0.0
        %5202 = vmatpush1.msra.mxu0 0.0
        %5203 = vmatprep.subr.mxu0 0.0
        %5204 = vmatpush1.msra.mxu0 %v4672
        %5205 = vmatprep.subr.mxu0 0.0
        %5206 = vmatpush1.msra.mxu0 %v4671
        %5207 = vmatprep.subr.mxu0 0.0
        %5208 = vmatpush1.msra.mxu0 %v4670
        %5209 = vmatprep.subr.mxu0 0.0
        %5210 = vmatpush1.msra.mxu0 %v4669
        %5211 = vmatprep.subr.mxu0 0.0
        %5212 = vmatpush1.msra.mxu0 %v4668
        %5213 = vmatprep.subr.mxu0 0.0
        %5214 = vmatpush1.msra.mxu0 %v4667
        %5215 = vmatprep.subr.mxu0 0.0
        %5216 = vmatpush1.msra.mxu0 %v4666
        %5217 = vmatprep.subr.mxu0 0.0
        %5218 = vmatpush1.msra.mxu0 %v4665
        %5219 = vmatprep.subr.mxu0 0.0
        %5220 = vmatpush2.msra.mxu0 0.0
        %5221 = vmatprep.subr.mxu0 0.0
        %5222 = vmatpush2.msra.mxu0 0.0
        %5223 = vmatprep.subr.mxu0 0.0
        %5224 = vmatpush2.msra.mxu0 0.0
        %5225 = vmatprep.subr.mxu0 0.0
        %5226 = vmatpush2.msra.mxu0 0.0
        %5227 = vmatprep.subr.mxu0 0.0
        %5228 = vmatpush2.msra.mxu0 0.0
        %5229 = vmatprep.subr.mxu0 0.0
        %5230 = vmatpush2.msra.mxu0 0.0
        %5231 = vmatprep.subr.mxu0 0.0
        %5232 = vmatpush2.msra.mxu0 0.0
        %5233 = vmatprep.subr.mxu0 0.0
        %5234 = vmatpush2.msra.mxu0 0.0
        %5235 = vmatprep.subr.mxu0 0.0
        %5236 = vmatpush2.msra.mxu0 0.0
        %5237 = vmatprep.subr.mxu0 0.0
        %5238 = vmatpush2.msra.mxu0 0.0
        %5239 = vmatprep.subr.mxu0 0.0
        %5240 = vmatpush2.msra.mxu0 0.0
        %5241 = vmatprep.subr.mxu0 0.0
        %5242 = vmatpush2.msra.mxu0 0.0
        %5243 = vmatprep.subr.mxu0 0.0
        %5244 = vmatpush2.msra.mxu0 0.0
        %5245 = vmatprep.subr.mxu0 0.0
        %5246 = vmatpush2.msra.mxu0 0.0
        %5247 = vmatprep.subr.mxu0 0.0
        %5248 = vmatpush2.msra.mxu0 0.0
        %5249 = vmatprep.subr.mxu0 0.0
        %5250 = vmatpush2.msra.mxu0 0.0
        %5251 = vmatprep.mubr.f32.mxu0 0.0
        %5252 = vmatmul.mubr.f32.gmra.mxu0 %v5092
        %v5253 = vpop.f32.mrf.mxu0
        %v5254 = vadd.f32 %v5089, %v5253
        %v5255 = vpop.f32.mrf.mxu0
        %5256 = vmatprep.mubr.f32.mxu0 0.0
        %5257 = vmatmul.mubr.f32.gmra.mxu0 %v5095
        %v5258 = vpop.f32.mrf.mxu0
        %v5259 = vadd.f32 %v5089, %v5258
        %v5260 = vpop.f32.mrf.mxu0
        %5261 = vmatprep.mubr.f32.mxu0 0.0
        %5262 = vmatmul.mubr.f32.gmra.mxu0 %v5098
        %v5263 = vpop.f32.mrf.mxu0
        %v5264 = vadd.f32 %v5089, %v5263
        %v5265 = vpop.f32.mrf.mxu0
        %5266 = vmatprep.mubr.f32.mxu0 0.0
        %5267 = vmatmul.mubr.f32.gmra.mxu0 %v5101
        %v5268 = vpop.f32.mrf.mxu0
        %v5269 = vadd.f32 %v5089, %v5268
        %v5270 = vpop.f32.mrf.mxu0
        %5271 = vmatprep.mubr.f32.mxu0 0.0
        %5272 = vmatmul.mubr.f32.gmra.mxu0 %v5104
        %v5273 = vpop.f32.mrf.mxu0
        %v5274 = vadd.f32 %v5089, %v5273
        %v5275 = vpop.f32.mrf.mxu0
        %5276 = vmatprep.mubr.f32.mxu0 0.0
        %5277 = vmatmul.mubr.f32.gmra.mxu0 %v5107
        %v5278 = vpop.f32.mrf.mxu0
        %v5279 = vadd.f32 %v5089, %v5278
        %v5280 = vpop.f32.mrf.mxu0
        %5281 = vmatprep.mubr.f32.mxu0 0.0
        %5282 = vmatmul.mubr.f32.gmra.mxu0 %v5110
        %v5283 = vpop.f32.mrf.mxu0
        %v5284 = vadd.f32 %v5089, %v5283
        %v5285 = vpop.f32.mrf.mxu0
        %5286 = vmatprep.mubr.f32.mxu0 0.0
        %5287 = vmatmul.mubr.f32.gmra.mxu0 %v5113
        %v5288 = vpop.f32.mrf.mxu0
        %v5289 = vadd.f32 %v5089, %v5288
        %v5290 = vpop.f32.mrf.mxu0
        %5291 = vmatprep.mubr.f32.mxu0 0.0
        %5292 = vmatmul.mubr.f32.gmra.mxu0 %v5116
        %v5293 = vpop.f32.mrf.mxu0
        %v5294 = vadd.f32 %v5089, %v5293
        %v5295 = vpop.f32.mrf.mxu0
        %5296 = vmatprep.mubr.f32.mxu0 0.0
        %5297 = vmatmul.mubr.f32.gmra.mxu0 %v5119
        %v5298 = vpop.f32.mrf.mxu0
        %v5299 = vadd.f32 %v5089, %v5298
        %v5300 = vpop.f32.mrf.mxu0
        %5301 = vmatprep.mubr.f32.mxu0 0.0
        %5302 = vmatmul.mubr.f32.gmra.mxu0 %v5122
        %v5303 = vpop.f32.mrf.mxu0
        %v5304 = vadd.f32 %v5089, %v5303
        %v5305 = vpop.f32.mrf.mxu0
        %5306 = vmatprep.mubr.f32.mxu0 0.0
        %5307 = vmatmul.mubr.f32.gmra.mxu0 %v5125
        %v5308 = vpop.f32.mrf.mxu0
        %v5309 = vadd.f32 %v5089, %v5308
        %v5310 = vpop.f32.mrf.mxu0
        %5311 = vmatprep.mubr.f32.mxu0 0.0
        %5312 = vmatmul.mubr.f32.gmra.mxu0 %v5128
        %v5313 = vpop.f32.mrf.mxu0
        %v5314 = vadd.f32 %v5089, %v5313
        %v5315 = vpop.f32.mrf.mxu0
        %5316 = vmatprep.mubr.f32.mxu0 0.0
        %5317 = vmatmul.mubr.f32.gmra.mxu0 %v5131
        %v5318 = vpop.f32.mrf.mxu0
        %v5319 = vadd.f32 %v5089, %v5318
        %v5320 = vpop.f32.mrf.mxu0
        %5321 = vmatprep.mubr.f32.mxu0 0.0
        %5322 = vmatmul.mubr.f32.gmra.mxu0 %v5134
        %v5323 = vpop.f32.mrf.mxu0
        %v5324 = vadd.f32 %v5089, %v5323
        %v5325 = vpop.f32.mrf.mxu0
        %5326 = vmatprep.mubr.f32.mxu0 0.0
        %5327 = vmatmul.mubr.f32.gmra.mxu0 %v5137
        %v5328 = vpop.f32.mrf.mxu0
        %v5329 = vadd.f32 %v5089, %v5328
        %v5330 = vpop.f32.mrf.mxu0
        %5331 = vmatprep.mubr.f32.mxu0 0.0
        %5332 = vmatmul.mubr.f32.gmra.mxu0 %v5140
        %v5333 = vpop.f32.mrf.mxu0
        %v5334 = vadd.f32 %v5089, %v5333
        %v5335 = vpop.f32.mrf.mxu0
        %5336 = vmatprep.mubr.f32.mxu0 0.0
        %5337 = vmatmul.mubr.f32.gmra.mxu0 %v5143
        %v5338 = vpop.f32.mrf.mxu0
        %v5339 = vadd.f32 %v5089, %v5338
        %v5340 = vpop.f32.mrf.mxu0
        %5341 = vmatprep.mubr.f32.mxu0 0.0
        %5342 = vmatmul.mubr.f32.gmra.mxu0 %v5146
        %v5343 = vpop.f32.mrf.mxu0
        %v5344 = vadd.f32 %v5089, %v5343
        %v5345 = vpop.f32.mrf.mxu0
        %5346 = vmatprep.mubr.f32.mxu0 0.0
        %5347 = vmatmul.mubr.f32.gmra.mxu0 %v5149
        %v5348 = vpop.f32.mrf.mxu0
        %v5349 = vadd.f32 %v5089, %v5348
        %v5350 = vpop.f32.mrf.mxu0
        %5351 = vmatprep.mubr.f32.mxu0 0.0
        %5352 = vmatmul.mubr.f32.gmra.mxu0 %v5152
        %v5353 = vpop.f32.mrf.mxu0
        %v5354 = vadd.f32 %v5089, %v5353
        %v5355 = vpop.f32.mrf.mxu0
        %5356 = vmatprep.mubr.f32.mxu0 0.0
        %5357 = vmatmul.mubr.f32.gmra.mxu0 %v5155
        %v5358 = vpop.f32.mrf.mxu0
        %v5359 = vadd.f32 %v5089, %v5358
        %v5360 = vpop.f32.mrf.mxu0
        %5361 = vmatprep.mubr.f32.mxu0 0.0
        %5362 = vmatmul.mubr.f32.gmra.mxu0 %v5158
        %v5363 = vpop.f32.mrf.mxu0
        %v5364 = vadd.f32 %v5089, %v5363
        %v5365 = vpop.f32.mrf.mxu0
        %5366 = vmatprep.mubr.f32.mxu0 0.0
        %5367 = vmatmul.mubr.f32.gmra.mxu0 %v5161
        %v5368 = vpop.f32.mrf.mxu0
        %v5369 = vadd.f32 %v5089, %v5368
        %v5370 = vpop.f32.mrf.mxu0
        %5371 = vmatprep.mubr.f32.mxu0 0.0
        %5372 = vmatmul.mubr.f32.gmra.mxu0 %v5164
        %v5373 = vpop.f32.mrf.mxu0
        %v5374 = vadd.f32 %v5089, %v5373
        %v5375 = vpop.f32.mrf.mxu0
        %5376 = vmatprep.mubr.f32.mxu0 0.0
        %5377 = vmatmul.mubr.f32.gmra.mxu0 %v5167
        %v5378 = vpop.f32.mrf.mxu0
        %v5379 = vadd.f32 %v5089, %v5378
        %v5380 = vpop.f32.mrf.mxu0
        %5381 = vmatprep.mubr.f32.mxu0 0.0
        %5382 = vmatmul.mubr.f32.gmra.mxu0 %v5170
        %v5383 = vpop.f32.mrf.mxu0
        %v5384 = vadd.f32 %v5089, %v5383
        %v5385 = vpop.f32.mrf.mxu0
        %5386 = vmatprep.mubr.f32.mxu0 0.0
        %5387 = vmatmul.mubr.f32.gmra.mxu0 %v5173
        %v5388 = vpop.f32.mrf.mxu0
        %v5389 = vadd.f32 %v5089, %v5388
        %v5390 = vpop.f32.mrf.mxu0
        %5391 = vmatprep.mubr.f32.mxu0 0.0
        %5392 = vmatmul.mubr.f32.gmra.mxu0 %v5176
        %v5393 = vpop.f32.mrf.mxu0
        %v5394 = vadd.f32 %v5089, %v5393
        %v5395 = vpop.f32.mrf.mxu0
        %5396 = vmatprep.mubr.f32.mxu0 0.0
        %5397 = vmatmul.mubr.f32.gmra.mxu0 %v5179
        %v5398 = vpop.f32.mrf.mxu0
        %v5399 = vadd.f32 %v5089, %v5398
        %v5400 = vpop.f32.mrf.mxu0
        %5401 = vmatprep.mubr.f32.mxu0 0.0
        %5402 = vmatmul.mubr.f32.gmra.mxu0 %v5182
        %v5403 = vpop.f32.mrf.mxu0
        %v5404 = vadd.f32 %v5089, %v5403
        %v5405 = vpop.f32.mrf.mxu0
        %5406 = vmatprep.mubr.f32.mxu0 0.0
        %5407 = vmatmul.mubr.f32.gmra.mxu0 %v5185
        %v5408 = vpop.f32.mrf.mxu0
        %v5409 = vadd.f32 %v5089, %v5408
        %v5410 = vpop.f32.mrf.mxu0
        %5411 = vdwg.mxu0
        %v5412 = vmul.f32 %v5254, 0.5
        %v5413 = vmul.f32 %v5259, 0.5
        %v5414 = vmul.f32 %v5264, 0.5
        %v5415 = vmul.f32 %v5269, 0.5
        %v5416 = vmul.f32 %v5274, 0.5
        %v5417 = vmul.f32 %v5279, 0.5
        %v5418 = vmul.f32 %v5284, 0.5
        %v5419 = vmul.f32 %v5289, 0.5
        %v5420 = vmul.f32 %v5294, 0.5
        %v5421 = vmul.f32 %v5299, 0.5
        %v5422 = vmul.f32 %v5304, 0.5
        %v5423 = vmul.f32 %v5309, 0.5
        %v5424 = vmul.f32 %v5314, 0.5
        %v5425 = vmul.f32 %v5319, 0.5
        %v5426 = vmul.f32 %v5324, 0.5
        %v5427 = vmul.f32 %v5329, 0.5
        %v5428 = vmul.f32 %v5334, 0.5
        %v5429 = vmul.f32 %v5339, 0.5
        %v5430 = vmul.f32 %v5344, 0.5
        %v5431 = vmul.f32 %v5349, 0.5
        %v5432 = vmul.f32 %v5354, 0.5
        %v5433 = vmul.f32 %v5359, 0.5
        %v5434 = vmul.f32 %v5364, 0.5
        %v5435 = vmul.f32 %v5369, 0.5
        %v5436 = vmul.f32 %v5374, 0.5
        %v5437 = vmul.f32 %v5379, 0.5
        %v5438 = vmul.f32 %v5384, 0.5
        %v5439 = vmul.f32 %v5389, 0.5
        %v5440 = vmul.f32 %v5394, 0.5
        %v5441 = vmul.f32 %v5399, 0.5
        %v5442 = vmul.f32 %v5404, 0.5
        %v5443 = vmul.f32 %v5409, 0.5
        %v5444 = vmul.f32 %v5254, 0.70710677
        %v5445 = vmul.f32 %v5259, 0.70710677
        %v5446 = vmul.f32 %v5264, 0.70710677
        %v5447 = vmul.f32 %v5269, 0.70710677
        %v5448 = vmul.f32 %v5274, 0.70710677
        %v5449 = vmul.f32 %v5279, 0.70710677
        %v5450 = vmul.f32 %v5284, 0.70710677
        %v5451 = vmul.f32 %v5289, 0.70710677
        %v5452 = vmul.f32 %v5294, 0.70710677
        %v5453 = vmul.f32 %v5299, 0.70710677
        %v5454 = vmul.f32 %v5304, 0.70710677
        %v5455 = vmul.f32 %v5309, 0.70710677
        %v5456 = vmul.f32 %v5314, 0.70710677
        %v5457 = vmul.f32 %v5319, 0.70710677
        %v5458 = vmul.f32 %v5324, 0.70710677
        %v5459 = vmul.f32 %v5329, 0.70710677
        %v5460 = vmul.f32 %v5334, 0.70710677
        %v5461 = vmul.f32 %v5339, 0.70710677
        %v5462 = vmul.f32 %v5344, 0.70710677
        %v5463 = vmul.f32 %v5349, 0.70710677
        %v5464 = vmul.f32 %v5354, 0.70710677
        %v5465 = vmul.f32 %v5359, 0.70710677
        %v5466 = vmul.f32 %v5364, 0.70710677
        %v5467 = vmul.f32 %v5369, 0.70710677
        %v5468 = vmul.f32 %v5374, 0.70710677
        %v5469 = vmul.f32 %v5379, 0.70710677
        %v5470 = vmul.f32 %v5384, 0.70710677
        %v5471 = vmul.f32 %v5389, 0.70710677
        %v5472 = vmul.f32 %v5394, 0.70710677
        %v5473 = vmul.f32 %v5399, 0.70710677
        %v5474 = vmul.f32 %v5404, 0.70710677
        %v5475 = vmul.f32 %v5409, 0.70710677
        %v5476 = verf.f32.pop %v5444
        %v5477 = verf.f32.pop %v5445
        %v5478 = verf.f32.pop %v5446
        %v5479 = verf.f32.pop %v5447
        %v5480 = verf.f32.pop %v5448
        %v5481 = verf.f32.pop %v5449
        %v5482 = verf.f32.pop %v5450
        %v5483 = verf.f32.pop %v5451
        %v5484 = verf.f32.pop %v5452
        %v5485 = verf.f32.pop %v5453
        %v5486 = verf.f32.pop %v5454
        %v5487 = verf.f32.pop %v5455
        %v5488 = verf.f32.pop %v5456
        %v5489 = verf.f32.pop %v5457
        %v5490 = verf.f32.pop %v5458
        %v5491 = verf.f32.pop %v5459
        %v5492 = verf.f32.pop %v5460
        %v5493 = verf.f32.pop %v5461
        %v5494 = verf.f32.pop %v5462
        %v5495 = verf.f32.pop %v5463
        %v5496 = verf.f32.pop %v5464
        %v5497 = verf.f32.pop %v5465
        %v5498 = verf.f32.pop %v5466
        %v5499 = verf.f32.pop %v5467
        %v5500 = verf.f32.pop %v5468
        %v5501 = verf.f32.pop %v5469
        %v5502 = verf.f32.pop %v5470
        %v5503 = verf.f32.pop %v5471
        %v5504 = verf.f32.pop %v5472
        %v5505 = verf.f32.pop %v5473
        %v5506 = verf.f32.pop %v5474
        %v5507 = verf.f32.pop %v5475
        %v5508 = vadd.f32 %v5476, 1.0
        %v5509 = vadd.f32 %v5477, 1.0
        %v5510 = vadd.f32 %v5478, 1.0
        %v5511 = vadd.f32 %v5479, 1.0
        %v5512 = vadd.f32 %v5480, 1.0
        %v5513 = vadd.f32 %v5481, 1.0
        %v5514 = vadd.f32 %v5482, 1.0
        %v5515 = vadd.f32 %v5483, 1.0
        %v5516 = vadd.f32 %v5484, 1.0
        %v5517 = vadd.f32 %v5485, 1.0
        %v5518 = vadd.f32 %v5486, 1.0
        %v5519 = vadd.f32 %v5487, 1.0
        %v5520 = vadd.f32 %v5488, 1.0
        %v5521 = vadd.f32 %v5489, 1.0
        %v5522 = vadd.f32 %v5490, 1.0
        %v5523 = vadd.f32 %v5491, 1.0
        %v5524 = vadd.f32 %v5492, 1.0
        %v5525 = vadd.f32 %v5493, 1.0
        %v5526 = vadd.f32 %v5494, 1.0
        %v5527 = vadd.f32 %v5495, 1.0
        %v5528 = vadd.f32 %v5496, 1.0
        %v5529 = vadd.f32 %v5497, 1.0
        %v5530 = vadd.f32 %v5498, 1.0
        %v5531 = vadd.f32 %v5499, 1.0
        %v5532 = vadd.f32 %v5500, 1.0
        %v5533 = vadd.f32 %v5501, 1.0
        %v5534 = vadd.f32 %v5502, 1.0
        %v5535 = vadd.f32 %v5503, 1.0
        %v5536 = vadd.f32 %v5504, 1.0
        %v5537 = vadd.f32 %v5505, 1.0
        %v5538 = vadd.f32 %v5506, 1.0
        %v5539 = vadd.f32 %v5507, 1.0
        %v5540 = vmul.f32 %v5412, %v5508
        %v5541 = vmul.f32 %v5413, %v5509
        %v5542 = vmul.f32 %v5414, %v5510
        %v5543 = vmul.f32 %v5415, %v5511
        %v5544 = vmul.f32 %v5416, %v5512
        %v5545 = vmul.f32 %v5417, %v5513
        %v5546 = vmul.f32 %v5418, %v5514
        %v5547 = vmul.f32 %v5419, %v5515
        %v5548 = vmul.f32 %v5420, %v5516
        %v5549 = vmul.f32 %v5421, %v5517
        %v5550 = vmul.f32 %v5422, %v5518
        %v5551 = vmul.f32 %v5423, %v5519
        %v5552 = vmul.f32 %v5424, %v5520
        %v5553 = vmul.f32 %v5425, %v5521
        %v5554 = vmul.f32 %v5426, %v5522
        %v5555 = vmul.f32 %v5427, %v5523
        %v5556 = vmul.f32 %v5428, %v5524
        %v5557 = vmul.f32 %v5429, %v5525
        %v5558 = vmul.f32 %v5430, %v5526
        %v5559 = vmul.f32 %v5431, %v5527
        %v5560 = vmul.f32 %v5432, %v5528
        %v5561 = vmul.f32 %v5433, %v5529
        %v5562 = vmul.f32 %v5434, %v5530
        %v5563 = vmul.f32 %v5435, %v5531
        %v5564 = vmul.f32 %v5436, %v5532
        %v5565 = vmul.f32 %v5437, %v5533
        %v5566 = vmul.f32 %v5438, %v5534
        %v5567 = vmul.f32 %v5439, %v5535
        %v5568 = vmul.f32 %v5440, %v5536
        %v5569 = vmul.f32 %v5441, %v5537
        %v5570 = vmul.f32 %v5442, %v5538
        %v5571 = vmul.f32 %v5443, %v5539
        %v5573 = vlaneseq
        %v5574 = vshrl.u32 %v5573, 7
        %v5575 = vsub.s32 0, %v5574
        %v5576 = vrot.slane %v4693, %v5575
        %v5577 = vlaneseq
        %v5578 = vshrl.u32 %v5577, 7
        %v5579 = vsub.s32 1, %v5578
        %v5580 = vrot.slane %v4693, %v5579
        %v5584 = vsel %vm833, %v5540, 0
        %v5587 = vsel %vm833, %v5541, 0
        %v5590 = vsel %vm833, %v5542, 0
        %v5593 = vsel %vm833, %v5543, 0
        %v5596 = vsel %vm833, %v5544, 0
        %v5599 = vsel %vm833, %v5545, 0
        %v5602 = vsel %vm833, %v5546, 0
        %v5605 = vsel %vm833, %v5547, 0
        %v5608 = vsel %vm833, %v5548, 0
        %v5611 = vsel %vm833, %v5549, 0
        %v5614 = vsel %vm833, %v5550, 0
        %v5617 = vsel %vm833, %v5551, 0
        %v5620 = vsel %vm833, %v5552, 0
        %v5623 = vsel %vm833, %v5553, 0
        %v5626 = vsel %vm833, %v5554, 0
        %v5629 = vsel %vm833, %v5555, 0
        %v5632 = vsel %vm833, %v5556, 0
        %v5635 = vsel %vm833, %v5557, 0
        %v5638 = vsel %vm833, %v5558, 0
        %v5641 = vsel %vm833, %v5559, 0
        %v5644 = vsel %vm833, %v5560, 0
        %v5647 = vsel %vm833, %v5561, 0
        %v5650 = vsel %vm833, %v5562, 0
        %v5653 = vsel %vm833, %v5563, 0
        %v5656 = vsel %vm833, %v5564, 0
        %v5659 = vsel %vm833, %v5565, 0
        %v5662 = vsel %vm833, %v5566, 0
        %v5665 = vsel %vm833, %v5567, 0
        %v5668 = vsel %vm833, %v5568, 0
        %v5671 = vsel %vm833, %v5569, 0
        %v5674 = vsel %vm833, %v5570, 0
        %v5677 = vsel %vm833, %v5571, 0
        %5679 = vmatprep.subr.mxu0 0.0
        %5680 = vmatpush1.msra.mxu0 0.0
        %5681 = vmatprep.subr.mxu0 0.0
        %5682 = vmatpush1.msra.mxu0 0.0
        %5683 = vmatprep.subr.mxu0 0.0
        %5684 = vmatpush1.msra.mxu0 0.0
        %5685 = vmatprep.subr.mxu0 0.0
        %5686 = vmatpush1.msra.mxu0 0.0
        %5687 = vmatprep.subr.mxu0 0.0
        %5688 = vmatpush1.msra.mxu0 0.0
        %5689 = vmatprep.subr.mxu0 0.0
        %5690 = vmatpush1.msra.mxu0 0.0
        %5691 = vmatprep.subr.mxu0 0.0
        %5692 = vmatpush1.msra.mxu0 0.0
        %5693 = vmatprep.subr.mxu0 0.0
        %5694 = vmatpush1.msra.mxu0 0.0
        %5695 = vmatprep.subr.mxu0 %v4691
        %5696 = vmatpush1.msra.mxu0 %v4690
        %5697 = vmatprep.subr.mxu0 %v4689
        %5698 = vmatpush1.msra.mxu0 %v4688
        %5699 = vmatprep.subr.mxu0 %v4687
        %5700 = vmatpush1.msra.mxu0 %v4686
        %5701 = vmatprep.subr.mxu0 %v4685
        %5702 = vmatpush1.msra.mxu0 %v4684
        %5703 = vmatprep.subr.mxu0 %v4683
        %5704 = vmatpush1.msra.mxu0 %v4682
        %5705 = vmatprep.subr.mxu0 %v4681
        %5706 = vmatpush1.msra.mxu0 %v4680
        %5707 = vmatprep.subr.mxu0 %v4679
        %5708 = vmatpush1.msra.mxu0 %v4678
        %5709 = vmatprep.subr.mxu0 %v4677
        %5710 = vmatpush1.msra.mxu0 %v4676
        %5711 = vmatprep.subr.mxu0 0.0
        %5712 = vmatpush2.msra.mxu0 0.0
        %5713 = vmatprep.subr.mxu0 0.0
        %5714 = vmatpush2.msra.mxu0 0.0
        %5715 = vmatprep.subr.mxu0 0.0
        %5716 = vmatpush2.msra.mxu0 0.0
        %5717 = vmatprep.subr.mxu0 0.0
        %5718 = vmatpush2.msra.mxu0 0.0
        %5719 = vmatprep.subr.mxu0 0.0
        %5720 = vmatpush2.msra.mxu0 0.0
        %5721 = vmatprep.subr.mxu0 0.0
        %5722 = vmatpush2.msra.mxu0 0.0
        %5723 = vmatprep.subr.mxu0 0.0
        %5724 = vmatpush2.msra.mxu0 0.0
        %5725 = vmatprep.subr.mxu0 0.0
        %5726 = vmatpush2.msra.mxu0 0.0
        %5727 = vmatprep.subr.mxu0 0.0
        %5728 = vmatpush2.msra.mxu0 0.0
        %5729 = vmatprep.subr.mxu0 0.0
        %5730 = vmatpush2.msra.mxu0 0.0
        %5731 = vmatprep.subr.mxu0 0.0
        %5732 = vmatpush2.msra.mxu0 0.0
        %5733 = vmatprep.subr.mxu0 0.0
        %5734 = vmatpush2.msra.mxu0 0.0
        %5735 = vmatprep.subr.mxu0 0.0
        %5736 = vmatpush2.msra.mxu0 0.0
        %5737 = vmatprep.subr.mxu0 0.0
        %5738 = vmatpush2.msra.mxu0 0.0
        %5739 = vmatprep.subr.mxu0 0.0
        %5740 = vmatpush2.msra.mxu0 0.0
        %5741 = vmatprep.subr.mxu0 0.0
        %5742 = vmatpush2.msra.mxu0 0.0
        %5743 = vmatprep.mubr.f32.mxu0 0.0
        %5744 = vmatmul.mubr.f32.gmra.mxu0 %v5584
        %v5745 = vpop.f32.mrf.mxu0
        %v5746 = vadd.f32 %v5576, %v5745
        %v5747 = vpop.f32.mrf.mxu0
        %v5748 = vadd.f32 %v5580, %v5747
        %5749 = vmatprep.mubr.f32.mxu0 0.0
        %5750 = vmatmul.mubr.f32.gmra.mxu0 %v5587
        %v5751 = vpop.f32.mrf.mxu0
        %v5752 = vadd.f32 %v5576, %v5751
        %v5753 = vpop.f32.mrf.mxu0
        %v5754 = vadd.f32 %v5580, %v5753
        %5755 = vmatprep.mubr.f32.mxu0 0.0
        %5756 = vmatmul.mubr.f32.gmra.mxu0 %v5590
        %v5757 = vpop.f32.mrf.mxu0
        %v5758 = vadd.f32 %v5576, %v5757
        %v5759 = vpop.f32.mrf.mxu0
        %v5760 = vadd.f32 %v5580, %v5759
        %5761 = vmatprep.mubr.f32.mxu0 0.0
        %5762 = vmatmul.mubr.f32.gmra.mxu0 %v5593
        %v5763 = vpop.f32.mrf.mxu0
        %v5764 = vadd.f32 %v5576, %v5763
        %v5765 = vpop.f32.mrf.mxu0
        %v5766 = vadd.f32 %v5580, %v5765
        %5767 = vmatprep.mubr.f32.mxu0 0.0
        %5768 = vmatmul.mubr.f32.gmra.mxu0 %v5596
        %v5769 = vpop.f32.mrf.mxu0
        %v5770 = vadd.f32 %v5576, %v5769
        %v5771 = vpop.f32.mrf.mxu0
        %v5772 = vadd.f32 %v5580, %v5771
        %5773 = vmatprep.mubr.f32.mxu0 0.0
        %5774 = vmatmul.mubr.f32.gmra.mxu0 %v5599
        %v5775 = vpop.f32.mrf.mxu0
        %v5776 = vadd.f32 %v5576, %v5775
        %v5777 = vpop.f32.mrf.mxu0
        %v5778 = vadd.f32 %v5580, %v5777
        %5779 = vmatprep.mubr.f32.mxu0 0.0
        %5780 = vmatmul.mubr.f32.gmra.mxu0 %v5602
        %v5781 = vpop.f32.mrf.mxu0
        %v5782 = vadd.f32 %v5576, %v5781
        %v5783 = vpop.f32.mrf.mxu0
        %v5784 = vadd.f32 %v5580, %v5783
        %5785 = vmatprep.mubr.f32.mxu0 0.0
        %5786 = vmatmul.mubr.f32.gmra.mxu0 %v5605
        %v5787 = vpop.f32.mrf.mxu0
        %v5788 = vadd.f32 %v5576, %v5787
        %v5789 = vpop.f32.mrf.mxu0
        %v5790 = vadd.f32 %v5580, %v5789
        %5791 = vmatprep.mubr.f32.mxu0 0.0
        %5792 = vmatmul.mubr.f32.gmra.mxu0 %v5608
        %v5793 = vpop.f32.mrf.mxu0
        %v5794 = vadd.f32 %v5576, %v5793
        %v5795 = vpop.f32.mrf.mxu0
        %v5796 = vadd.f32 %v5580, %v5795
        %5797 = vmatprep.mubr.f32.mxu0 0.0
        %5798 = vmatmul.mubr.f32.gmra.mxu0 %v5611
        %v5799 = vpop.f32.mrf.mxu0
        %v5800 = vadd.f32 %v5576, %v5799
        %v5801 = vpop.f32.mrf.mxu0
        %v5802 = vadd.f32 %v5580, %v5801
        %5803 = vmatprep.mubr.f32.mxu0 0.0
        %5804 = vmatmul.mubr.f32.gmra.mxu0 %v5614
        %v5805 = vpop.f32.mrf.mxu0
        %v5806 = vadd.f32 %v5576, %v5805
        %v5807 = vpop.f32.mrf.mxu0
        %v5808 = vadd.f32 %v5580, %v5807
        %5809 = vmatprep.mubr.f32.mxu0 0.0
        %5810 = vmatmul.mubr.f32.gmra.mxu0 %v5617
        %v5811 = vpop.f32.mrf.mxu0
        %v5812 = vadd.f32 %v5576, %v5811
        %v5813 = vpop.f32.mrf.mxu0
        %v5814 = vadd.f32 %v5580, %v5813
        %5815 = vmatprep.mubr.f32.mxu0 0.0
        %5816 = vmatmul.mubr.f32.gmra.mxu0 %v5620
        %v5817 = vpop.f32.mrf.mxu0
        %v5818 = vadd.f32 %v5576, %v5817
        %v5819 = vpop.f32.mrf.mxu0
        %v5820 = vadd.f32 %v5580, %v5819
        %5821 = vmatprep.mubr.f32.mxu0 0.0
        %5822 = vmatmul.mubr.f32.gmra.mxu0 %v5623
        %v5823 = vpop.f32.mrf.mxu0
        %v5824 = vadd.f32 %v5576, %v5823
        %v5825 = vpop.f32.mrf.mxu0
        %v5826 = vadd.f32 %v5580, %v5825
        %5827 = vmatprep.mubr.f32.mxu0 0.0
        %5828 = vmatmul.mubr.f32.gmra.mxu0 %v5626
        %v5829 = vpop.f32.mrf.mxu0
        %v5830 = vadd.f32 %v5576, %v5829
        %v5831 = vpop.f32.mrf.mxu0
        %v5832 = vadd.f32 %v5580, %v5831
        %5833 = vmatprep.mubr.f32.mxu0 0.0
        %5834 = vmatmul.mubr.f32.gmra.mxu0 %v5629
        %v5835 = vpop.f32.mrf.mxu0
        %v5836 = vadd.f32 %v5576, %v5835
        %v5837 = vpop.f32.mrf.mxu0
        %v5838 = vadd.f32 %v5580, %v5837
        %5839 = vmatprep.mubr.f32.mxu0 0.0
        %5840 = vmatmul.mubr.f32.gmra.mxu0 %v5632
        %v5841 = vpop.f32.mrf.mxu0
        %v5842 = vadd.f32 %v5576, %v5841
        %v5843 = vpop.f32.mrf.mxu0
        %v5844 = vadd.f32 %v5580, %v5843
        %5845 = vmatprep.mubr.f32.mxu0 0.0
        %5846 = vmatmul.mubr.f32.gmra.mxu0 %v5635
        %v5847 = vpop.f32.mrf.mxu0
        %v5848 = vadd.f32 %v5576, %v5847
        %v5849 = vpop.f32.mrf.mxu0
        %v5850 = vadd.f32 %v5580, %v5849
        %5851 = vmatprep.mubr.f32.mxu0 0.0
        %5852 = vmatmul.mubr.f32.gmra.mxu0 %v5638
        %v5853 = vpop.f32.mrf.mxu0
        %v5854 = vadd.f32 %v5576, %v5853
        %v5855 = vpop.f32.mrf.mxu0
        %v5856 = vadd.f32 %v5580, %v5855
        %5857 = vmatprep.mubr.f32.mxu0 0.0
        %5858 = vmatmul.mubr.f32.gmra.mxu0 %v5641
        %v5859 = vpop.f32.mrf.mxu0
        %v5860 = vadd.f32 %v5576, %v5859
        %v5861 = vpop.f32.mrf.mxu0
        %v5862 = vadd.f32 %v5580, %v5861
        %5863 = vmatprep.mubr.f32.mxu0 0.0
        %5864 = vmatmul.mubr.f32.gmra.mxu0 %v5644
        %v5865 = vpop.f32.mrf.mxu0
        %v5866 = vadd.f32 %v5576, %v5865
        %v5867 = vpop.f32.mrf.mxu0
        %v5868 = vadd.f32 %v5580, %v5867
        %5869 = vmatprep.mubr.f32.mxu0 0.0
        %5870 = vmatmul.mubr.f32.gmra.mxu0 %v5647
        %v5871 = vpop.f32.mrf.mxu0
        %v5872 = vadd.f32 %v5576, %v5871
        %v5873 = vpop.f32.mrf.mxu0
        %v5874 = vadd.f32 %v5580, %v5873
        %5875 = vmatprep.mubr.f32.mxu0 0.0
        %5876 = vmatmul.mubr.f32.gmra.mxu0 %v5650
        %v5877 = vpop.f32.mrf.mxu0
        %v5878 = vadd.f32 %v5576, %v5877
        %v5879 = vpop.f32.mrf.mxu0
        %v5880 = vadd.f32 %v5580, %v5879
        %5881 = vmatprep.mubr.f32.mxu0 0.0
        %5882 = vmatmul.mubr.f32.gmra.mxu0 %v5653
        %v5883 = vpop.f32.mrf.mxu0
        %v5884 = vadd.f32 %v5576, %v5883
        %v5885 = vpop.f32.mrf.mxu0
        %v5886 = vadd.f32 %v5580, %v5885
        %5887 = vmatprep.mubr.f32.mxu0 0.0
        %5888 = vmatmul.mubr.f32.gmra.mxu0 %v5656
        %v5889 = vpop.f32.mrf.mxu0
        %v5890 = vadd.f32 %v5576, %v5889
        %v5891 = vpop.f32.mrf.mxu0
        %v5892 = vadd.f32 %v5580, %v5891
        %5893 = vmatprep.mubr.f32.mxu0 0.0
        %5894 = vmatmul.mubr.f32.gmra.mxu0 %v5659
        %v5895 = vpop.f32.mrf.mxu0
        %v5896 = vadd.f32 %v5576, %v5895
        %v5897 = vpop.f32.mrf.mxu0
        %v5898 = vadd.f32 %v5580, %v5897
        %5899 = vmatprep.mubr.f32.mxu0 0.0
        %5900 = vmatmul.mubr.f32.gmra.mxu0 %v5662
        %v5901 = vpop.f32.mrf.mxu0
        %v5902 = vadd.f32 %v5576, %v5901
        %v5903 = vpop.f32.mrf.mxu0
        %v5904 = vadd.f32 %v5580, %v5903
        %5905 = vmatprep.mubr.f32.mxu0 0.0
        %5906 = vmatmul.mubr.f32.gmra.mxu0 %v5665
        %v5907 = vpop.f32.mrf.mxu0
        %v5908 = vadd.f32 %v5576, %v5907
        %v5909 = vpop.f32.mrf.mxu0
        %v5910 = vadd.f32 %v5580, %v5909
        %5911 = vmatprep.mubr.f32.mxu0 0.0
        %5912 = vmatmul.mubr.f32.gmra.mxu0 %v5668
        %v5913 = vpop.f32.mrf.mxu0
        %v5914 = vadd.f32 %v5576, %v5913
        %v5915 = vpop.f32.mrf.mxu0
        %v5916 = vadd.f32 %v5580, %v5915
        %5917 = vmatprep.mubr.f32.mxu0 0.0
        %5918 = vmatmul.mubr.f32.gmra.mxu0 %v5671
        %v5919 = vpop.f32.mrf.mxu0
        %v5920 = vadd.f32 %v5576, %v5919
        %v5921 = vpop.f32.mrf.mxu0
        %v5922 = vadd.f32 %v5580, %v5921
        %5923 = vmatprep.mubr.f32.mxu0 0.0
        %5924 = vmatmul.mubr.f32.gmra.mxu0 %v5674
        %v5925 = vpop.f32.mrf.mxu0
        %v5926 = vadd.f32 %v5576, %v5925
        %v5927 = vpop.f32.mrf.mxu0
        %v5928 = vadd.f32 %v5580, %v5927
        %5929 = vmatprep.mubr.f32.mxu0 0.0
        %5930 = vmatmul.mubr.f32.gmra.mxu0 %v5677
        %v5931 = vpop.f32.mrf.mxu0
        %v5932 = vadd.f32 %v5576, %v5931
        %v5933 = vpop.f32.mrf.mxu0
        %v5934 = vadd.f32 %v5580, %v5933
        %5935 = vdwg.mxu0
        %v5936 = vmul.f32 %v5746, 1.442695
        %v5937 = vpow.pop %v5936
        %v5938 = vmul.f32 %v5752, 1.442695
        %v5939 = vpow.pop %v5938
        %v5940 = vmul.f32 %v5758, 1.442695
        %v5941 = vpow.pop %v5940
        %v5942 = vmul.f32 %v5764, 1.442695
        %v5943 = vpow.pop %v5942
        %v5944 = vmul.f32 %v5770, 1.442695
        %v5945 = vpow.pop %v5944
        %v5946 = vmul.f32 %v5776, 1.442695
        %v5947 = vpow.pop %v5946
        %v5948 = vmul.f32 %v5782, 1.442695
        %v5949 = vpow.pop %v5948
        %v5950 = vmul.f32 %v5788, 1.442695
        %v5951 = vpow.pop %v5950
        %v5952 = vmul.f32 %v5794, 1.442695
        %v5953 = vpow.pop %v5952
        %v5954 = vmul.f32 %v5800, 1.442695
        %v5955 = vpow.pop %v5954
        %v5956 = vmul.f32 %v5806, 1.442695
        %v5957 = vpow.pop %v5956
        %v5958 = vmul.f32 %v5812, 1.442695
        %v5959 = vpow.pop %v5958
        %v5960 = vmul.f32 %v5818, 1.442695
        %v5961 = vpow.pop %v5960
        %v5962 = vmul.f32 %v5824, 1.442695
        %v5963 = vpow.pop %v5962
        %v5964 = vmul.f32 %v5830, 1.442695
        %v5965 = vpow.pop %v5964
        %v5966 = vmul.f32 %v5836, 1.442695
        %v5967 = vpow.pop %v5966
        %v5968 = vmul.f32 %v5842, 1.442695
        %v5969 = vpow.pop %v5968
        %v5970 = vmul.f32 %v5848, 1.442695
        %v5971 = vpow.pop %v5970
        %v5972 = vmul.f32 %v5854, 1.442695
        %v5973 = vpow.pop %v5972
        %v5974 = vmul.f32 %v5860, 1.442695
        %v5975 = vpow.pop %v5974
        %v5976 = vmul.f32 %v5866, 1.442695
        %v5977 = vpow.pop %v5976
        %v5978 = vmul.f32 %v5872, 1.442695
        %v5979 = vpow.pop %v5978
        %v5980 = vmul.f32 %v5878, 1.442695
        %v5981 = vpow.pop %v5980
        %v5982 = vmul.f32 %v5884, 1.442695
        %v5983 = vpow.pop %v5982
        %v5984 = vmul.f32 %v5890, 1.442695
        %v5985 = vpow.pop %v5984
        %v5986 = vmul.f32 %v5896, 1.442695
        %v5987 = vpow.pop %v5986
        %v5988 = vmul.f32 %v5902, 1.442695
        %v5989 = vpow.pop %v5988
        %v5990 = vmul.f32 %v5908, 1.442695
        %v5991 = vpow.pop %v5990
        %v5992 = vmul.f32 %v5914, 1.442695
        %v5993 = vpow.pop %v5992
        %v5994 = vmul.f32 %v5920, 1.442695
        %v5995 = vpow.pop %v5994
        %v5996 = vmul.f32 %v5926, 1.442695
        %v5997 = vpow.pop %v5996
        %v5998 = vmul.f32 %v5932, 1.442695
        %v5999 = vpow.pop %v5998
        %v6000 = vmul.f32 %v5937, %v3194
        %v6001 = vmul.f32 %v5939, %v3195
        %v6002 = vmul.f32 %v5941, %v3196
        %v6003 = vmul.f32 %v5943, %v3197
        %v6004 = vmul.f32 %v5945, %v3198
        %v6005 = vmul.f32 %v5947, %v3199
        %v6006 = vmul.f32 %v5949, %v3200
        %v6007 = vmul.f32 %v5951, %v3201
        %v6008 = vmul.f32 %v5953, %v3202
        %v6009 = vmul.f32 %v5955, %v3203
        %v6010 = vmul.f32 %v5957, %v3204
        %v6011 = vmul.f32 %v5959, %v3205
        %v6012 = vmul.f32 %v5961, %v3206
        %v6013 = vmul.f32 %v5963, %v3207
        %v6014 = vmul.f32 %v5965, %v3208
        %v6015 = vmul.f32 %v5967, %v3209
        %v6016 = vmul.f32 %v5969, %v3210
        %v6017 = vmul.f32 %v5971, %v3211
        %v6018 = vmul.f32 %v5973, %v3212
        %v6019 = vmul.f32 %v5975, %v3213
        %v6020 = vmul.f32 %v5977, %v3214
        %v6021 = vmul.f32 %v5979, %v3215
        %v6022 = vmul.f32 %v5981, %v3216
        %v6023 = vmul.f32 %v5983, %v3217
        %v6024 = vmul.f32 %v5985, %v3218
        %v6025 = vmul.f32 %v5987, %v3219
        %v6026 = vmul.f32 %v5989, %v3220
        %v6027 = vmul.f32 %v5991, %v3221
        %v6028 = vmul.f32 %v5993, %v3222
        %v6029 = vmul.f32 %v5995, %v3223
        %v6030 = vmul.f32 %v5997, %v3224
        %v6031 = vmul.f32 %v5999, %v3225
        %v6032 = vadd.f32 %v6000, %v5748
        %v6033 = vadd.f32 %v6001, %v5754
        %v6034 = vadd.f32 %v6002, %v5760
        %v6035 = vadd.f32 %v6003, %v5766
        %v6036 = vadd.f32 %v6004, %v5772
        %v6037 = vadd.f32 %v6005, %v5778
        %v6038 = vadd.f32 %v6006, %v5784
        %v6039 = vadd.f32 %v6007, %v5790
        %v6040 = vadd.f32 %v6008, %v5796
        %v6041 = vadd.f32 %v6009, %v5802
        %v6042 = vadd.f32 %v6010, %v5808
        %v6043 = vadd.f32 %v6011, %v5814
        %v6044 = vadd.f32 %v6012, %v5820
        %v6045 = vadd.f32 %v6013, %v5826
        %v6046 = vadd.f32 %v6014, %v5832
        %v6047 = vadd.f32 %v6015, %v5838
        %v6048 = vadd.f32 %v6016, %v5844
        %v6049 = vadd.f32 %v6017, %v5850
        %v6050 = vadd.f32 %v6018, %v5856
        %v6051 = vadd.f32 %v6019, %v5862
        %v6052 = vadd.f32 %v6020, %v5868
        %v6053 = vadd.f32 %v6021, %v5874
        %v6054 = vadd.f32 %v6022, %v5880
        %v6055 = vadd.f32 %v6023, %v5886
        %v6056 = vadd.f32 %v6024, %v5892
        %v6057 = vadd.f32 %v6025, %v5898
        %v6058 = vadd.f32 %v6026, %v5904
        %v6059 = vadd.f32 %v6027, %v5910
        %v6060 = vadd.f32 %v6028, %v5916
        %v6061 = vadd.f32 %v6029, %v5922
        %v6062 = vadd.f32 %v6030, %v5928
        %v6063 = vadd.f32 %v6031, %v5934
        %6064 = vst [vmem:[%s326] sm:$0xff] %v6032
        %6065 = vst [vmem:[%s326 + $0x10] sm:$0xff] %v6033
        %6066 = vst [vmem:[%s326 + $0x20] sm:$0xff] %v6034
        %6067 = vst [vmem:[%s326 + $0x30] sm:$0xff] %v6035
        %6068 = vst [vmem:[%s326 + $0x40] sm:$0xff] %v6036
        %6069 = vst [vmem:[%s326 + $0x50] sm:$0xff] %v6037
        %6070 = vst [vmem:[%s326 + $0x60] sm:$0xff] %v6038
        %6071 = vst [vmem:[%s326 + $0x70] sm:$0xff] %v6039
        %6072 = vst [vmem:[%s326 + $0x80] sm:$0xff] %v6040
        %6073 = vst [vmem:[%s326 + $0x90] sm:$0xff] %v6041
        %6074 = vst [vmem:[%s326 + $0xa0] sm:$0xff] %v6042
        %6075 = vst [vmem:[%s326 + $0xb0] sm:$0xff] %v6043
        %6076 = vst [vmem:[%s326 + $0xc0] sm:$0xff] %v6044
        %6077 = vst [vmem:[%s326 + $0xd0] sm:$0xff] %v6045
        %6078 = vst [vmem:[%s326 + $0xe0] sm:$0xff] %v6046
        %6079 = vst [vmem:[%s326 + $0xf0] sm:$0xff] %v6047
        %6080 = vst [vmem:[%s326 + $0x100] sm:$0xff] %v6048
        %6081 = vst [vmem:[%s326 + $0x110] sm:$0xff] %v6049
        %6082 = vst [vmem:[%s326 + $0x120] sm:$0xff] %v6050
        %6083 = vst [vmem:[%s326 + $0x130] sm:$0xff] %v6051
        %6084 = vst [vmem:[%s326 + $0x140] sm:$0xff] %v6052
        %6085 = vst [vmem:[%s326 + $0x150] sm:$0xff] %v6053
        %6086 = vst [vmem:[%s326 + $0x160] sm:$0xff] %v6054
        %6087 = vst [vmem:[%s326 + $0x170] sm:$0xff] %v6055
        %6088 = vst [vmem:[%s326 + $0x180] sm:$0xff] %v6056
        %6089 = vst [vmem:[%s326 + $0x190] sm:$0xff] %v6057
        %6090 = vst [vmem:[%s326 + $0x1a0] sm:$0xff] %v6058
        %6091 = vst [vmem:[%s326 + $0x1b0] sm:$0xff] %v6059
        %6092 = vst [vmem:[%s326 + $0x1c0] sm:$0xff] %v6060
        %6093 = vst [vmem:[%s326 + $0x1d0] sm:$0xff] %v6061
        %6094 = vst [vmem:[%s326 + $0x1e0] sm:$0xff] %v6062
        %6095 = vst [vmem:[%s326 + $0x1f0] sm:$0xff] %v6063
        %6096 = vst [vmem:[%s326 + $0x8] sm:$0xff] %v4613
        %6097 = vst [vmem:[%s326 + $0x18] sm:$0xff] %v4614
        %6098 = vst [vmem:[%s326 + $0x28] sm:$0xff] %v4615
        %6099 = vst [vmem:[%s326 + $0x38] sm:$0xff] %v4616
        %6100 = vst [vmem:[%s326 + $0x48] sm:$0xff] %v4617
        %6101 = vst [vmem:[%s326 + $0x58] sm:$0xff] %v4618
        %6102 = vst [vmem:[%s326 + $0x68] sm:$0xff] %v4619
        %6103 = vst [vmem:[%s326 + $0x78] sm:$0xff] %v4620
        %6104 = vst [vmem:[%s326 + $0x88] sm:$0xff] %v4621
        %6105 = vst [vmem:[%s326 + $0x98] sm:$0xff] %v4622
        %6106 = vst [vmem:[%s326 + $0xa8] sm:$0xff] %v4623
        %6107 = vst [vmem:[%s326 + $0xb8] sm:$0xff] %v4624
        %6108 = vst [vmem:[%s326 + $0xc8] sm:$0xff] %v4625
        %6109 = vst [vmem:[%s326 + $0xd8] sm:$0xff] %v4626
        %6110 = vst [vmem:[%s326 + $0xe8] sm:$0xff] %v4627
        %6111 = vst [vmem:[%s326 + $0xf8] sm:$0xff] %v4628
        %6112 = vst [vmem:[%s326 + $0x108] sm:$0xff] %v4629
        %6113 = vst [vmem:[%s326 + $0x118] sm:$0xff] %v4630
        %6114 = vst [vmem:[%s326 + $0x128] sm:$0xff] %v4631
        %6115 = vst [vmem:[%s326 + $0x138] sm:$0xff] %v4632
        %6116 = vst [vmem:[%s326 + $0x148] sm:$0xff] %v4633
        %6117 = vst [vmem:[%s326 + $0x158] sm:$0xff] %v4634
        %6118 = vst [vmem:[%s326 + $0x168] sm:$0xff] %v4635
        %6119 = vst [vmem:[%s326 + $0x178] sm:$0xff] %v4636
        %6120 = vst [vmem:[%s326 + $0x188] sm:$0xff] %v4637
        %6121 = vst [vmem:[%s326 + $0x198] sm:$0xff] %v4638
        %6122 = vst [vmem:[%s326 + $0x1a8] sm:$0xff] %v4639
        %6123 = vst [vmem:[%s326 + $0x1b8] sm:$0xff] %v4640
        %6124 = vst [vmem:[%s326 + $0x1c8] sm:$0xff] %v4641
        %6125 = vst [vmem:[%s326 + $0x1d8] sm:$0xff] %v4642
        %6126 = vst [vmem:[%s326 + $0x1e8] sm:$0xff] %v4643
        %6127 = vst [vmem:[%s326 + $0x1f8] sm:$0xff] %v4644
        %s6128 = sand.u32 %s185, 1
        %s6129 = scalar_lea.sflag [#allocation4], %s6128
        %s6130 = sand.u32 %s185, 1
        %s6131 = smul.addr %s6130, 512
        %s6132 = scalar_lea.vmem [#allocation8], %s6131
        // Predicated region
        $region61: #{tpu_custom_call.1} parent=47 // pred_check
          %p6133 = pneg %p195
        $region62: #{tpu_custom_call.1} parent=47 // pred_check_branch
          %6135 = sbr.rel (%p6133) target = $region64
        $region63: #{tpu_custom_call.1} parent=47 // pred_region
          %s6136 = smul.u32 32, %s25
          %s6138 = ssub.s32 8192, 8192
          %6139 = vsyncadd %s6129, %s6138
          %s6140 = smul.addr %s6136, 2
          %s6141 = smul.addr %s6140, 128
          %s6142 = scalar_lea.hbm %s7, %s6141
          %s6143 = sshll.u32 %s6132, 4
          %s6144 = int_to_ptr.vmem [resolvable:$true] %s6143
          %6149 = dma.vmem_to_hbm [thread:$0]  %s6144, 8192, %s6142, %s6129, 256, 256, 16
        $region64: #{tpu_custom_call.1} parent=47 // pred_fallthru
          _
      $region48: #{tpu_custom_call.1} parent=5 // pred_fallthru
        _
      %p6150 = scmp.le.s32.totalorder 2, %s20
      // Predicated region
      $region65: #{tpu_custom_call.1} parent=5 // pred_check
        %p6151 = pneg %p6150
      $region66: #{tpu_custom_call.1} parent=5 // pred_check_branch
        %6153 = sbr.rel (%p6151) target = $region68
      $region67: #{tpu_custom_call.1} parent=5 // pred_region
        %s6154 = ssub.s32 %s20, 2
        // Predicated region
        $region69: #{tpu_custom_call.1} parent=67 // pred_check
          %p6155 = pneg %p201
        $region70: #{tpu_custom_call.1} parent=67 // pred_check_branch
          %6157 = sbr.rel (%p6155) target = $region72
        $region71: #{tpu_custom_call.1} parent=67 // pred_region
          %s6158 = sand.u32 %s186, 1
          %s6159 = scalar_lea.sflag [#allocation4], %s6158
          %s6160 = sand.u32 %s186, 1
          %s6161 = smul.addr %s6160, 512
          %s6162 = scalar_lea.vmem [#allocation8], %s6161
          %6163 = dma.done %s6159, 8192
        $region72: #{tpu_custom_call.1} parent=67 // pred_fallthru
          _
      $region68: #{tpu_custom_call.1} parent=5 // pred_fallthru
        _
    $region6: #{tpu_custom_call.1} parent=1 // loop_footer
      %s24 = sadd.s32 1, %s20
    $region7: #{tpu_custom_call.1} parent=1 // loop_footer_branch
      %19 = sbr.rel target = $region3
    $region8: #{tpu_custom_call.1} parent=1 // loop_exit
      _
    %6164 = vsyncpa [#allocation3], 1
    %s6165 = scalar_lea.sflag [#allocation3], 1
    %6166 = vsyncpa %s6165, 1
    %6167 = vsyncpa [#allocation6], 1
    %6168 = vsyncpa [#allocation4], 1
    %s6169 = scalar_lea.sflag [#allocation4], 1
    %6170 = vsyncpa %s6169, 1

</llo_original>
